<compile_context>
chip_gen: v6e
topology: v6e:2x2x1
jax: 0.10.0
libtpu: 0.0.40
codegen_flags: <defaults>
</compile_context>

<pallas_src>
import jax
import jax.numpy as jnp
from jax.experimental import pallas as pl
from jax.experimental.pallas import tpu as pltpu


def head_kernel(x_ref, w1_ref, b1_ref, w2_ref, b2_ref, out_ref):
    """Fused: tanh(x @ W1 + b1) @ W2 + b2.

    x_ref  : [B, F]  f32  (VMEM)  -- cast to bf16 in-kernel (hidden under DMA)
    w1_ref : [F, H]  bf16 (VMEM)  -- dominant HBM traffic, streamed as bf16
    b1_ref : [1, H]  f32  (VMEM)
    w2_ref : [H, N]  bf16 (VMEM)  -- tiny, bf16 keeps a single MXU mode
    b2_ref : [1, N]  f32  (VMEM)
    out_ref: [B, N]  f32  (VMEM)
    """
    # In-kernel cast: VPU work fully hidden under the W1 DMA.
    x_bf16 = x_ref[...].astype(jnp.bfloat16)

    # bf16 x bf16 -> f32 accumulation on the MXU.
    h = jnp.dot(x_bf16, w1_ref[...], preferred_element_type=jnp.float32)

    # Bias + tanh in f32 (EUP tanh; free relative to the weight DMA).
    h = jnp.tanh(h + b1_ref[...])

    # Tiny second matmul (H x 2), also bf16 -> f32 accumulate.
    o = jnp.dot(h.astype(jnp.bfloat16), w2_ref[...],
                preferred_element_type=jnp.float32)
    out_ref[...] = o + b2_ref[...]


def prepare_head_params(w1, b1, w2, b2):
    """One-time parameter prep (hoisted out of the per-call forward path).

    Weights are expected in [in_features, out_features] layout (i.e. already
    transposed from PyTorch's [out, in] storage if imported from torch).
    """
    w1_bf16 = w1.astype(jnp.bfloat16)                      # 4 MiB -> 2 MiB
    b1_row = b1.reshape(1, -1).astype(jnp.float32)
    w2_bf16 = w2.astype(jnp.bfloat16)                      # tiny; single MXU mode
    b2_row = b2.reshape(1, -1).astype(jnp.float32)
    return w1_bf16, b1_row, w2_bf16, b2_row


def beta_vis_forward(x_feat, w1_bf16, b1_row, w2_bf16, b2_row,
                     nn_output=None, prediction=None, p_t=None, pass_sign=None):
    """Forward pass of beta_vis (fc head + identity GradLayer).

    x_feat stays f32 on the host graph; the bf16 cast happens inside the
    kernel so no standalone XLA convert op is dispatched per call.
    """
    B, F = x_feat.shape
    H = w1_bf16.shape[1]
    N = w2_bf16.shape[1]

    # Single-block kernel: no grid.  All blocks equal the full array shape,
    # so the (8,128) divisibility rule does not apply and no padding is
    # needed even for the tiny N=2 output.
    out = pl.pallas_call(
        head_kernel,
        out_shape=jax.ShapeDtypeStruct((B, N), jnp.float32),
        in_specs=[
            pl.BlockSpec((B, F), lambda: (0, 0)),
            pl.BlockSpec((F, H), lambda: (0, 0)),
            pl.BlockSpec((1, H), lambda: (0, 0)),
            pl.BlockSpec((H, N), lambda: (0, 0)),
            pl.BlockSpec((1, N), lambda: (0, 0)),
        ],
        out_specs=pl.BlockSpec((B, N), lambda: (0, 0)),
        compiler_params=pltpu.CompilerParams(vmem_limit_bytes=32 << 20),
    )(x_feat, w1_bf16, b1_row, w2_bf16, b2_row)

    # GradLayer forward == identity (nn_output/prediction/p_t/pass_sign only
    # influence the backward pass), so the prediction passes through unchanged.
    return out


def init_params(key, num_ftrs=2048, hidden=512, num_classes=2):
    """Deterministic synthetic init of the custom fc head ([in, out] layout)."""
    k1, k2, k3, k4 = jax.random.split(key, 4)
    w1 = jax.random.normal(k1, (num_ftrs, hidden), jnp.float32) * 0.02
    b1 = jax.random.normal(k2, (hidden,), jnp.float32) * 0.01
    w2 = jax.random.normal(k3, (hidden, num_classes), jnp.float32) * 0.02
    b2 = jax.random.normal(k4, (num_classes,), jnp.float32) * 0.01
    return w1, b1, w2, b2


if __name__ == "__main__":
    key = jax.random.PRNGKey(0)
    kx, kp, ko, kpr = jax.random.split(key, 4)

    B = 2
    NUM_FTRS = 2048   # resnet101 fc.in_features

    # Pooled backbone features (stand-in for resnet101 output before fc head).
    x_feat = jax.random.normal(kx, (B, NUM_FTRS), jnp.float32)

    # Extra forward() args (consumed only by GradLayer's backward).
    nn_output = jax.random.normal(ko, (B, 2), jnp.float32)
    prediction = jax.random.normal(kpr, (B, 2), jnp.float32)
    p_t = jnp.float32(0.5)
    pass_sign = jnp.int32(1)

    w1, b1, w2, b2 = init_params(kp, NUM_FTRS, 512, 2)
    w1_bf16, b1_row, w2_bf16, b2_row = prepare_head_params(w1, b1, w2, b2)

    p = beta_vis_forward(x_feat, w1_bf16, b1_row, w2_bf16, b2_row,
                         nn_output, prediction, p_t, pass_sign)
    p = jax.block_until_ready(p)

    # Reference check in plain JAX replicating the exact in-kernel math
    # (bf16 x / W1 / h / W2 with f32 accumulation, f32 bias + tanh).
    ref_h = jnp.tanh(
        jnp.dot(x_feat.astype(jnp.bfloat16), w1.astype(jnp.bfloat16),
                preferred_element_type=jnp.float32) + b1)
    ref = jnp.dot(ref_h.astype(jnp.bfloat16), w2.astype(jnp.bfloat16),
                  preferred_element_type=jnp.float32) + b2
    assert p.shape == (B, 2)
    assert jnp.allclose(p, ref, atol=2e-3, rtol=2e-3)

    # Sanity check against the full-f32 math (bf16 streaming error is tiny;
    # tanh saturation keeps it benign).
    ref_f32 = jnp.tanh(x_feat @ w1 + b1) @ w2 + b2
    assert jnp.allclose(p, ref_f32, atol=5e-2, rtol=5e-2)

    print("KERNEL_OK")
</pallas_src>

<mosaic_0001>
module attributes {stable_mosaic.version = 11 : i64} {
  func.func @head_kernel(%arg0: memref<2x2048xf32, #tpu.memory_space<vmem>>, %arg1: memref<2048x512xbf16, #tpu.memory_space<vmem>>, %arg2: memref<1x512xf32, #tpu.memory_space<vmem>>, %arg3: memref<512x2xbf16, #tpu.memory_space<vmem>>, %arg4: memref<1x2xf32, #tpu.memory_space<vmem>>, %arg5: memref<2x2xf32, #tpu.memory_space<vmem>>) attributes {dimension_semantics = [], scalar_prefetch = 0 : i64, scratch_operands = 0 : i64, tpu.core_type = #tpu.core_type<tc>} {
    %c0 = arith.constant 0 : index
    %c0_0 = arith.constant 0 : index
    %0 = vector.load %arg0[%c0, %c0_0] : memref<2x2048xf32, #tpu.memory_space<vmem>>, vector<2x2048xf32>
    %1 = arith.truncf %0 : vector<2x2048xf32> to vector<2x2048xbf16>
    %c0_1 = arith.constant 0 : index
    %c0_2 = arith.constant 0 : index
    %2 = vector.load %arg1[%c0_1, %c0_2] : memref<2048x512xbf16, #tpu.memory_space<vmem>>, vector<2048x512xbf16>
    %cst = arith.constant dense<0.000000e+00> : vector<2x512xf32>
    %3 = tpu.matmul %1, %2, %cst {dimension_numbers = #tpu.dot_dimension_numbers<[1], [0], [0], [1], [0, 0, 1, 1], [], []>} : vector<2x2048xbf16>, vector<2048x512xbf16>, vector<2x512xf32> -> vector<2x512xf32>
    %c0_3 = arith.constant 0 : index
    %c0_4 = arith.constant 0 : index
    %4 = vector.load %arg2[%c0_3, %c0_4] : memref<1x512xf32, #tpu.memory_space<vmem>>, vector<1x512xf32>
    %5 = vector.broadcast %4 : vector<1x512xf32> to vector<2x512xf32>
    %6 = arith.addf %3, %5 : vector<2x512xf32>
    %7 = math.tanh %6 : vector<2x512xf32>
    %8 = arith.truncf %7 : vector<2x512xf32> to vector<2x512xbf16>
    %c0_5 = arith.constant 0 : index
    %c0_6 = arith.constant 0 : index
    %9 = vector.load %arg3[%c0_5, %c0_6] : memref<512x2xbf16, #tpu.memory_space<vmem>>, vector<512x2xbf16>
    %cst_7 = arith.constant dense<0.000000e+00> : vector<2x2xf32>
    %10 = tpu.matmul %8, %9, %cst_7 {dimension_numbers = #tpu.dot_dimension_numbers<[1], [0], [0], [1], [0, 0, 1, 1], [], []>} : vector<2x512xbf16>, vector<512x2xbf16>, vector<2x2xf32> -> vector<2x2xf32>
    %c0_8 = arith.constant 0 : index
    %c0_9 = arith.constant 0 : index
    %11 = vector.load %arg4[%c0_8, %c0_9] : memref<1x2xf32, #tpu.memory_space<vmem>>, vector<1x2xf32>
    %12 = vector.broadcast %11 : vector<1x2xf32> to vector<2x2xf32>
    %13 = arith.addf %10, %12 : vector<2x2xf32>
    %c0_10 = arith.constant 0 : index
    %c0_11 = arith.constant 0 : index
    %14 = vector.load %arg5[%c0_10, %c0_11] : memref<2x2xf32, #tpu.memory_space<vmem>>, vector<2x2xf32>
    tpu.vector_store %arg5[%c0_10, %c0_11], %13 {strides = array<i32>} : memref<2x2xf32, #tpu.memory_space<vmem>>, vector<2x2xf32>,
    return
  }
}

</mosaic_0001>

<llo_original>
// kernel: tpu_custom_call.1
$region0: #{tpu_custom_call.1}
  #allocation0 [shape = 'u32[]', space=smem, size = 0x4, offset = 0x4, fixed_abs, tag = 'smem constant byte address 0x4 - core index']
  #allocation1 [shape = 'u32[144,128]{1,0:T(1,128)}', space=vmem, size = 0x12000, scoped, tag = 'internal scratch']
  %s0 = inlined_call_operand.hbm [shape: f32[2,2048], index: 0, kind: input, shape index: {}]
  %s1 = inlined_call_operand.hbm [shape: bf16[2048,512], index: 1, kind: input, shape index: {}]
  %s2 = inlined_call_operand.hbm [shape: f32[1,512], index: 2, kind: input, shape index: {}]
  %s3 = inlined_call_operand.vmem [shape: bf16[512,2], index: 3, kind: input, shape index: {}]
  %s4 = inlined_call_operand.hbm [shape: f32[1,2], index: 4, kind: input, shape index: {}]
  %s5 = inlined_call_operand.hbm [shape: f32[2,2], index: 5, kind: output, shape index: {}]
  %s6 = sld [smem:[#allocation0]]
  $region46: #{tpu_custom_call.1} parent=0
    _
  %s8 = ssub.s32 1, %s6
  %s9 = scalar_select 0, %s8, %s6
  $region1: #{tpu_custom_call.1} parent=0
    #allocation2 [shape = 'u8[16384]{0}', space=vmem, size = 0x4000, scoped, tag = 'input window, operand 0, single buffered']
    #allocation3 [shape = 's32[1]{0}', space=sflag, size = 0x4, scoped, tag = 'scoped memory for tpu_custom_call.1']
    #allocation4 [shape = 's32[1]{0}', space=sflag, size = 0x4, scoped, tag = 'scoped memory for tpu_custom_call.1']
    #allocation5 [shape = 'u8[2097152]{0}', space=vmem, size = 0x200000, scoped, tag = 'input window, operand 1, single buffered']
    #allocation6 [shape = 's32[1]{0}', space=sflag, size = 0x4, scoped, tag = 'scoped memory for tpu_custom_call.1']
    #allocation7 [shape = 'u8[2048]{0}', space=vmem, size = 0x800, scoped, tag = 'input window, operand 2, single buffered']
    #allocation8 [shape = 'u8[512]{0}', space=vmem, size = 0x400, scoped, tag = 'input window, operand 4, single buffered']
    #allocation9 [shape = 's32[1]{0}', space=sflag, size = 0x4, scoped, tag = 'scoped memory for tpu_custom_call.1']
    #allocation10 [shape = 'u8[1024]{0}', space=vmem, size = 0x400, scoped, tag = 'output window, operand 0, single buffered']
    %10 = vsyncpa [#allocation3], 0
    %11 = vsyncpa [#allocation6], 0
    %12 = vsyncpa [#allocation9], 0
    %13 = vsyncpa [#allocation4], 0
    // Predicated region
    $region2: #{tpu_custom_call.1} parent=1 // pred_check
      _
    $region3: #{tpu_custom_call.1} parent=1 // pred_check_branch
      %15 = sbr.rel (0) target = $region5
    $region4: #{tpu_custom_call.1} parent=1 // pred_region
      %s17 = ssub.s32 512, 512
      %18 = vsyncadd [#allocation3], %s17
      %s20 = sshll.u32 [#allocation2], 4
      %s21 = int_to_ptr.vmem [resolvable:$true] %s20
      %23 = dma.hbm_to_vmem [thread:$0]  %s0, 512, %s21, [#allocation3]
    $region5: #{tpu_custom_call.1} parent=1 // pred_fallthru
      _
    // Predicated region
    $region6: #{tpu_custom_call.1} parent=1 // pred_check
      _
    $region7: #{tpu_custom_call.1} parent=1 // pred_check_branch
      %25 = sbr.rel (0) target = $region9
    $region8: #{tpu_custom_call.1} parent=1 // pred_region
      %s27 = ssub.s32 65536, 65536
      %28 = vsyncadd [#allocation6], %s27
      %s29 = sshll.u32 [#allocation5], 4
      %s30 = int_to_ptr.vmem [resolvable:$true] %s29
      %35 = dma.hbm_to_vmem [thread:$0]  %s1, 65536, %s30, [#allocation6], 256, 256, 16
    $region9: #{tpu_custom_call.1} parent=1 // pred_fallthru
      _
    // Predicated region
    $region10: #{tpu_custom_call.1} parent=1 // pred_check
      _
    $region11: #{tpu_custom_call.1} parent=1 // pred_check_branch
      %37 = sbr.rel (0) target = $region13
    $region12: #{tpu_custom_call.1} parent=1 // pred_region
      %s39 = ssub.s32 64, 64
      %40 = vsyncadd [#allocation6], %s39
      %s42 = sshll.u32 [#allocation7], 4
      %s43 = int_to_ptr.vmem [resolvable:$true] %s42
      %45 = dma.hbm_to_vmem [thread:$0]  %s2, 64, %s43, [#allocation6]
    $region13: #{tpu_custom_call.1} parent=1 // pred_fallthru
      _
    // Predicated region
    $region14: #{tpu_custom_call.1} parent=1 // pred_check
      _
    $region15: #{tpu_custom_call.1} parent=1 // pred_check_branch
      %47 = sbr.rel (0) target = $region17
    $region16: #{tpu_custom_call.1} parent=1 // pred_region
      _
    $region17: #{tpu_custom_call.1} parent=1 // pred_fallthru
      _
    // Predicated region
    $region18: #{tpu_custom_call.1} parent=1 // pred_check
      _
    $region19: #{tpu_custom_call.1} parent=1 // pred_check_branch
      %49 = sbr.rel (0) target = $region21
    $region20: #{tpu_custom_call.1} parent=1 // pred_region
      %s51 = ssub.s32 16, 16
      %52 = vsyncadd [#allocation9], %s51
      %s54 = sshll.u32 [#allocation8], 4
      %s55 = int_to_ptr.vmem [resolvable:$true] %s54
      %57 = dma.hbm_to_vmem [thread:$0]  %s4, 16, %s55, [#allocation9]
    $region21: #{tpu_custom_call.1} parent=1 // pred_fallthru
      _
    // Predicated region
    $region22: #{tpu_custom_call.1} parent=1 // pred_check
      _
    $region23: #{tpu_custom_call.1} parent=1 // pred_check_branch
      %59 = sbr.rel (0) target = $region25
    $region24: #{tpu_custom_call.1} parent=1 // pred_region
      %60 = dma.done [#allocation3], 512
    $region25: #{tpu_custom_call.1} parent=1 // pred_fallthru
      _
    // Predicated region
    $region26: #{tpu_custom_call.1} parent=1 // pred_check
      _
    $region27: #{tpu_custom_call.1} parent=1 // pred_check_branch
      %62 = sbr.rel (0) target = $region29
    $region28: #{tpu_custom_call.1} parent=1 // pred_region
      %63 = dma.done [#allocation6], 65536
    $region29: #{tpu_custom_call.1} parent=1 // pred_fallthru
      _
    // Predicated region
    $region30: #{tpu_custom_call.1} parent=1 // pred_check
      _
    $region31: #{tpu_custom_call.1} parent=1 // pred_check_branch
      %65 = sbr.rel (0) target = $region33
    $region32: #{tpu_custom_call.1} parent=1 // pred_region
      %66 = dma.done [#allocation6], 64
    $region33: #{tpu_custom_call.1} parent=1 // pred_fallthru
      _
    // Predicated region
    $region34: #{tpu_custom_call.1} parent=1 // pred_check
      _
    $region35: #{tpu_custom_call.1} parent=1 // pred_check_branch
      %68 = sbr.rel (0) target = $region37
    $region36: #{tpu_custom_call.1} parent=1 // pred_region
      %69 = dma.done [#allocation9], 16
    $region37: #{tpu_custom_call.1} parent=1 // pred_fallthru
      _
    %v71 = vld [vmem:[#allocation2] sm:$0xff]
    %v72 = vld [vmem:[#allocation2 + $0x8] sm:$0xff]
    %v73 = vld [vmem:[#allocation2 + $0x10] sm:$0xff]
    %v74 = vld [vmem:[#allocation2 + $0x18] sm:$0xff]
    %v79 = vcombine.high %v71, %v71
    %v81 = vunpack.c.l.s4 1983009808
    %v82 = vunpack.c.0.s8 %v81
    %v83 = vlaneseq
    %v84 = vshrl.u32 %v83, 7
    %v85 = vsub.s32 %v82, %v84
    %v86 = vrot.slane %v71, %v85
    %v88 = vunpack.c.l.s4 1983009808
    %v89 = vunpack.c.0.s8 %v88
    %v90 = vlaneseq
    %v91 = vshrl.u32 %v90, 7
    %v92 = vsub.s32 %v89, %v91
    %v93 = vrot.slane %v79, %v92
    %v94 = vcombine.high %v86, %v86
    %v95 = vcombine.high %v93, %v93
    %v96 = vcombine.high %v72, %v72
    %v98 = vunpack.c.l.s4 1983009808
    %v99 = vunpack.c.0.s8 %v98
    %v100 = vlaneseq
    %v101 = vshrl.u32 %v100, 7
    %v102 = vsub.s32 %v99, %v101
    %v103 = vrot.slane %v72, %v102
    %v105 = vunpack.c.l.s4 1983009808
    %v106 = vunpack.c.0.s8 %v105
    %v107 = vlaneseq
    %v108 = vshrl.u32 %v107, 7
    %v109 = vsub.s32 %v106, %v108
    %v110 = vrot.slane %v96, %v109
    %v111 = vcombine.high %v103, %v103
    %v112 = vcombine.high %v110, %v110
    %v113 = vcombine.high %v73, %v73
    %v115 = vunpack.c.l.s4 1983009808
    %v116 = vunpack.c.0.s8 %v115
    %v117 = vlaneseq
    %v118 = vshrl.u32 %v117, 7
    %v119 = vsub.s32 %v116, %v118
    %v120 = vrot.slane %v73, %v119
    %v122 = vunpack.c.l.s4 1983009808
    %v123 = vunpack.c.0.s8 %v122
    %v124 = vlaneseq
    %v125 = vshrl.u32 %v124, 7
    %v126 = vsub.s32 %v123, %v125
    %v127 = vrot.slane %v113, %v126
    %v128 = vcombine.high %v120, %v120
    %v129 = vcombine.high %v127, %v127
    %v130 = vcombine.high %v74, %v74
    %v132 = vunpack.c.l.s4 1983009808
    %v133 = vunpack.c.0.s8 %v132
    %v134 = vlaneseq
    %v135 = vshrl.u32 %v134, 7
    %v136 = vsub.s32 %v133, %v135
    %v137 = vrot.slane %v74, %v136
    %v139 = vunpack.c.l.s4 1983009808
    %v140 = vunpack.c.0.s8 %v139
    %v141 = vlaneseq
    %v142 = vshrl.u32 %v141, 7
    %v143 = vsub.s32 %v140, %v142
    %v144 = vrot.slane %v130, %v143
    %v145 = vcombine.high %v137, %v137
    %v146 = vcombine.high %v144, %v144
    %v163 = vpack.c.bf16 %v86, %v86
    %v164 = vpack.c.bf16 %v94, %v94
    %v165 = vpack.c.bf16 %v93, %v93
    %v166 = vpack.c.bf16 %v95, %v95
    %v167 = vpack.c.bf16 %v103, %v103
    %v168 = vpack.c.bf16 %v111, %v111
    %v169 = vpack.c.bf16 %v110, %v110
    %v170 = vpack.c.bf16 %v112, %v112
    %v171 = vpack.c.bf16 %v120, %v120
    %v172 = vpack.c.bf16 %v128, %v128
    %v173 = vpack.c.bf16 %v127, %v127
    %v174 = vpack.c.bf16 %v129, %v129
    %v175 = vpack.c.bf16 %v137, %v137
    %v176 = vpack.c.bf16 %v145, %v145
    %v177 = vpack.c.bf16 %v144, %v144
    %v178 = vpack.c.bf16 %v146, %v146
    %v179 = vld [vmem:[#allocation5] sm:$0xff]
    %v180 = vld [vmem:[#allocation5 + $0x8] sm:$0xff]
    %v181 = vld [vmem:[#allocation5 + $0x10] sm:$0xff]
    %v182 = vld [vmem:[#allocation5 + $0x18] sm:$0xff]
    %v183 = vld [vmem:[#allocation5 + $0x20] sm:$0xff]
    %v184 = vld [vmem:[#allocation5 + $0x28] sm:$0xff]
    %v185 = vld [vmem:[#allocation5 + $0x30] sm:$0xff]
    %v186 = vld [vmem:[#allocation5 + $0x38] sm:$0xff]
    %v187 = vld [vmem:[#allocation5 + $0x40] sm:$0xff]
    %v188 = vld [vmem:[#allocation5 + $0x48] sm:$0xff]
    %v189 = vld [vmem:[#allocation5 + $0x50] sm:$0xff]
    %v190 = vld [vmem:[#allocation5 + $0x58] sm:$0xff]
    %v191 = vld [vmem:[#allocation5 + $0x60] sm:$0xff]
    %v192 = vld [vmem:[#allocation5 + $0x68] sm:$0xff]
    %v193 = vld [vmem:[#allocation5 + $0x70] sm:$0xff]
    %v194 = vld [vmem:[#allocation5 + $0x78] sm:$0xff]
    %v195 = vld [vmem:[#allocation5 + $0x80] sm:$0xff]
    %v196 = vld [vmem:[#allocation5 + $0x88] sm:$0xff]
    %v197 = vld [vmem:[#allocation5 + $0x90] sm:$0xff]
    %v198 = vld [vmem:[#allocation5 + $0x98] sm:$0xff]
    %v199 = vld [vmem:[#allocation5 + $0xa0] sm:$0xff]
    %v200 = vld [vmem:[#allocation5 + $0xa8] sm:$0xff]
    %v201 = vld [vmem:[#allocation5 + $0xb0] sm:$0xff]
    %v202 = vld [vmem:[#allocation5 + $0xb8] sm:$0xff]
    %v203 = vld [vmem:[#allocation5 + $0xc0] sm:$0xff]
    %v204 = vld [vmem:[#allocation5 + $0xc8] sm:$0xff]
    %v205 = vld [vmem:[#allocation5 + $0xd0] sm:$0xff]
    %v206 = vld [vmem:[#allocation5 + $0xd8] sm:$0xff]
    %v207 = vld [vmem:[#allocation5 + $0xe0] sm:$0xff]
    %v208 = vld [vmem:[#allocation5 + $0xe8] sm:$0xff]
    %v209 = vld [vmem:[#allocation5 + $0xf0] sm:$0xff]
    %v210 = vld [vmem:[#allocation5 + $0xf8] sm:$0xff]
    %v211 = vld [vmem:[#allocation5 + $0x100] sm:$0xff]
    %v212 = vld [vmem:[#allocation5 + $0x108] sm:$0xff]
    %v213 = vld [vmem:[#allocation5 + $0x110] sm:$0xff]
    %v214 = vld [vmem:[#allocation5 + $0x118] sm:$0xff]
    %v215 = vld [vmem:[#allocation5 + $0x120] sm:$0xff]
    %v216 = vld [vmem:[#allocation5 + $0x128] sm:$0xff]
    %v217 = vld [vmem:[#allocation5 + $0x130] sm:$0xff]
    %v218 = vld [vmem:[#allocation5 + $0x138] sm:$0xff]
    %v219 = vld [vmem:[#allocation5 + $0x140] sm:$0xff]
    %v220 = vld [vmem:[#allocation5 + $0x148] sm:$0xff]
    %v221 = vld [vmem:[#allocation5 + $0x150] sm:$0xff]
    %v222 = vld [vmem:[#allocation5 + $0x158] sm:$0xff]
    %v223 = vld [vmem:[#allocation5 + $0x160] sm:$0xff]
    %v224 = vld [vmem:[#allocation5 + $0x168] sm:$0xff]
    %v225 = vld [vmem:[#allocation5 + $0x170] sm:$0xff]
    %v226 = vld [vmem:[#allocation5 + $0x178] sm:$0xff]
    %v227 = vld [vmem:[#allocation5 + $0x180] sm:$0xff]
    %v228 = vld [vmem:[#allocation5 + $0x188] sm:$0xff]
    %v229 = vld [vmem:[#allocation5 + $0x190] sm:$0xff]
    %v230 = vld [vmem:[#allocation5 + $0x198] sm:$0xff]
    %v231 = vld [vmem:[#allocation5 + $0x1a0] sm:$0xff]
    %v232 = vld [vmem:[#allocation5 + $0x1a8] sm:$0xff]
    %v233 = vld [vmem:[#allocation5 + $0x1b0] sm:$0xff]
    %v234 = vld [vmem:[#allocation5 + $0x1b8] sm:$0xff]
    %v235 = vld [vmem:[#allocation5 + $0x1c0] sm:$0xff]
    %v236 = vld [vmem:[#allocation5 + $0x1c8] sm:$0xff]
    %v237 = vld [vmem:[#allocation5 + $0x1d0] sm:$0xff]
    %v238 = vld [vmem:[#allocation5 + $0x1d8] sm:$0xff]
    %v239 = vld [vmem:[#allocation5 + $0x1e0] sm:$0xff]
    %v240 = vld [vmem:[#allocation5 + $0x1e8] sm:$0xff]
    %v241 = vld [vmem:[#allocation5 + $0x1f0] sm:$0xff]
    %v242 = vld [vmem:[#allocation5 + $0x1f8] sm:$0xff]
    %v243 = vld [vmem:[#allocation5 + $0x200] sm:$0xff]
    %v244 = vld [vmem:[#allocation5 + $0x208] sm:$0xff]
    %v245 = vld [vmem:[#allocation5 + $0x210] sm:$0xff]
    %v246 = vld [vmem:[#allocation5 + $0x218] sm:$0xff]
    %v247 = vld [vmem:[#allocation5 + $0x220] sm:$0xff]
    %v248 = vld [vmem:[#allocation5 + $0x228] sm:$0xff]
    %v249 = vld [vmem:[#allocation5 + $0x230] sm:$0xff]
    %v250 = vld [vmem:[#allocation5 + $0x238] sm:$0xff]
    %v251 = vld [vmem:[#allocation5 + $0x240] sm:$0xff]
    %v252 = vld [vmem:[#allocation5 + $0x248] sm:$0xff]
    %v253 = vld [vmem:[#allocation5 + $0x250] sm:$0xff]
    %v254 = vld [vmem:[#allocation5 + $0x258] sm:$0xff]
    %v255 = vld [vmem:[#allocation5 + $0x260] sm:$0xff]
    %v256 = vld [vmem:[#allocation5 + $0x268] sm:$0xff]
    %v257 = vld [vmem:[#allocation5 + $0x270] sm:$0xff]
    %v258 = vld [vmem:[#allocation5 + $0x278] sm:$0xff]
    %v259 = vld [vmem:[#allocation5 + $0x280] sm:$0xff]
    %v260 = vld [vmem:[#allocation5 + $0x288] sm:$0xff]
    %v261 = vld [vmem:[#allocation5 + $0x290] sm:$0xff]
    %v262 = vld [vmem:[#allocation5 + $0x298] sm:$0xff]
    %v263 = vld [vmem:[#allocation5 + $0x2a0] sm:$0xff]
    %v264 = vld [vmem:[#allocation5 + $0x2a8] sm:$0xff]
    %v265 = vld [vmem:[#allocation5 + $0x2b0] sm:$0xff]
    %v266 = vld [vmem:[#allocation5 + $0x2b8] sm:$0xff]
    %v267 = vld [vmem:[#allocation5 + $0x2c0] sm:$0xff]
    %v268 = vld [vmem:[#allocation5 + $0x2c8] sm:$0xff]
    %v269 = vld [vmem:[#allocation5 + $0x2d0] sm:$0xff]
    %v270 = vld [vmem:[#allocation5 + $0x2d8] sm:$0xff]
    %v271 = vld [vmem:[#allocation5 + $0x2e0] sm:$0xff]
    %v272 = vld [vmem:[#allocation5 + $0x2e8] sm:$0xff]
    %v273 = vld [vmem:[#allocation5 + $0x2f0] sm:$0xff]
    %v274 = vld [vmem:[#allocation5 + $0x2f8] sm:$0xff]
    %v275 = vld [vmem:[#allocation5 + $0x300] sm:$0xff]
    %v276 = vld [vmem:[#allocation5 + $0x308] sm:$0xff]
    %v277 = vld [vmem:[#allocation5 + $0x310] sm:$0xff]
    %v278 = vld [vmem:[#allocation5 + $0x318] sm:$0xff]
    %v279 = vld [vmem:[#allocation5 + $0x320] sm:$0xff]
    %v280 = vld [vmem:[#allocation5 + $0x328] sm:$0xff]
    %v281 = vld [vmem:[#allocation5 + $0x330] sm:$0xff]
    %v282 = vld [vmem:[#allocation5 + $0x338] sm:$0xff]
    %v283 = vld [vmem:[#allocation5 + $0x340] sm:$0xff]
    %v284 = vld [vmem:[#allocation5 + $0x348] sm:$0xff]
    %v285 = vld [vmem:[#allocation5 + $0x350] sm:$0xff]
    %v286 = vld [vmem:[#allocation5 + $0x358] sm:$0xff]
    %v287 = vld [vmem:[#allocation5 + $0x360] sm:$0xff]
    %v288 = vld [vmem:[#allocation5 + $0x368] sm:$0xff]
    %v289 = vld [vmem:[#allocation5 + $0x370] sm:$0xff]
    %v290 = vld [vmem:[#allocation5 + $0x378] sm:$0xff]
    %v291 = vld [vmem:[#allocation5 + $0x380] sm:$0xff]
    %v292 = vld [vmem:[#allocation5 + $0x388] sm:$0xff]
    %v293 = vld [vmem:[#allocation5 + $0x390] sm:$0xff]
    %v294 = vld [vmem:[#allocation5 + $0x398] sm:$0xff]
    %v295 = vld [vmem:[#allocation5 + $0x3a0] sm:$0xff]
    %v296 = vld [vmem:[#allocation5 + $0x3a8] sm:$0xff]
    %v297 = vld [vmem:[#allocation5 + $0x3b0] sm:$0xff]
    %v298 = vld [vmem:[#allocation5 + $0x3b8] sm:$0xff]
    %v299 = vld [vmem:[#allocation5 + $0x3c0] sm:$0xff]
    %v300 = vld [vmem:[#allocation5 + $0x3c8] sm:$0xff]
    %v301 = vld [vmem:[#allocation5 + $0x3d0] sm:$0xff]
    %v302 = vld [vmem:[#allocation5 + $0x3d8] sm:$0xff]
    %v303 = vld [vmem:[#allocation5 + $0x3e0] sm:$0xff]
    %v304 = vld [vmem:[#allocation5 + $0x3e8] sm:$0xff]
    %v305 = vld [vmem:[#allocation5 + $0x3f0] sm:$0xff]
    %v306 = vld [vmem:[#allocation5 + $0x3f8] sm:$0xff]
    %v307 = vld [vmem:[#allocation5 + $0x400] sm:$0xff]
    %v308 = vld [vmem:[#allocation5 + $0x408] sm:$0xff]
    %v309 = vld [vmem:[#allocation5 + $0x410] sm:$0xff]
    %v310 = vld [vmem:[#allocation5 + $0x418] sm:$0xff]
    %v311 = vld [vmem:[#allocation5 + $0x420] sm:$0xff]
    %v312 = vld [vmem:[#allocation5 + $0x428] sm:$0xff]
    %v313 = vld [vmem:[#allocation5 + $0x430] sm:$0xff]
    %v314 = vld [vmem:[#allocation5 + $0x438] sm:$0xff]
    %v315 = vld [vmem:[#allocation5 + $0x440] sm:$0xff]
    %v316 = vld [vmem:[#allocation5 + $0x448] sm:$0xff]
    %v317 = vld [vmem:[#allocation5 + $0x450] sm:$0xff]
    %v318 = vld [vmem:[#allocation5 + $0x458] sm:$0xff]
    %v319 = vld [vmem:[#allocation5 + $0x460] sm:$0xff]
    %v320 = vld [vmem:[#allocation5 + $0x468] sm:$0xff]
    %v321 = vld [vmem:[#allocation5 + $0x470] sm:$0xff]
    %v322 = vld [vmem:[#allocation5 + $0x478] sm:$0xff]
    %v323 = vld [vmem:[#allocation5 + $0x480] sm:$0xff]
    %v324 = vld [vmem:[#allocation5 + $0x488] sm:$0xff]
    %v325 = vld [vmem:[#allocation5 + $0x490] sm:$0xff]
    %v326 = vld [vmem:[#allocation5 + $0x498] sm:$0xff]
    %v327 = vld [vmem:[#allocation5 + $0x4a0] sm:$0xff]
    %v328 = vld [vmem:[#allocation5 + $0x4a8] sm:$0xff]
    %v329 = vld [vmem:[#allocation5 + $0x4b0] sm:$0xff]
    %v330 = vld [vmem:[#allocation5 + $0x4b8] sm:$0xff]
    %v331 = vld [vmem:[#allocation5 + $0x4c0] sm:$0xff]
    %v332 = vld [vmem:[#allocation5 + $0x4c8] sm:$0xff]
    %v333 = vld [vmem:[#allocation5 + $0x4d0] sm:$0xff]
    %v334 = vld [vmem:[#allocation5 + $0x4d8] sm:$0xff]
    %v335 = vld [vmem:[#allocation5 + $0x4e0] sm:$0xff]
    %v336 = vld [vmem:[#allocation5 + $0x4e8] sm:$0xff]
    %v337 = vld [vmem:[#allocation5 + $0x4f0] sm:$0xff]
    %v338 = vld [vmem:[#allocation5 + $0x4f8] sm:$0xff]
    %v339 = vld [vmem:[#allocation5 + $0x500] sm:$0xff]
    %v340 = vld [vmem:[#allocation5 + $0x508] sm:$0xff]
    %v341 = vld [vmem:[#allocation5 + $0x510] sm:$0xff]
    %v342 = vld [vmem:[#allocation5 + $0x518] sm:$0xff]
    %v343 = vld [vmem:[#allocation5 + $0x520] sm:$0xff]
    %v344 = vld [vmem:[#allocation5 + $0x528] sm:$0xff]
    %v345 = vld [vmem:[#allocation5 + $0x530] sm:$0xff]
    %v346 = vld [vmem:[#allocation5 + $0x538] sm:$0xff]
    %v347 = vld [vmem:[#allocation5 + $0x540] sm:$0xff]
    %v348 = vld [vmem:[#allocation5 + $0x548] sm:$0xff]
    %v349 = vld [vmem:[#allocation5 + $0x550] sm:$0xff]
    %v350 = vld [vmem:[#allocation5 + $0x558] sm:$0xff]
    %v351 = vld [vmem:[#allocation5 + $0x560] sm:$0xff]
    %v352 = vld [vmem:[#allocation5 + $0x568] sm:$0xff]
    %v353 = vld [vmem:[#allocation5 + $0x570] sm:$0xff]
    %v354 = vld [vmem:[#allocation5 + $0x578] sm:$0xff]
    %v355 = vld [vmem:[#allocation5 + $0x580] sm:$0xff]
    %v356 = vld [vmem:[#allocation5 + $0x588] sm:$0xff]
    %v357 = vld [vmem:[#allocation5 + $0x590] sm:$0xff]
    %v358 = vld [vmem:[#allocation5 + $0x598] sm:$0xff]
    %v359 = vld [vmem:[#allocation5 + $0x5a0] sm:$0xff]
    %v360 = vld [vmem:[#allocation5 + $0x5a8] sm:$0xff]
    %v361 = vld [vmem:[#allocation5 + $0x5b0] sm:$0xff]
    %v362 = vld [vmem:[#allocation5 + $0x5b8] sm:$0xff]
    %v363 = vld [vmem:[#allocation5 + $0x5c0] sm:$0xff]
    %v364 = vld [vmem:[#allocation5 + $0x5c8] sm:$0xff]
    %v365 = vld [vmem:[#allocation5 + $0x5d0] sm:$0xff]
    %v366 = vld [vmem:[#allocation5 + $0x5d8] sm:$0xff]
    %v367 = vld [vmem:[#allocation5 + $0x5e0] sm:$0xff]
    %v368 = vld [vmem:[#allocation5 + $0x5e8] sm:$0xff]
    %v369 = vld [vmem:[#allocation5 + $0x5f0] sm:$0xff]
    %v370 = vld [vmem:[#allocation5 + $0x5f8] sm:$0xff]
    %v371 = vld [vmem:[#allocation5 + $0x600] sm:$0xff]
    %v372 = vld [vmem:[#allocation5 + $0x608] sm:$0xff]
    %v373 = vld [vmem:[#allocation5 + $0x610] sm:$0xff]
    %v374 = vld [vmem:[#allocation5 + $0x618] sm:$0xff]
    %v375 = vld [vmem:[#allocation5 + $0x620] sm:$0xff]
    %v376 = vld [vmem:[#allocation5 + $0x628] sm:$0xff]
    %v377 = vld [vmem:[#allocation5 + $0x630] sm:$0xff]
    %v378 = vld [vmem:[#allocation5 + $0x638] sm:$0xff]
    %v379 = vld [vmem:[#allocation5 + $0x640] sm:$0xff]
    %v380 = vld [vmem:[#allocation5 + $0x648] sm:$0xff]
    %v381 = vld [vmem:[#allocation5 + $0x650] sm:$0xff]
    %v382 = vld [vmem:[#allocation5 + $0x658] sm:$0xff]
    %v383 = vld [vmem:[#allocation5 + $0x660] sm:$0xff]
    %v384 = vld [vmem:[#allocation5 + $0x668] sm:$0xff]
    %v385 = vld [vmem:[#allocation5 + $0x670] sm:$0xff]
    %v386 = vld [vmem:[#allocation5 + $0x678] sm:$0xff]
    %v387 = vld [vmem:[#allocation5 + $0x680] sm:$0xff]
    %v388 = vld [vmem:[#allocation5 + $0x688] sm:$0xff]
    %v389 = vld [vmem:[#allocation5 + $0x690] sm:$0xff]
    %v390 = vld [vmem:[#allocation5 + $0x698] sm:$0xff]
    %v391 = vld [vmem:[#allocation5 + $0x6a0] sm:$0xff]
    %v392 = vld [vmem:[#allocation5 + $0x6a8] sm:$0xff]
    %v393 = vld [vmem:[#allocation5 + $0x6b0] sm:$0xff]
    %v394 = vld [vmem:[#allocation5 + $0x6b8] sm:$0xff]
    %v395 = vld [vmem:[#allocation5 + $0x6c0] sm:$0xff]
    %v396 = vld [vmem:[#allocation5 + $0x6c8] sm:$0xff]
    %v397 = vld [vmem:[#allocation5 + $0x6d0] sm:$0xff]
    %v398 = vld [vmem:[#allocation5 + $0x6d8] sm:$0xff]
    %v399 = vld [vmem:[#allocation5 + $0x6e0] sm:$0xff]
    %v400 = vld [vmem:[#allocation5 + $0x6e8] sm:$0xff]
    %v401 = vld [vmem:[#allocation5 + $0x6f0] sm:$0xff]
    %v402 = vld [vmem:[#allocation5 + $0x6f8] sm:$0xff]
    %v403 = vld [vmem:[#allocation5 + $0x700] sm:$0xff]
    %v404 = vld [vmem:[#allocation5 + $0x708] sm:$0xff]
    %v405 = vld [vmem:[#allocation5 + $0x710] sm:$0xff]
    %v406 = vld [vmem:[#allocation5 + $0x718] sm:$0xff]
    %v407 = vld [vmem:[#allocation5 + $0x720] sm:$0xff]
    %v408 = vld [vmem:[#allocation5 + $0x728] sm:$0xff]
    %v409 = vld [vmem:[#allocation5 + $0x730] sm:$0xff]
    %v410 = vld [vmem:[#allocation5 + $0x738] sm:$0xff]
    %v411 = vld [vmem:[#allocation5 + $0x740] sm:$0xff]
    %v412 = vld [vmem:[#allocation5 + $0x748] sm:$0xff]
    %v413 = vld [vmem:[#allocation5 + $0x750] sm:$0xff]
    %v414 = vld [vmem:[#allocation5 + $0x758] sm:$0xff]
    %v415 = vld [vmem:[#allocation5 + $0x760] sm:$0xff]
    %v416 = vld [vmem:[#allocation5 + $0x768] sm:$0xff]
    %v417 = vld [vmem:[#allocation5 + $0x770] sm:$0xff]
    %v418 = vld [vmem:[#allocation5 + $0x778] sm:$0xff]
    %v419 = vld [vmem:[#allocation5 + $0x780] sm:$0xff]
    %v420 = vld [vmem:[#allocation5 + $0x788] sm:$0xff]
    %v421 = vld [vmem:[#allocation5 + $0x790] sm:$0xff]
    %v422 = vld [vmem:[#allocation5 + $0x798] sm:$0xff]
    %v423 = vld [vmem:[#allocation5 + $0x7a0] sm:$0xff]
    %v424 = vld [vmem:[#allocation5 + $0x7a8] sm:$0xff]
    %v425 = vld [vmem:[#allocation5 + $0x7b0] sm:$0xff]
    %v426 = vld [vmem:[#allocation5 + $0x7b8] sm:$0xff]
    %v427 = vld [vmem:[#allocation5 + $0x7c0] sm:$0xff]
    %v428 = vld [vmem:[#allocation5 + $0x7c8] sm:$0xff]
    %v429 = vld [vmem:[#allocation5 + $0x7d0] sm:$0xff]
    %v430 = vld [vmem:[#allocation5 + $0x7d8] sm:$0xff]
    %v431 = vld [vmem:[#allocation5 + $0x7e0] sm:$0xff]
    %v432 = vld [vmem:[#allocation5 + $0x7e8] sm:$0xff]
    %v433 = vld [vmem:[#allocation5 + $0x7f0] sm:$0xff]
    %v434 = vld [vmem:[#allocation5 + $0x7f8] sm:$0xff]
    %v435 = vld [vmem:[#allocation5 + $0x800] sm:$0xff]
    %v436 = vld [vmem:[#allocation5 + $0x808] sm:$0xff]
    %v437 = vld [vmem:[#allocation5 + $0x810] sm:$0xff]
    %v438 = vld [vmem:[#allocation5 + $0x818] sm:$0xff]
    %v439 = vld [vmem:[#allocation5 + $0x820] sm:$0xff]
    %v440 = vld [vmem:[#allocation5 + $0x828] sm:$0xff]
    %v441 = vld [vmem:[#allocation5 + $0x830] sm:$0xff]
    %v442 = vld [vmem:[#allocation5 + $0x838] sm:$0xff]
    %v443 = vld [vmem:[#allocation5 + $0x840] sm:$0xff]
    %v444 = vld [vmem:[#allocation5 + $0x848] sm:$0xff]
    %v445 = vld [vmem:[#allocation5 + $0x850] sm:$0xff]
    %v446 = vld [vmem:[#allocation5 + $0x858] sm:$0xff]
    %v447 = vld [vmem:[#allocation5 + $0x860] sm:$0xff]
    %v448 = vld [vmem:[#allocation5 + $0x868] sm:$0xff]
    %v449 = vld [vmem:[#allocation5 + $0x870] sm:$0xff]
    %v450 = vld [vmem:[#allocation5 + $0x878] sm:$0xff]
    %v451 = vld [vmem:[#allocation5 + $0x880] sm:$0xff]
    %v452 = vld [vmem:[#allocation5 + $0x888] sm:$0xff]
    %v453 = vld [vmem:[#allocation5 + $0x890] sm:$0xff]
    %v454 = vld [vmem:[#allocation5 + $0x898] sm:$0xff]
    %v455 = vld [vmem:[#allocation5 + $0x8a0] sm:$0xff]
    %v456 = vld [vmem:[#allocation5 + $0x8a8] sm:$0xff]
    %v457 = vld [vmem:[#allocation5 + $0x8b0] sm:$0xff]
    %v458 = vld [vmem:[#allocation5 + $0x8b8] sm:$0xff]
    %v459 = vld [vmem:[#allocation5 + $0x8c0] sm:$0xff]
    %v460 = vld [vmem:[#allocation5 + $0x8c8] sm:$0xff]
    %v461 = vld [vmem:[#allocation5 + $0x8d0] sm:$0xff]
    %v462 = vld [vmem:[#allocation5 + $0x8d8] sm:$0xff]
    %v463 = vld [vmem:[#allocation5 + $0x8e0] sm:$0xff]
    %v464 = vld [vmem:[#allocation5 + $0x8e8] sm:$0xff]
    %v465 = vld [vmem:[#allocation5 + $0x8f0] sm:$0xff]
    %v466 = vld [vmem:[#allocation5 + $0x8f8] sm:$0xff]
    %v467 = vld [vmem:[#allocation5 + $0x900] sm:$0xff]
    %v468 = vld [vmem:[#allocation5 + $0x908] sm:$0xff]
    %v469 = vld [vmem:[#allocation5 + $0x910] sm:$0xff]
    %v470 = vld [vmem:[#allocation5 + $0x918] sm:$0xff]
    %v471 = vld [vmem:[#allocation5 + $0x920] sm:$0xff]
    %v472 = vld [vmem:[#allocation5 + $0x928] sm:$0xff]
    %v473 = vld [vmem:[#allocation5 + $0x930] sm:$0xff]
    %v474 = vld [vmem:[#allocation5 + $0x938] sm:$0xff]
    %v475 = vld [vmem:[#allocation5 + $0x940] sm:$0xff]
    %v476 = vld [vmem:[#allocation5 + $0x948] sm:$0xff]
    %v477 = vld [vmem:[#allocation5 + $0x950] sm:$0xff]
    %v478 = vld [vmem:[#allocation5 + $0x958] sm:$0xff]
    %v479 = vld [vmem:[#allocation5 + $0x960] sm:$0xff]
    %v480 = vld [vmem:[#allocation5 + $0x968] sm:$0xff]
    %v481 = vld [vmem:[#allocation5 + $0x970] sm:$0xff]
    %v482 = vld [vmem:[#allocation5 + $0x978] sm:$0xff]
    %v483 = vld [vmem:[#allocation5 + $0x980] sm:$0xff]
    %v484 = vld [vmem:[#allocation5 + $0x988] sm:$0xff]
    %v485 = vld [vmem:[#allocation5 + $0x990] sm:$0xff]
    %v486 = vld [vmem:[#allocation5 + $0x998] sm:$0xff]
    %v487 = vld [vmem:[#allocation5 + $0x9a0] sm:$0xff]
    %v488 = vld [vmem:[#allocation5 + $0x9a8] sm:$0xff]
    %v489 = vld [vmem:[#allocation5 + $0x9b0] sm:$0xff]
    %v490 = vld [vmem:[#allocation5 + $0x9b8] sm:$0xff]
    %v491 = vld [vmem:[#allocation5 + $0x9c0] sm:$0xff]
    %v492 = vld [vmem:[#allocation5 + $0x9c8] sm:$0xff]
    %v493 = vld [vmem:[#allocation5 + $0x9d0] sm:$0xff]
    %v494 = vld [vmem:[#allocation5 + $0x9d8] sm:$0xff]
    %v495 = vld [vmem:[#allocation5 + $0x9e0] sm:$0xff]
    %v496 = vld [vmem:[#allocation5 + $0x9e8] sm:$0xff]
    %v497 = vld [vmem:[#allocation5 + $0x9f0] sm:$0xff]
    %v498 = vld [vmem:[#allocation5 + $0x9f8] sm:$0xff]
    %v499 = vld [vmem:[#allocation5 + $0xa00] sm:$0xff]
    %v500 = vld [vmem:[#allocation5 + $0xa08] sm:$0xff]
    %v501 = vld [vmem:[#allocation5 + $0xa10] sm:$0xff]
    %v502 = vld [vmem:[#allocation5 + $0xa18] sm:$0xff]
    %v503 = vld [vmem:[#allocation5 + $0xa20] sm:$0xff]
    %v504 = vld [vmem:[#allocation5 + $0xa28] sm:$0xff]
    %v505 = vld [vmem:[#allocation5 + $0xa30] sm:$0xff]
    %v506 = vld [vmem:[#allocation5 + $0xa38] sm:$0xff]
    %v507 = vld [vmem:[#allocation5 + $0xa40] sm:$0xff]
    %v508 = vld [vmem:[#allocation5 + $0xa48] sm:$0xff]
    %v509 = vld [vmem:[#allocation5 + $0xa50] sm:$0xff]
    %v510 = vld [vmem:[#allocation5 + $0xa58] sm:$0xff]
    %v511 = vld [vmem:[#allocation5 + $0xa60] sm:$0xff]
    %v512 = vld [vmem:[#allocation5 + $0xa68] sm:$0xff]
    %v513 = vld [vmem:[#allocation5 + $0xa70] sm:$0xff]
    %v514 = vld [vmem:[#allocation5 + $0xa78] sm:$0xff]
    %v515 = vld [vmem:[#allocation5 + $0xa80] sm:$0xff]
    %v516 = vld [vmem:[#allocation5 + $0xa88] sm:$0xff]
    %v517 = vld [vmem:[#allocation5 + $0xa90] sm:$0xff]
    %v518 = vld [vmem:[#allocation5 + $0xa98] sm:$0xff]
    %v519 = vld [vmem:[#allocation5 + $0xaa0] sm:$0xff]
    %v520 = vld [vmem:[#allocation5 + $0xaa8] sm:$0xff]
    %v521 = vld [vmem:[#allocation5 + $0xab0] sm:$0xff]
    %v522 = vld [vmem:[#allocation5 + $0xab8] sm:$0xff]
    %v523 = vld [vmem:[#allocation5 + $0xac0] sm:$0xff]
    %v524 = vld [vmem:[#allocation5 + $0xac8] sm:$0xff]
    %v525 = vld [vmem:[#allocation5 + $0xad0] sm:$0xff]
    %v526 = vld [vmem:[#allocation5 + $0xad8] sm:$0xff]
    %v527 = vld [vmem:[#allocation5 + $0xae0] sm:$0xff]
    %v528 = vld [vmem:[#allocation5 + $0xae8] sm:$0xff]
    %v529 = vld [vmem:[#allocation5 + $0xaf0] sm:$0xff]
    %v530 = vld [vmem:[#allocation5 + $0xaf8] sm:$0xff]
    %v531 = vld [vmem:[#allocation5 + $0xb00] sm:$0xff]
    %v532 = vld [vmem:[#allocation5 + $0xb08] sm:$0xff]
    %v533 = vld [vmem:[#allocation5 + $0xb10] sm:$0xff]
    %v534 = vld [vmem:[#allocation5 + $0xb18] sm:$0xff]
    %v535 = vld [vmem:[#allocation5 + $0xb20] sm:$0xff]
    %v536 = vld [vmem:[#allocation5 + $0xb28] sm:$0xff]
    %v537 = vld [vmem:[#allocation5 + $0xb30] sm:$0xff]
    %v538 = vld [vmem:[#allocation5 + $0xb38] sm:$0xff]
    %v539 = vld [vmem:[#allocation5 + $0xb40] sm:$0xff]
    %v540 = vld [vmem:[#allocation5 + $0xb48] sm:$0xff]
    %v541 = vld [vmem:[#allocation5 + $0xb50] sm:$0xff]
    %v542 = vld [vmem:[#allocation5 + $0xb58] sm:$0xff]
    %v543 = vld [vmem:[#allocation5 + $0xb60] sm:$0xff]
    %v544 = vld [vmem:[#allocation5 + $0xb68] sm:$0xff]
    %v545 = vld [vmem:[#allocation5 + $0xb70] sm:$0xff]
    %v546 = vld [vmem:[#allocation5 + $0xb78] sm:$0xff]
    %v547 = vld [vmem:[#allocation5 + $0xb80] sm:$0xff]
    %v548 = vld [vmem:[#allocation5 + $0xb88] sm:$0xff]
    %v549 = vld [vmem:[#allocation5 + $0xb90] sm:$0xff]
    %v550 = vld [vmem:[#allocation5 + $0xb98] sm:$0xff]
    %v551 = vld [vmem:[#allocation5 + $0xba0] sm:$0xff]
    %v552 = vld [vmem:[#allocation5 + $0xba8] sm:$0xff]
    %v553 = vld [vmem:[#allocation5 + $0xbb0] sm:$0xff]
    %v554 = vld [vmem:[#allocation5 + $0xbb8] sm:$0xff]
    %v555 = vld [vmem:[#allocation5 + $0xbc0] sm:$0xff]
    %v556 = vld [vmem:[#allocation5 + $0xbc8] sm:$0xff]
    %v557 = vld [vmem:[#allocation5 + $0xbd0] sm:$0xff]
    %v558 = vld [vmem:[#allocation5 + $0xbd8] sm:$0xff]
    %v559 = vld [vmem:[#allocation5 + $0xbe0] sm:$0xff]
    %v560 = vld [vmem:[#allocation5 + $0xbe8] sm:$0xff]
    %v561 = vld [vmem:[#allocation5 + $0xbf0] sm:$0xff]
    %v562 = vld [vmem:[#allocation5 + $0xbf8] sm:$0xff]
    %v563 = vld [vmem:[#allocation5 + $0xc00] sm:$0xff]
    %v564 = vld [vmem:[#allocation5 + $0xc08] sm:$0xff]
    %v565 = vld [vmem:[#allocation5 + $0xc10] sm:$0xff]
    %v566 = vld [vmem:[#allocation5 + $0xc18] sm:$0xff]
    %v567 = vld [vmem:[#allocation5 + $0xc20] sm:$0xff]
    %v568 = vld [vmem:[#allocation5 + $0xc28] sm:$0xff]
    %v569 = vld [vmem:[#allocation5 + $0xc30] sm:$0xff]
    %v570 = vld [vmem:[#allocation5 + $0xc38] sm:$0xff]
    %v571 = vld [vmem:[#allocation5 + $0xc40] sm:$0xff]
    %v572 = vld [vmem:[#allocation5 + $0xc48] sm:$0xff]
    %v573 = vld [vmem:[#allocation5 + $0xc50] sm:$0xff]
    %v574 = vld [vmem:[#allocation5 + $0xc58] sm:$0xff]
    %v575 = vld [vmem:[#allocation5 + $0xc60] sm:$0xff]
    %v576 = vld [vmem:[#allocation5 + $0xc68] sm:$0xff]
    %v577 = vld [vmem:[#allocation5 + $0xc70] sm:$0xff]
    %v578 = vld [vmem:[#allocation5 + $0xc78] sm:$0xff]
    %v579 = vld [vmem:[#allocation5 + $0xc80] sm:$0xff]
    %v580 = vld [vmem:[#allocation5 + $0xc88] sm:$0xff]
    %v581 = vld [vmem:[#allocation5 + $0xc90] sm:$0xff]
    %v582 = vld [vmem:[#allocation5 + $0xc98] sm:$0xff]
    %v583 = vld [vmem:[#allocation5 + $0xca0] sm:$0xff]
    %v584 = vld [vmem:[#allocation5 + $0xca8] sm:$0xff]
    %v585 = vld [vmem:[#allocation5 + $0xcb0] sm:$0xff]
    %v586 = vld [vmem:[#allocation5 + $0xcb8] sm:$0xff]
    %v587 = vld [vmem:[#allocation5 + $0xcc0] sm:$0xff]
    %v588 = vld [vmem:[#allocation5 + $0xcc8] sm:$0xff]
    %v589 = vld [vmem:[#allocation5 + $0xcd0] sm:$0xff]
    %v590 = vld [vmem:[#allocation5 + $0xcd8] sm:$0xff]
    %v591 = vld [vmem:[#allocation5 + $0xce0] sm:$0xff]
    %v592 = vld [vmem:[#allocation5 + $0xce8] sm:$0xff]
    %v593 = vld [vmem:[#allocation5 + $0xcf0] sm:$0xff]
    %v594 = vld [vmem:[#allocation5 + $0xcf8] sm:$0xff]
    %v595 = vld [vmem:[#allocation5 + $0xd00] sm:$0xff]
    %v596 = vld [vmem:[#allocation5 + $0xd08] sm:$0xff]
    %v597 = vld [vmem:[#allocation5 + $0xd10] sm:$0xff]
    %v598 = vld [vmem:[#allocation5 + $0xd18] sm:$0xff]
    %v599 = vld [vmem:[#allocation5 + $0xd20] sm:$0xff]
    %v600 = vld [vmem:[#allocation5 + $0xd28] sm:$0xff]
    %v601 = vld [vmem:[#allocation5 + $0xd30] sm:$0xff]
    %v602 = vld [vmem:[#allocation5 + $0xd38] sm:$0xff]
    %v603 = vld [vmem:[#allocation5 + $0xd40] sm:$0xff]
    %v604 = vld [vmem:[#allocation5 + $0xd48] sm:$0xff]
    %v605 = vld [vmem:[#allocation5 + $0xd50] sm:$0xff]
    %v606 = vld [vmem:[#allocation5 + $0xd58] sm:$0xff]
    %v607 = vld [vmem:[#allocation5 + $0xd60] sm:$0xff]
    %v608 = vld [vmem:[#allocation5 + $0xd68] sm:$0xff]
    %v609 = vld [vmem:[#allocation5 + $0xd70] sm:$0xff]
    %v610 = vld [vmem:[#allocation5 + $0xd78] sm:$0xff]
    %v611 = vld [vmem:[#allocation5 + $0xd80] sm:$0xff]
    %v612 = vld [vmem:[#allocation5 + $0xd88] sm:$0xff]
    %v613 = vld [vmem:[#allocation5 + $0xd90] sm:$0xff]
    %v614 = vld [vmem:[#allocation5 + $0xd98] sm:$0xff]
    %v615 = vld [vmem:[#allocation5 + $0xda0] sm:$0xff]
    %v616 = vld [vmem:[#allocation5 + $0xda8] sm:$0xff]
    %v617 = vld [vmem:[#allocation5 + $0xdb0] sm:$0xff]
    %v618 = vld [vmem:[#allocation5 + $0xdb8] sm:$0xff]
    %v619 = vld [vmem:[#allocation5 + $0xdc0] sm:$0xff]
    %v620 = vld [vmem:[#allocation5 + $0xdc8] sm:$0xff]
    %v621 = vld [vmem:[#allocation5 + $0xdd0] sm:$0xff]
    %v622 = vld [vmem:[#allocation5 + $0xdd8] sm:$0xff]
    %v623 = vld [vmem:[#allocation5 + $0xde0] sm:$0xff]
    %v624 = vld [vmem:[#allocation5 + $0xde8] sm:$0xff]
    %v625 = vld [vmem:[#allocation5 + $0xdf0] sm:$0xff]
    %v626 = vld [vmem:[#allocation5 + $0xdf8] sm:$0xff]
    %v627 = vld [vmem:[#allocation5 + $0xe00] sm:$0xff]
    %v628 = vld [vmem:[#allocation5 + $0xe08] sm:$0xff]
    %v629 = vld [vmem:[#allocation5 + $0xe10] sm:$0xff]
    %v630 = vld [vmem:[#allocation5 + $0xe18] sm:$0xff]
    %v631 = vld [vmem:[#allocation5 + $0xe20] sm:$0xff]
    %v632 = vld [vmem:[#allocation5 + $0xe28] sm:$0xff]
    %v633 = vld [vmem:[#allocation5 + $0xe30] sm:$0xff]
    %v634 = vld [vmem:[#allocation5 + $0xe38] sm:$0xff]
    %v635 = vld [vmem:[#allocation5 + $0xe40] sm:$0xff]
    %v636 = vld [vmem:[#allocation5 + $0xe48] sm:$0xff]
    %v637 = vld [vmem:[#allocation5 + $0xe50] sm:$0xff]
    %v638 = vld [vmem:[#allocation5 + $0xe58] sm:$0xff]
    %v639 = vld [vmem:[#allocation5 + $0xe60] sm:$0xff]
    %v640 = vld [vmem:[#allocation5 + $0xe68] sm:$0xff]
    %v641 = vld [vmem:[#allocation5 + $0xe70] sm:$0xff]
    %v642 = vld [vmem:[#allocation5 + $0xe78] sm:$0xff]
    %v643 = vld [vmem:[#allocation5 + $0xe80] sm:$0xff]
    %v644 = vld [vmem:[#allocation5 + $0xe88] sm:$0xff]
    %v645 = vld [vmem:[#allocation5 + $0xe90] sm:$0xff]
    %v646 = vld [vmem:[#allocation5 + $0xe98] sm:$0xff]
    %v647 = vld [vmem:[#allocation5 + $0xea0] sm:$0xff]
    %v648 = vld [vmem:[#allocation5 + $0xea8] sm:$0xff]
    %v649 = vld [vmem:[#allocation5 + $0xeb0] sm:$0xff]
    %v650 = vld [vmem:[#allocation5 + $0xeb8] sm:$0xff]
    %v651 = vld [vmem:[#allocation5 + $0xec0] sm:$0xff]
    %v652 = vld [vmem:[#allocation5 + $0xec8] sm:$0xff]
    %v653 = vld [vmem:[#allocation5 + $0xed0] sm:$0xff]
    %v654 = vld [vmem:[#allocation5 + $0xed8] sm:$0xff]
    %v655 = vld [vmem:[#allocation5 + $0xee0] sm:$0xff]
    %v656 = vld [vmem:[#allocation5 + $0xee8] sm:$0xff]
    %v657 = vld [vmem:[#allocation5 + $0xef0] sm:$0xff]
    %v658 = vld [vmem:[#allocation5 + $0xef8] sm:$0xff]
    %v659 = vld [vmem:[#allocation5 + $0xf00] sm:$0xff]
    %v660 = vld [vmem:[#allocation5 + $0xf08] sm:$0xff]
    %v661 = vld [vmem:[#allocation5 + $0xf10] sm:$0xff]
    %v662 = vld [vmem:[#allocation5 + $0xf18] sm:$0xff]
    %v663 = vld [vmem:[#allocation5 + $0xf20] sm:$0xff]
    %v664 = vld [vmem:[#allocation5 + $0xf28] sm:$0xff]
    %v665 = vld [vmem:[#allocation5 + $0xf30] sm:$0xff]
    %v666 = vld [vmem:[#allocation5 + $0xf38] sm:$0xff]
    %v667 = vld [vmem:[#allocation5 + $0xf40] sm:$0xff]
    %v668 = vld [vmem:[#allocation5 + $0xf48] sm:$0xff]
    %v669 = vld [vmem:[#allocation5 + $0xf50] sm:$0xff]
    %v670 = vld [vmem:[#allocation5 + $0xf58] sm:$0xff]
    %v671 = vld [vmem:[#allocation5 + $0xf60] sm:$0xff]
    %v672 = vld [vmem:[#allocation5 + $0xf68] sm:$0xff]
    %v673 = vld [vmem:[#allocation5 + $0xf70] sm:$0xff]
    %v674 = vld [vmem:[#allocation5 + $0xf78] sm:$0xff]
    %v675 = vld [vmem:[#allocation5 + $0xf80] sm:$0xff]
    %v676 = vld [vmem:[#allocation5 + $0xf88] sm:$0xff]
    %v677 = vld [vmem:[#allocation5 + $0xf90] sm:$0xff]
    %v678 = vld [vmem:[#allocation5 + $0xf98] sm:$0xff]
    %v679 = vld [vmem:[#allocation5 + $0xfa0] sm:$0xff]
    %v680 = vld [vmem:[#allocation5 + $0xfa8] sm:$0xff]
    %v681 = vld [vmem:[#allocation5 + $0xfb0] sm:$0xff]
    %v682 = vld [vmem:[#allocation5 + $0xfb8] sm:$0xff]
    %v683 = vld [vmem:[#allocation5 + $0xfc0] sm:$0xff]
    %v684 = vld [vmem:[#allocation5 + $0xfc8] sm:$0xff]
    %v685 = vld [vmem:[#allocation5 + $0xfd0] sm:$0xff]
    %v686 = vld [vmem:[#allocation5 + $0xfd8] sm:$0xff]
    %v687 = vld [vmem:[#allocation5 + $0xfe0] sm:$0xff]
    %v688 = vld [vmem:[#allocation5 + $0xfe8] sm:$0xff]
    %v689 = vld [vmem:[#allocation5 + $0xff0] sm:$0xff]
    %v690 = vld [vmem:[#allocation5 + $0xff8] sm:$0xff]
    %v691 = vld [vmem:[#allocation7] sm:$0xf]
    %v693 = vlaneseq
    %v694 = vshrl.u32 %v693, 7
    %v695 = vsub.s32 0, %v694
    %v696 = vrot.slane %v691, %v695
    %v697 = vlaneseq
    %v698 = vshrl.u32 %v697, 7
    %v699 = vsub.s32 1, %v698
    %v700 = vrot.slane %v691, %v699
    %v701 = vlaneseq
    %v702 = vshrl.u32 %v701, 7
    %v703 = vsub.s32 2, %v702
    %v704 = vrot.slane %v691, %v703
    %v705 = vlaneseq
    %v706 = vshrl.u32 %v705, 7
    %v707 = vsub.s32 3, %v706
    %v708 = vrot.slane %v691, %v707
    %v1225 = vunpack.c.l.b16 %v179
    %v1226 = vunpack.c.h.b16 %v179
    %v1227 = vunpack.c.l.b16 %v180
    %v1228 = vunpack.c.h.b16 %v180
    %v1229 = vunpack.c.l.b16 %v181
    %v1230 = vunpack.c.h.b16 %v181
    %v1231 = vunpack.c.l.b16 %v182
    %v1232 = vunpack.c.h.b16 %v182
    %v1233 = vunpack.c.l.b16 %v183
    %v1234 = vunpack.c.h.b16 %v183
    %v1235 = vunpack.c.l.b16 %v184
    %v1236 = vunpack.c.h.b16 %v184
    %v1237 = vunpack.c.l.b16 %v185
    %v1238 = vunpack.c.h.b16 %v185
    %v1239 = vunpack.c.l.b16 %v186
    %v1240 = vunpack.c.h.b16 %v186
    %v1241 = vunpack.c.l.b16 %v187
    %v1242 = vunpack.c.h.b16 %v187
    %v1243 = vunpack.c.l.b16 %v188
    %v1244 = vunpack.c.h.b16 %v188
    %v1245 = vunpack.c.l.b16 %v189
    %v1246 = vunpack.c.h.b16 %v189
    %v1247 = vunpack.c.l.b16 %v190
    %v1248 = vunpack.c.h.b16 %v190
    %v1249 = vunpack.c.l.b16 %v191
    %v1250 = vunpack.c.h.b16 %v191
    %v1251 = vunpack.c.l.b16 %v192
    %v1252 = vunpack.c.h.b16 %v192
    %v1253 = vunpack.c.l.b16 %v193
    %v1254 = vunpack.c.h.b16 %v193
    %v1255 = vunpack.c.l.b16 %v194
    %v1256 = vunpack.c.h.b16 %v194
    %v1257 = vunpack.c.l.b16 %v195
    %v1258 = vunpack.c.h.b16 %v195
    %v1259 = vunpack.c.l.b16 %v196
    %v1260 = vunpack.c.h.b16 %v196
    %v1261 = vunpack.c.l.b16 %v197
    %v1262 = vunpack.c.h.b16 %v197
    %v1263 = vunpack.c.l.b16 %v198
    %v1264 = vunpack.c.h.b16 %v198
    %v1265 = vunpack.c.l.b16 %v199
    %v1266 = vunpack.c.h.b16 %v199
    %v1267 = vunpack.c.l.b16 %v200
    %v1268 = vunpack.c.h.b16 %v200
    %v1269 = vunpack.c.l.b16 %v201
    %v1270 = vunpack.c.h.b16 %v201
    %v1271 = vunpack.c.l.b16 %v202
    %v1272 = vunpack.c.h.b16 %v202
    %v1273 = vunpack.c.l.b16 %v203
    %v1274 = vunpack.c.h.b16 %v203
    %v1275 = vunpack.c.l.b16 %v204
    %v1276 = vunpack.c.h.b16 %v204
    %v1277 = vunpack.c.l.b16 %v205
    %v1278 = vunpack.c.h.b16 %v205
    %v1279 = vunpack.c.l.b16 %v206
    %v1280 = vunpack.c.h.b16 %v206
    %v1281 = vunpack.c.l.b16 %v207
    %v1282 = vunpack.c.h.b16 %v207
    %v1283 = vunpack.c.l.b16 %v208
    %v1284 = vunpack.c.h.b16 %v208
    %v1285 = vunpack.c.l.b16 %v209
    %v1286 = vunpack.c.h.b16 %v209
    %v1287 = vunpack.c.l.b16 %v210
    %v1288 = vunpack.c.h.b16 %v210
    %v1289 = vunpack.c.l.b16 %v211
    %v1290 = vunpack.c.h.b16 %v211
    %v1291 = vunpack.c.l.b16 %v212
    %v1292 = vunpack.c.h.b16 %v212
    %v1293 = vunpack.c.l.b16 %v213
    %v1294 = vunpack.c.h.b16 %v213
    %v1295 = vunpack.c.l.b16 %v214
    %v1296 = vunpack.c.h.b16 %v214
    %v1297 = vunpack.c.l.b16 %v215
    %v1298 = vunpack.c.h.b16 %v215
    %v1299 = vunpack.c.l.b16 %v216
    %v1300 = vunpack.c.h.b16 %v216
    %v1301 = vunpack.c.l.b16 %v217
    %v1302 = vunpack.c.h.b16 %v217
    %v1303 = vunpack.c.l.b16 %v218
    %v1304 = vunpack.c.h.b16 %v218
    %v1305 = vunpack.c.l.b16 %v219
    %v1306 = vunpack.c.h.b16 %v219
    %v1307 = vunpack.c.l.b16 %v220
    %v1308 = vunpack.c.h.b16 %v220
    %v1309 = vunpack.c.l.b16 %v221
    %v1310 = vunpack.c.h.b16 %v221
    %v1311 = vunpack.c.l.b16 %v222
    %v1312 = vunpack.c.h.b16 %v222
    %v1313 = vunpack.c.l.b16 %v223
    %v1314 = vunpack.c.h.b16 %v223
    %v1315 = vunpack.c.l.b16 %v224
    %v1316 = vunpack.c.h.b16 %v224
    %v1317 = vunpack.c.l.b16 %v225
    %v1318 = vunpack.c.h.b16 %v225
    %v1319 = vunpack.c.l.b16 %v226
    %v1320 = vunpack.c.h.b16 %v226
    %v1321 = vunpack.c.l.b16 %v227
    %v1322 = vunpack.c.h.b16 %v227
    %v1323 = vunpack.c.l.b16 %v228
    %v1324 = vunpack.c.h.b16 %v228
    %v1325 = vunpack.c.l.b16 %v229
    %v1326 = vunpack.c.h.b16 %v229
    %v1327 = vunpack.c.l.b16 %v230
    %v1328 = vunpack.c.h.b16 %v230
    %v1329 = vunpack.c.l.b16 %v231
    %v1330 = vunpack.c.h.b16 %v231
    %v1331 = vunpack.c.l.b16 %v232
    %v1332 = vunpack.c.h.b16 %v232
    %v1333 = vunpack.c.l.b16 %v233
    %v1334 = vunpack.c.h.b16 %v233
    %v1335 = vunpack.c.l.b16 %v234
    %v1336 = vunpack.c.h.b16 %v234
    %v1337 = vunpack.c.l.b16 %v235
    %v1338 = vunpack.c.h.b16 %v235
    %v1339 = vunpack.c.l.b16 %v236
    %v1340 = vunpack.c.h.b16 %v236
    %v1341 = vunpack.c.l.b16 %v237
    %v1342 = vunpack.c.h.b16 %v237
    %v1343 = vunpack.c.l.b16 %v238
    %v1344 = vunpack.c.h.b16 %v238
    %v1345 = vunpack.c.l.b16 %v239
    %v1346 = vunpack.c.h.b16 %v239
    %v1347 = vunpack.c.l.b16 %v240
    %v1348 = vunpack.c.h.b16 %v240
    %v1349 = vunpack.c.l.b16 %v241
    %v1350 = vunpack.c.h.b16 %v241
    %v1351 = vunpack.c.l.b16 %v242
    %v1352 = vunpack.c.h.b16 %v242
    %v1353 = vunpack.c.l.b16 %v243
    %v1354 = vunpack.c.h.b16 %v243
    %v1355 = vunpack.c.l.b16 %v244
    %v1356 = vunpack.c.h.b16 %v244
    %v1357 = vunpack.c.l.b16 %v245
    %v1358 = vunpack.c.h.b16 %v245
    %v1359 = vunpack.c.l.b16 %v246
    %v1360 = vunpack.c.h.b16 %v246
    %v1361 = vunpack.c.l.b16 %v247
    %v1362 = vunpack.c.h.b16 %v247
    %v1363 = vunpack.c.l.b16 %v248
    %v1364 = vunpack.c.h.b16 %v248
    %v1365 = vunpack.c.l.b16 %v249
    %v1366 = vunpack.c.h.b16 %v249
    %v1367 = vunpack.c.l.b16 %v250
    %v1368 = vunpack.c.h.b16 %v250
    %v1369 = vunpack.c.l.b16 %v251
    %v1370 = vunpack.c.h.b16 %v251
    %v1371 = vunpack.c.l.b16 %v252
    %v1372 = vunpack.c.h.b16 %v252
    %v1373 = vunpack.c.l.b16 %v253
    %v1374 = vunpack.c.h.b16 %v253
    %v1375 = vunpack.c.l.b16 %v254
    %v1376 = vunpack.c.h.b16 %v254
    %v1377 = vunpack.c.l.b16 %v255
    %v1378 = vunpack.c.h.b16 %v255
    %v1379 = vunpack.c.l.b16 %v256
    %v1380 = vunpack.c.h.b16 %v256
    %v1381 = vunpack.c.l.b16 %v257
    %v1382 = vunpack.c.h.b16 %v257
    %v1383 = vunpack.c.l.b16 %v258
    %v1384 = vunpack.c.h.b16 %v258
    %v1385 = vunpack.c.l.b16 %v259
    %v1386 = vunpack.c.h.b16 %v259
    %v1387 = vunpack.c.l.b16 %v260
    %v1388 = vunpack.c.h.b16 %v260
    %v1389 = vunpack.c.l.b16 %v261
    %v1390 = vunpack.c.h.b16 %v261
    %v1391 = vunpack.c.l.b16 %v262
    %v1392 = vunpack.c.h.b16 %v262
    %v1393 = vunpack.c.l.b16 %v263
    %v1394 = vunpack.c.h.b16 %v263
    %v1395 = vunpack.c.l.b16 %v264
    %v1396 = vunpack.c.h.b16 %v264
    %v1397 = vunpack.c.l.b16 %v265
    %v1398 = vunpack.c.h.b16 %v265
    %v1399 = vunpack.c.l.b16 %v266
    %v1400 = vunpack.c.h.b16 %v266
    %v1401 = vunpack.c.l.b16 %v267
    %v1402 = vunpack.c.h.b16 %v267
    %v1403 = vunpack.c.l.b16 %v268
    %v1404 = vunpack.c.h.b16 %v268
    %v1405 = vunpack.c.l.b16 %v269
    %v1406 = vunpack.c.h.b16 %v269
    %v1407 = vunpack.c.l.b16 %v270
    %v1408 = vunpack.c.h.b16 %v270
    %v1409 = vunpack.c.l.b16 %v271
    %v1410 = vunpack.c.h.b16 %v271
    %v1411 = vunpack.c.l.b16 %v272
    %v1412 = vunpack.c.h.b16 %v272
    %v1413 = vunpack.c.l.b16 %v273
    %v1414 = vunpack.c.h.b16 %v273
    %v1415 = vunpack.c.l.b16 %v274
    %v1416 = vunpack.c.h.b16 %v274
    %v1417 = vunpack.c.l.b16 %v275
    %v1418 = vunpack.c.h.b16 %v275
    %v1419 = vunpack.c.l.b16 %v276
    %v1420 = vunpack.c.h.b16 %v276
    %v1421 = vunpack.c.l.b16 %v277
    %v1422 = vunpack.c.h.b16 %v277
    %v1423 = vunpack.c.l.b16 %v278
    %v1424 = vunpack.c.h.b16 %v278
    %v1425 = vunpack.c.l.b16 %v279
    %v1426 = vunpack.c.h.b16 %v279
    %v1427 = vunpack.c.l.b16 %v280
    %v1428 = vunpack.c.h.b16 %v280
    %v1429 = vunpack.c.l.b16 %v281
    %v1430 = vunpack.c.h.b16 %v281
    %v1431 = vunpack.c.l.b16 %v282
    %v1432 = vunpack.c.h.b16 %v282
    %v1433 = vunpack.c.l.b16 %v283
    %v1434 = vunpack.c.h.b16 %v283
    %v1435 = vunpack.c.l.b16 %v284
    %v1436 = vunpack.c.h.b16 %v284
    %v1437 = vunpack.c.l.b16 %v285
    %v1438 = vunpack.c.h.b16 %v285
    %v1439 = vunpack.c.l.b16 %v286
    %v1440 = vunpack.c.h.b16 %v286
    %v1441 = vunpack.c.l.b16 %v287
    %v1442 = vunpack.c.h.b16 %v287
    %v1443 = vunpack.c.l.b16 %v288
    %v1444 = vunpack.c.h.b16 %v288
    %v1445 = vunpack.c.l.b16 %v289
    %v1446 = vunpack.c.h.b16 %v289
    %v1447 = vunpack.c.l.b16 %v290
    %v1448 = vunpack.c.h.b16 %v290
    %v1449 = vunpack.c.l.b16 %v291
    %v1450 = vunpack.c.h.b16 %v291
    %v1451 = vunpack.c.l.b16 %v292
    %v1452 = vunpack.c.h.b16 %v292
    %v1453 = vunpack.c.l.b16 %v293
    %v1454 = vunpack.c.h.b16 %v293
    %v1455 = vunpack.c.l.b16 %v294
    %v1456 = vunpack.c.h.b16 %v294
    %v1457 = vunpack.c.l.b16 %v295
    %v1458 = vunpack.c.h.b16 %v295
    %v1459 = vunpack.c.l.b16 %v296
    %v1460 = vunpack.c.h.b16 %v296
    %v1461 = vunpack.c.l.b16 %v297
    %v1462 = vunpack.c.h.b16 %v297
    %v1463 = vunpack.c.l.b16 %v298
    %v1464 = vunpack.c.h.b16 %v298
    %v1465 = vunpack.c.l.b16 %v299
    %v1466 = vunpack.c.h.b16 %v299
    %v1467 = vunpack.c.l.b16 %v300
    %v1468 = vunpack.c.h.b16 %v300
    %v1469 = vunpack.c.l.b16 %v301
    %v1470 = vunpack.c.h.b16 %v301
    %v1471 = vunpack.c.l.b16 %v302
    %v1472 = vunpack.c.h.b16 %v302
    %v1473 = vunpack.c.l.b16 %v303
    %v1474 = vunpack.c.h.b16 %v303
    %v1475 = vunpack.c.l.b16 %v304
    %v1476 = vunpack.c.h.b16 %v304
    %v1477 = vunpack.c.l.b16 %v305
    %v1478 = vunpack.c.h.b16 %v305
    %v1479 = vunpack.c.l.b16 %v306
    %v1480 = vunpack.c.h.b16 %v306
    %v1481 = vunpack.c.l.b16 %v307
    %v1482 = vunpack.c.h.b16 %v307
    %v1483 = vunpack.c.l.b16 %v308
    %v1484 = vunpack.c.h.b16 %v308
    %v1485 = vunpack.c.l.b16 %v309
    %v1486 = vunpack.c.h.b16 %v309
    %v1487 = vunpack.c.l.b16 %v310
    %v1488 = vunpack.c.h.b16 %v310
    %v1489 = vunpack.c.l.b16 %v311
    %v1490 = vunpack.c.h.b16 %v311
    %v1491 = vunpack.c.l.b16 %v312
    %v1492 = vunpack.c.h.b16 %v312
    %v1493 = vunpack.c.l.b16 %v313
    %v1494 = vunpack.c.h.b16 %v313
    %v1495 = vunpack.c.l.b16 %v314
    %v1496 = vunpack.c.h.b16 %v314
    %v1497 = vunpack.c.l.b16 %v315
    %v1498 = vunpack.c.h.b16 %v315
    %v1499 = vunpack.c.l.b16 %v316
    %v1500 = vunpack.c.h.b16 %v316
    %v1501 = vunpack.c.l.b16 %v317
    %v1502 = vunpack.c.h.b16 %v317
    %v1503 = vunpack.c.l.b16 %v318
    %v1504 = vunpack.c.h.b16 %v318
    %v1505 = vunpack.c.l.b16 %v319
    %v1506 = vunpack.c.h.b16 %v319
    %v1507 = vunpack.c.l.b16 %v320
    %v1508 = vunpack.c.h.b16 %v320
    %v1509 = vunpack.c.l.b16 %v321
    %v1510 = vunpack.c.h.b16 %v321
    %v1511 = vunpack.c.l.b16 %v322
    %v1512 = vunpack.c.h.b16 %v322
    %v1513 = vunpack.c.l.b16 %v323
    %v1514 = vunpack.c.h.b16 %v323
    %v1515 = vunpack.c.l.b16 %v324
    %v1516 = vunpack.c.h.b16 %v324
    %v1517 = vunpack.c.l.b16 %v325
    %v1518 = vunpack.c.h.b16 %v325
    %v1519 = vunpack.c.l.b16 %v326
    %v1520 = vunpack.c.h.b16 %v326
    %v1521 = vunpack.c.l.b16 %v327
    %v1522 = vunpack.c.h.b16 %v327
    %v1523 = vunpack.c.l.b16 %v328
    %v1524 = vunpack.c.h.b16 %v328
    %v1525 = vunpack.c.l.b16 %v329
    %v1526 = vunpack.c.h.b16 %v329
    %v1527 = vunpack.c.l.b16 %v330
    %v1528 = vunpack.c.h.b16 %v330
    %v1529 = vunpack.c.l.b16 %v331
    %v1530 = vunpack.c.h.b16 %v331
    %v1531 = vunpack.c.l.b16 %v332
    %v1532 = vunpack.c.h.b16 %v332
    %v1533 = vunpack.c.l.b16 %v333
    %v1534 = vunpack.c.h.b16 %v333
    %v1535 = vunpack.c.l.b16 %v334
    %v1536 = vunpack.c.h.b16 %v334
    %v1537 = vunpack.c.l.b16 %v335
    %v1538 = vunpack.c.h.b16 %v335
    %v1539 = vunpack.c.l.b16 %v336
    %v1540 = vunpack.c.h.b16 %v336
    %v1541 = vunpack.c.l.b16 %v337
    %v1542 = vunpack.c.h.b16 %v337
    %v1543 = vunpack.c.l.b16 %v338
    %v1544 = vunpack.c.h.b16 %v338
    %v1545 = vunpack.c.l.b16 %v339
    %v1546 = vunpack.c.h.b16 %v339
    %v1547 = vunpack.c.l.b16 %v340
    %v1548 = vunpack.c.h.b16 %v340
    %v1549 = vunpack.c.l.b16 %v341
    %v1550 = vunpack.c.h.b16 %v341
    %v1551 = vunpack.c.l.b16 %v342
    %v1552 = vunpack.c.h.b16 %v342
    %v1553 = vunpack.c.l.b16 %v343
    %v1554 = vunpack.c.h.b16 %v343
    %v1555 = vunpack.c.l.b16 %v344
    %v1556 = vunpack.c.h.b16 %v344
    %v1557 = vunpack.c.l.b16 %v345
    %v1558 = vunpack.c.h.b16 %v345
    %v1559 = vunpack.c.l.b16 %v346
    %v1560 = vunpack.c.h.b16 %v346
    %v1561 = vunpack.c.l.b16 %v347
    %v1562 = vunpack.c.h.b16 %v347
    %v1563 = vunpack.c.l.b16 %v348
    %v1564 = vunpack.c.h.b16 %v348
    %v1565 = vunpack.c.l.b16 %v349
    %v1566 = vunpack.c.h.b16 %v349
    %v1567 = vunpack.c.l.b16 %v350
    %v1568 = vunpack.c.h.b16 %v350
    %v1569 = vunpack.c.l.b16 %v351
    %v1570 = vunpack.c.h.b16 %v351
    %v1571 = vunpack.c.l.b16 %v352
    %v1572 = vunpack.c.h.b16 %v352
    %v1573 = vunpack.c.l.b16 %v353
    %v1574 = vunpack.c.h.b16 %v353
    %v1575 = vunpack.c.l.b16 %v354
    %v1576 = vunpack.c.h.b16 %v354
    %v1577 = vunpack.c.l.b16 %v355
    %v1578 = vunpack.c.h.b16 %v355
    %v1579 = vunpack.c.l.b16 %v356
    %v1580 = vunpack.c.h.b16 %v356
    %v1581 = vunpack.c.l.b16 %v357
    %v1582 = vunpack.c.h.b16 %v357
    %v1583 = vunpack.c.l.b16 %v358
    %v1584 = vunpack.c.h.b16 %v358
    %v1585 = vunpack.c.l.b16 %v359
    %v1586 = vunpack.c.h.b16 %v359
    %v1587 = vunpack.c.l.b16 %v360
    %v1588 = vunpack.c.h.b16 %v360
    %v1589 = vunpack.c.l.b16 %v361
    %v1590 = vunpack.c.h.b16 %v361
    %v1591 = vunpack.c.l.b16 %v362
    %v1592 = vunpack.c.h.b16 %v362
    %v1593 = vunpack.c.l.b16 %v363
    %v1594 = vunpack.c.h.b16 %v363
    %v1595 = vunpack.c.l.b16 %v364
    %v1596 = vunpack.c.h.b16 %v364
    %v1597 = vunpack.c.l.b16 %v365
    %v1598 = vunpack.c.h.b16 %v365
    %v1599 = vunpack.c.l.b16 %v366
    %v1600 = vunpack.c.h.b16 %v366
    %v1601 = vunpack.c.l.b16 %v367
    %v1602 = vunpack.c.h.b16 %v367
    %v1603 = vunpack.c.l.b16 %v368
    %v1604 = vunpack.c.h.b16 %v368
    %v1605 = vunpack.c.l.b16 %v369
    %v1606 = vunpack.c.h.b16 %v369
    %v1607 = vunpack.c.l.b16 %v370
    %v1608 = vunpack.c.h.b16 %v370
    %v1609 = vunpack.c.l.b16 %v371
    %v1610 = vunpack.c.h.b16 %v371
    %v1611 = vunpack.c.l.b16 %v372
    %v1612 = vunpack.c.h.b16 %v372
    %v1613 = vunpack.c.l.b16 %v373
    %v1614 = vunpack.c.h.b16 %v373
    %v1615 = vunpack.c.l.b16 %v374
    %v1616 = vunpack.c.h.b16 %v374
    %v1617 = vunpack.c.l.b16 %v375
    %v1618 = vunpack.c.h.b16 %v375
    %v1619 = vunpack.c.l.b16 %v376
    %v1620 = vunpack.c.h.b16 %v376
    %v1621 = vunpack.c.l.b16 %v377
    %v1622 = vunpack.c.h.b16 %v377
    %v1623 = vunpack.c.l.b16 %v378
    %v1624 = vunpack.c.h.b16 %v378
    %v1625 = vunpack.c.l.b16 %v379
    %v1626 = vunpack.c.h.b16 %v379
    %v1627 = vunpack.c.l.b16 %v380
    %v1628 = vunpack.c.h.b16 %v380
    %v1629 = vunpack.c.l.b16 %v381
    %v1630 = vunpack.c.h.b16 %v381
    %v1631 = vunpack.c.l.b16 %v382
    %v1632 = vunpack.c.h.b16 %v382
    %v1633 = vunpack.c.l.b16 %v383
    %v1634 = vunpack.c.h.b16 %v383
    %v1635 = vunpack.c.l.b16 %v384
    %v1636 = vunpack.c.h.b16 %v384
    %v1637 = vunpack.c.l.b16 %v385
    %v1638 = vunpack.c.h.b16 %v385
    %v1639 = vunpack.c.l.b16 %v386
    %v1640 = vunpack.c.h.b16 %v386
    %v1641 = vunpack.c.l.b16 %v387
    %v1642 = vunpack.c.h.b16 %v387
    %v1643 = vunpack.c.l.b16 %v388
    %v1644 = vunpack.c.h.b16 %v388
    %v1645 = vunpack.c.l.b16 %v389
    %v1646 = vunpack.c.h.b16 %v389
    %v1647 = vunpack.c.l.b16 %v390
    %v1648 = vunpack.c.h.b16 %v390
    %v1649 = vunpack.c.l.b16 %v391
    %v1650 = vunpack.c.h.b16 %v391
    %v1651 = vunpack.c.l.b16 %v392
    %v1652 = vunpack.c.h.b16 %v392
    %v1653 = vunpack.c.l.b16 %v393
    %v1654 = vunpack.c.h.b16 %v393
    %v1655 = vunpack.c.l.b16 %v394
    %v1656 = vunpack.c.h.b16 %v394
    %v1657 = vunpack.c.l.b16 %v395
    %v1658 = vunpack.c.h.b16 %v395
    %v1659 = vunpack.c.l.b16 %v396
    %v1660 = vunpack.c.h.b16 %v396
    %v1661 = vunpack.c.l.b16 %v397
    %v1662 = vunpack.c.h.b16 %v397
    %v1663 = vunpack.c.l.b16 %v398
    %v1664 = vunpack.c.h.b16 %v398
    %v1665 = vunpack.c.l.b16 %v399
    %v1666 = vunpack.c.h.b16 %v399
    %v1667 = vunpack.c.l.b16 %v400
    %v1668 = vunpack.c.h.b16 %v400
    %v1669 = vunpack.c.l.b16 %v401
    %v1670 = vunpack.c.h.b16 %v401
    %v1671 = vunpack.c.l.b16 %v402
    %v1672 = vunpack.c.h.b16 %v402
    %v1673 = vunpack.c.l.b16 %v403
    %v1674 = vunpack.c.h.b16 %v403
    %v1675 = vunpack.c.l.b16 %v404
    %v1676 = vunpack.c.h.b16 %v404
    %v1677 = vunpack.c.l.b16 %v405
    %v1678 = vunpack.c.h.b16 %v405
    %v1679 = vunpack.c.l.b16 %v406
    %v1680 = vunpack.c.h.b16 %v406
    %v1681 = vunpack.c.l.b16 %v407
    %v1682 = vunpack.c.h.b16 %v407
    %v1683 = vunpack.c.l.b16 %v408
    %v1684 = vunpack.c.h.b16 %v408
    %v1685 = vunpack.c.l.b16 %v409
    %v1686 = vunpack.c.h.b16 %v409
    %v1687 = vunpack.c.l.b16 %v410
    %v1688 = vunpack.c.h.b16 %v410
    %v1689 = vunpack.c.l.b16 %v411
    %v1690 = vunpack.c.h.b16 %v411
    %v1691 = vunpack.c.l.b16 %v412
    %v1692 = vunpack.c.h.b16 %v412
    %v1693 = vunpack.c.l.b16 %v413
    %v1694 = vunpack.c.h.b16 %v413
    %v1695 = vunpack.c.l.b16 %v414
    %v1696 = vunpack.c.h.b16 %v414
    %v1697 = vunpack.c.l.b16 %v415
    %v1698 = vunpack.c.h.b16 %v415
    %v1699 = vunpack.c.l.b16 %v416
    %v1700 = vunpack.c.h.b16 %v416
    %v1701 = vunpack.c.l.b16 %v417
    %v1702 = vunpack.c.h.b16 %v417
    %v1703 = vunpack.c.l.b16 %v418
    %v1704 = vunpack.c.h.b16 %v418
    %v1705 = vunpack.c.l.b16 %v419
    %v1706 = vunpack.c.h.b16 %v419
    %v1707 = vunpack.c.l.b16 %v420
    %v1708 = vunpack.c.h.b16 %v420
    %v1709 = vunpack.c.l.b16 %v421
    %v1710 = vunpack.c.h.b16 %v421
    %v1711 = vunpack.c.l.b16 %v422
    %v1712 = vunpack.c.h.b16 %v422
    %v1713 = vunpack.c.l.b16 %v423
    %v1714 = vunpack.c.h.b16 %v423
    %v1715 = vunpack.c.l.b16 %v424
    %v1716 = vunpack.c.h.b16 %v424
    %v1717 = vunpack.c.l.b16 %v425
    %v1718 = vunpack.c.h.b16 %v425
    %v1719 = vunpack.c.l.b16 %v426
    %v1720 = vunpack.c.h.b16 %v426
    %v1721 = vunpack.c.l.b16 %v427
    %v1722 = vunpack.c.h.b16 %v427
    %v1723 = vunpack.c.l.b16 %v428
    %v1724 = vunpack.c.h.b16 %v428
    %v1725 = vunpack.c.l.b16 %v429
    %v1726 = vunpack.c.h.b16 %v429
    %v1727 = vunpack.c.l.b16 %v430
    %v1728 = vunpack.c.h.b16 %v430
    %v1729 = vunpack.c.l.b16 %v431
    %v1730 = vunpack.c.h.b16 %v431
    %v1731 = vunpack.c.l.b16 %v432
    %v1732 = vunpack.c.h.b16 %v432
    %v1733 = vunpack.c.l.b16 %v433
    %v1734 = vunpack.c.h.b16 %v433
    %v1735 = vunpack.c.l.b16 %v434
    %v1736 = vunpack.c.h.b16 %v434
    %v1737 = vunpack.c.l.b16 %v435
    %v1738 = vunpack.c.h.b16 %v435
    %v1739 = vunpack.c.l.b16 %v436
    %v1740 = vunpack.c.h.b16 %v436
    %v1741 = vunpack.c.l.b16 %v437
    %v1742 = vunpack.c.h.b16 %v437
    %v1743 = vunpack.c.l.b16 %v438
    %v1744 = vunpack.c.h.b16 %v438
    %v1745 = vunpack.c.l.b16 %v439
    %v1746 = vunpack.c.h.b16 %v439
    %v1747 = vunpack.c.l.b16 %v440
    %v1748 = vunpack.c.h.b16 %v440
    %v1749 = vunpack.c.l.b16 %v441
    %v1750 = vunpack.c.h.b16 %v441
    %v1751 = vunpack.c.l.b16 %v442
    %v1752 = vunpack.c.h.b16 %v442
    %v1753 = vunpack.c.l.b16 %v443
    %v1754 = vunpack.c.h.b16 %v443
    %v1755 = vunpack.c.l.b16 %v444
    %v1756 = vunpack.c.h.b16 %v444
    %v1757 = vunpack.c.l.b16 %v445
    %v1758 = vunpack.c.h.b16 %v445
    %v1759 = vunpack.c.l.b16 %v446
    %v1760 = vunpack.c.h.b16 %v446
    %v1761 = vunpack.c.l.b16 %v447
    %v1762 = vunpack.c.h.b16 %v447
    %v1763 = vunpack.c.l.b16 %v448
    %v1764 = vunpack.c.h.b16 %v448
    %v1765 = vunpack.c.l.b16 %v449
    %v1766 = vunpack.c.h.b16 %v449
    %v1767 = vunpack.c.l.b16 %v450
    %v1768 = vunpack.c.h.b16 %v450
    %v1769 = vunpack.c.l.b16 %v451
    %v1770 = vunpack.c.h.b16 %v451
    %v1771 = vunpack.c.l.b16 %v452
    %v1772 = vunpack.c.h.b16 %v452
    %v1773 = vunpack.c.l.b16 %v453
    %v1774 = vunpack.c.h.b16 %v453
    %v1775 = vunpack.c.l.b16 %v454
    %v1776 = vunpack.c.h.b16 %v454
    %v1777 = vunpack.c.l.b16 %v455
    %v1778 = vunpack.c.h.b16 %v455
    %v1779 = vunpack.c.l.b16 %v456
    %v1780 = vunpack.c.h.b16 %v456
    %v1781 = vunpack.c.l.b16 %v457
    %v1782 = vunpack.c.h.b16 %v457
    %v1783 = vunpack.c.l.b16 %v458
    %v1784 = vunpack.c.h.b16 %v458
    %v1785 = vunpack.c.l.b16 %v459
    %v1786 = vunpack.c.h.b16 %v459
    %v1787 = vunpack.c.l.b16 %v460
    %v1788 = vunpack.c.h.b16 %v460
    %v1789 = vunpack.c.l.b16 %v461
    %v1790 = vunpack.c.h.b16 %v461
    %v1791 = vunpack.c.l.b16 %v462
    %v1792 = vunpack.c.h.b16 %v462
    %v1793 = vunpack.c.l.b16 %v463
    %v1794 = vunpack.c.h.b16 %v463
    %v1795 = vunpack.c.l.b16 %v464
    %v1796 = vunpack.c.h.b16 %v464
    %v1797 = vunpack.c.l.b16 %v465
    %v1798 = vunpack.c.h.b16 %v465
    %v1799 = vunpack.c.l.b16 %v466
    %v1800 = vunpack.c.h.b16 %v466
    %v1801 = vunpack.c.l.b16 %v467
    %v1802 = vunpack.c.h.b16 %v467
    %v1803 = vunpack.c.l.b16 %v468
    %v1804 = vunpack.c.h.b16 %v468
    %v1805 = vunpack.c.l.b16 %v469
    %v1806 = vunpack.c.h.b16 %v469
    %v1807 = vunpack.c.l.b16 %v470
    %v1808 = vunpack.c.h.b16 %v470
    %v1809 = vunpack.c.l.b16 %v471
    %v1810 = vunpack.c.h.b16 %v471
    %v1811 = vunpack.c.l.b16 %v472
    %v1812 = vunpack.c.h.b16 %v472
    %v1813 = vunpack.c.l.b16 %v473
    %v1814 = vunpack.c.h.b16 %v473
    %v1815 = vunpack.c.l.b16 %v474
    %v1816 = vunpack.c.h.b16 %v474
    %v1817 = vunpack.c.l.b16 %v475
    %v1818 = vunpack.c.h.b16 %v475
    %v1819 = vunpack.c.l.b16 %v476
    %v1820 = vunpack.c.h.b16 %v476
    %v1821 = vunpack.c.l.b16 %v477
    %v1822 = vunpack.c.h.b16 %v477
    %v1823 = vunpack.c.l.b16 %v478
    %v1824 = vunpack.c.h.b16 %v478
    %v1825 = vunpack.c.l.b16 %v479
    %v1826 = vunpack.c.h.b16 %v479
    %v1827 = vunpack.c.l.b16 %v480
    %v1828 = vunpack.c.h.b16 %v480
    %v1829 = vunpack.c.l.b16 %v481
    %v1830 = vunpack.c.h.b16 %v481
    %v1831 = vunpack.c.l.b16 %v482
    %v1832 = vunpack.c.h.b16 %v482
    %v1833 = vunpack.c.l.b16 %v483
    %v1834 = vunpack.c.h.b16 %v483
    %v1835 = vunpack.c.l.b16 %v484
    %v1836 = vunpack.c.h.b16 %v484
    %v1837 = vunpack.c.l.b16 %v485
    %v1838 = vunpack.c.h.b16 %v485
    %v1839 = vunpack.c.l.b16 %v486
    %v1840 = vunpack.c.h.b16 %v486
    %v1841 = vunpack.c.l.b16 %v487
    %v1842 = vunpack.c.h.b16 %v487
    %v1843 = vunpack.c.l.b16 %v488
    %v1844 = vunpack.c.h.b16 %v488
    %v1845 = vunpack.c.l.b16 %v489
    %v1846 = vunpack.c.h.b16 %v489
    %v1847 = vunpack.c.l.b16 %v490
    %v1848 = vunpack.c.h.b16 %v490
    %v1849 = vunpack.c.l.b16 %v491
    %v1850 = vunpack.c.h.b16 %v491
    %v1851 = vunpack.c.l.b16 %v492
    %v1852 = vunpack.c.h.b16 %v492
    %v1853 = vunpack.c.l.b16 %v493
    %v1854 = vunpack.c.h.b16 %v493
    %v1855 = vunpack.c.l.b16 %v494
    %v1856 = vunpack.c.h.b16 %v494
    %v1857 = vunpack.c.l.b16 %v495
    %v1858 = vunpack.c.h.b16 %v495
    %v1859 = vunpack.c.l.b16 %v496
    %v1860 = vunpack.c.h.b16 %v496
    %v1861 = vunpack.c.l.b16 %v497
    %v1862 = vunpack.c.h.b16 %v497
    %v1863 = vunpack.c.l.b16 %v498
    %v1864 = vunpack.c.h.b16 %v498
    %v1865 = vunpack.c.l.b16 %v499
    %v1866 = vunpack.c.h.b16 %v499
    %v1867 = vunpack.c.l.b16 %v500
    %v1868 = vunpack.c.h.b16 %v500
    %v1869 = vunpack.c.l.b16 %v501
    %v1870 = vunpack.c.h.b16 %v501
    %v1871 = vunpack.c.l.b16 %v502
    %v1872 = vunpack.c.h.b16 %v502
    %v1873 = vunpack.c.l.b16 %v503
    %v1874 = vunpack.c.h.b16 %v503
    %v1875 = vunpack.c.l.b16 %v504
    %v1876 = vunpack.c.h.b16 %v504
    %v1877 = vunpack.c.l.b16 %v505
    %v1878 = vunpack.c.h.b16 %v505
    %v1879 = vunpack.c.l.b16 %v506
    %v1880 = vunpack.c.h.b16 %v506
    %v1881 = vunpack.c.l.b16 %v507
    %v1882 = vunpack.c.h.b16 %v507
    %v1883 = vunpack.c.l.b16 %v508
    %v1884 = vunpack.c.h.b16 %v508
    %v1885 = vunpack.c.l.b16 %v509
    %v1886 = vunpack.c.h.b16 %v509
    %v1887 = vunpack.c.l.b16 %v510
    %v1888 = vunpack.c.h.b16 %v510
    %v1889 = vunpack.c.l.b16 %v511
    %v1890 = vunpack.c.h.b16 %v511
    %v1891 = vunpack.c.l.b16 %v512
    %v1892 = vunpack.c.h.b16 %v512
    %v1893 = vunpack.c.l.b16 %v513
    %v1894 = vunpack.c.h.b16 %v513
    %v1895 = vunpack.c.l.b16 %v514
    %v1896 = vunpack.c.h.b16 %v514
    %v1897 = vunpack.c.l.b16 %v515
    %v1898 = vunpack.c.h.b16 %v515
    %v1899 = vunpack.c.l.b16 %v516
    %v1900 = vunpack.c.h.b16 %v516
    %v1901 = vunpack.c.l.b16 %v517
    %v1902 = vunpack.c.h.b16 %v517
    %v1903 = vunpack.c.l.b16 %v518
    %v1904 = vunpack.c.h.b16 %v518
    %v1905 = vunpack.c.l.b16 %v519
    %v1906 = vunpack.c.h.b16 %v519
    %v1907 = vunpack.c.l.b16 %v520
    %v1908 = vunpack.c.h.b16 %v520
    %v1909 = vunpack.c.l.b16 %v521
    %v1910 = vunpack.c.h.b16 %v521
    %v1911 = vunpack.c.l.b16 %v522
    %v1912 = vunpack.c.h.b16 %v522
    %v1913 = vunpack.c.l.b16 %v523
    %v1914 = vunpack.c.h.b16 %v523
    %v1915 = vunpack.c.l.b16 %v524
    %v1916 = vunpack.c.h.b16 %v524
    %v1917 = vunpack.c.l.b16 %v525
    %v1918 = vunpack.c.h.b16 %v525
    %v1919 = vunpack.c.l.b16 %v526
    %v1920 = vunpack.c.h.b16 %v526
    %v1921 = vunpack.c.l.b16 %v527
    %v1922 = vunpack.c.h.b16 %v527
    %v1923 = vunpack.c.l.b16 %v528
    %v1924 = vunpack.c.h.b16 %v528
    %v1925 = vunpack.c.l.b16 %v529
    %v1926 = vunpack.c.h.b16 %v529
    %v1927 = vunpack.c.l.b16 %v530
    %v1928 = vunpack.c.h.b16 %v530
    %v1929 = vunpack.c.l.b16 %v531
    %v1930 = vunpack.c.h.b16 %v531
    %v1931 = vunpack.c.l.b16 %v532
    %v1932 = vunpack.c.h.b16 %v532
    %v1933 = vunpack.c.l.b16 %v533
    %v1934 = vunpack.c.h.b16 %v533
    %v1935 = vunpack.c.l.b16 %v534
    %v1936 = vunpack.c.h.b16 %v534
    %v1937 = vunpack.c.l.b16 %v535
    %v1938 = vunpack.c.h.b16 %v535
    %v1939 = vunpack.c.l.b16 %v536
    %v1940 = vunpack.c.h.b16 %v536
    %v1941 = vunpack.c.l.b16 %v537
    %v1942 = vunpack.c.h.b16 %v537
    %v1943 = vunpack.c.l.b16 %v538
    %v1944 = vunpack.c.h.b16 %v538
    %v1945 = vunpack.c.l.b16 %v539
    %v1946 = vunpack.c.h.b16 %v539
    %v1947 = vunpack.c.l.b16 %v540
    %v1948 = vunpack.c.h.b16 %v540
    %v1949 = vunpack.c.l.b16 %v541
    %v1950 = vunpack.c.h.b16 %v541
    %v1951 = vunpack.c.l.b16 %v542
    %v1952 = vunpack.c.h.b16 %v542
    %v1953 = vunpack.c.l.b16 %v543
    %v1954 = vunpack.c.h.b16 %v543
    %v1955 = vunpack.c.l.b16 %v544
    %v1956 = vunpack.c.h.b16 %v544
    %v1957 = vunpack.c.l.b16 %v545
    %v1958 = vunpack.c.h.b16 %v545
    %v1959 = vunpack.c.l.b16 %v546
    %v1960 = vunpack.c.h.b16 %v546
    %v1961 = vunpack.c.l.b16 %v547
    %v1962 = vunpack.c.h.b16 %v547
    %v1963 = vunpack.c.l.b16 %v548
    %v1964 = vunpack.c.h.b16 %v548
    %v1965 = vunpack.c.l.b16 %v549
    %v1966 = vunpack.c.h.b16 %v549
    %v1967 = vunpack.c.l.b16 %v550
    %v1968 = vunpack.c.h.b16 %v550
    %v1969 = vunpack.c.l.b16 %v551
    %v1970 = vunpack.c.h.b16 %v551
    %v1971 = vunpack.c.l.b16 %v552
    %v1972 = vunpack.c.h.b16 %v552
    %v1973 = vunpack.c.l.b16 %v553
    %v1974 = vunpack.c.h.b16 %v553
    %v1975 = vunpack.c.l.b16 %v554
    %v1976 = vunpack.c.h.b16 %v554
    %v1977 = vunpack.c.l.b16 %v555
    %v1978 = vunpack.c.h.b16 %v555
    %v1979 = vunpack.c.l.b16 %v556
    %v1980 = vunpack.c.h.b16 %v556
    %v1981 = vunpack.c.l.b16 %v557
    %v1982 = vunpack.c.h.b16 %v557
    %v1983 = vunpack.c.l.b16 %v558
    %v1984 = vunpack.c.h.b16 %v558
    %v1985 = vunpack.c.l.b16 %v559
    %v1986 = vunpack.c.h.b16 %v559
    %v1987 = vunpack.c.l.b16 %v560
    %v1988 = vunpack.c.h.b16 %v560
    %v1989 = vunpack.c.l.b16 %v561
    %v1990 = vunpack.c.h.b16 %v561
    %v1991 = vunpack.c.l.b16 %v562
    %v1992 = vunpack.c.h.b16 %v562
    %v1993 = vunpack.c.l.b16 %v563
    %v1994 = vunpack.c.h.b16 %v563
    %v1995 = vunpack.c.l.b16 %v564
    %v1996 = vunpack.c.h.b16 %v564
    %v1997 = vunpack.c.l.b16 %v565
    %v1998 = vunpack.c.h.b16 %v565
    %v1999 = vunpack.c.l.b16 %v566
    %v2000 = vunpack.c.h.b16 %v566
    %v2001 = vunpack.c.l.b16 %v567
    %v2002 = vunpack.c.h.b16 %v567
    %v2003 = vunpack.c.l.b16 %v568
    %v2004 = vunpack.c.h.b16 %v568
    %v2005 = vunpack.c.l.b16 %v569
    %v2006 = vunpack.c.h.b16 %v569
    %v2007 = vunpack.c.l.b16 %v570
    %v2008 = vunpack.c.h.b16 %v570
    %v2009 = vunpack.c.l.b16 %v571
    %v2010 = vunpack.c.h.b16 %v571
    %v2011 = vunpack.c.l.b16 %v572
    %v2012 = vunpack.c.h.b16 %v572
    %v2013 = vunpack.c.l.b16 %v573
    %v2014 = vunpack.c.h.b16 %v573
    %v2015 = vunpack.c.l.b16 %v574
    %v2016 = vunpack.c.h.b16 %v574
    %v2017 = vunpack.c.l.b16 %v575
    %v2018 = vunpack.c.h.b16 %v575
    %v2019 = vunpack.c.l.b16 %v576
    %v2020 = vunpack.c.h.b16 %v576
    %v2021 = vunpack.c.l.b16 %v577
    %v2022 = vunpack.c.h.b16 %v577
    %v2023 = vunpack.c.l.b16 %v578
    %v2024 = vunpack.c.h.b16 %v578
    %v2025 = vunpack.c.l.b16 %v579
    %v2026 = vunpack.c.h.b16 %v579
    %v2027 = vunpack.c.l.b16 %v580
    %v2028 = vunpack.c.h.b16 %v580
    %v2029 = vunpack.c.l.b16 %v581
    %v2030 = vunpack.c.h.b16 %v581
    %v2031 = vunpack.c.l.b16 %v582
    %v2032 = vunpack.c.h.b16 %v582
    %v2033 = vunpack.c.l.b16 %v583
    %v2034 = vunpack.c.h.b16 %v583
    %v2035 = vunpack.c.l.b16 %v584
    %v2036 = vunpack.c.h.b16 %v584
    %v2037 = vunpack.c.l.b16 %v585
    %v2038 = vunpack.c.h.b16 %v585
    %v2039 = vunpack.c.l.b16 %v586
    %v2040 = vunpack.c.h.b16 %v586
    %v2041 = vunpack.c.l.b16 %v587
    %v2042 = vunpack.c.h.b16 %v587
    %v2043 = vunpack.c.l.b16 %v588
    %v2044 = vunpack.c.h.b16 %v588
    %v2045 = vunpack.c.l.b16 %v589
    %v2046 = vunpack.c.h.b16 %v589
    %v2047 = vunpack.c.l.b16 %v590
    %v2048 = vunpack.c.h.b16 %v590
    %v2049 = vunpack.c.l.b16 %v591
    %v2050 = vunpack.c.h.b16 %v591
    %v2051 = vunpack.c.l.b16 %v592
    %v2052 = vunpack.c.h.b16 %v592
    %v2053 = vunpack.c.l.b16 %v593
    %v2054 = vunpack.c.h.b16 %v593
    %v2055 = vunpack.c.l.b16 %v594
    %v2056 = vunpack.c.h.b16 %v594
    %v2057 = vunpack.c.l.b16 %v595
    %v2058 = vunpack.c.h.b16 %v595
    %v2059 = vunpack.c.l.b16 %v596
    %v2060 = vunpack.c.h.b16 %v596
    %v2061 = vunpack.c.l.b16 %v597
    %v2062 = vunpack.c.h.b16 %v597
    %v2063 = vunpack.c.l.b16 %v598
    %v2064 = vunpack.c.h.b16 %v598
    %v2065 = vunpack.c.l.b16 %v599
    %v2066 = vunpack.c.h.b16 %v599
    %v2067 = vunpack.c.l.b16 %v600
    %v2068 = vunpack.c.h.b16 %v600
    %v2069 = vunpack.c.l.b16 %v601
    %v2070 = vunpack.c.h.b16 %v601
    %v2071 = vunpack.c.l.b16 %v602
    %v2072 = vunpack.c.h.b16 %v602
    %v2073 = vunpack.c.l.b16 %v603
    %v2074 = vunpack.c.h.b16 %v603
    %v2075 = vunpack.c.l.b16 %v604
    %v2076 = vunpack.c.h.b16 %v604
    %v2077 = vunpack.c.l.b16 %v605
    %v2078 = vunpack.c.h.b16 %v605
    %v2079 = vunpack.c.l.b16 %v606
    %v2080 = vunpack.c.h.b16 %v606
    %v2081 = vunpack.c.l.b16 %v607
    %v2082 = vunpack.c.h.b16 %v607
    %v2083 = vunpack.c.l.b16 %v608
    %v2084 = vunpack.c.h.b16 %v608
    %v2085 = vunpack.c.l.b16 %v609
    %v2086 = vunpack.c.h.b16 %v609
    %v2087 = vunpack.c.l.b16 %v610
    %v2088 = vunpack.c.h.b16 %v610
    %v2089 = vunpack.c.l.b16 %v611
    %v2090 = vunpack.c.h.b16 %v611
    %v2091 = vunpack.c.l.b16 %v612
    %v2092 = vunpack.c.h.b16 %v612
    %v2093 = vunpack.c.l.b16 %v613
    %v2094 = vunpack.c.h.b16 %v613
    %v2095 = vunpack.c.l.b16 %v614
    %v2096 = vunpack.c.h.b16 %v614
    %v2097 = vunpack.c.l.b16 %v615
    %v2098 = vunpack.c.h.b16 %v615
    %v2099 = vunpack.c.l.b16 %v616
    %v2100 = vunpack.c.h.b16 %v616
    %v2101 = vunpack.c.l.b16 %v617
    %v2102 = vunpack.c.h.b16 %v617
    %v2103 = vunpack.c.l.b16 %v618
    %v2104 = vunpack.c.h.b16 %v618
    %v2105 = vunpack.c.l.b16 %v619
    %v2106 = vunpack.c.h.b16 %v619
    %v2107 = vunpack.c.l.b16 %v620
    %v2108 = vunpack.c.h.b16 %v620
    %v2109 = vunpack.c.l.b16 %v621
    %v2110 = vunpack.c.h.b16 %v621
    %v2111 = vunpack.c.l.b16 %v622
    %v2112 = vunpack.c.h.b16 %v622
    %v2113 = vunpack.c.l.b16 %v623
    %v2114 = vunpack.c.h.b16 %v623
    %v2115 = vunpack.c.l.b16 %v624
    %v2116 = vunpack.c.h.b16 %v624
    %v2117 = vunpack.c.l.b16 %v625
    %v2118 = vunpack.c.h.b16 %v625
    %v2119 = vunpack.c.l.b16 %v626
    %v2120 = vunpack.c.h.b16 %v626
    %v2121 = vunpack.c.l.b16 %v627
    %v2122 = vunpack.c.h.b16 %v627
    %v2123 = vunpack.c.l.b16 %v628
    %v2124 = vunpack.c.h.b16 %v628
    %v2125 = vunpack.c.l.b16 %v629
    %v2126 = vunpack.c.h.b16 %v629
    %v2127 = vunpack.c.l.b16 %v630
    %v2128 = vunpack.c.h.b16 %v630
    %v2129 = vunpack.c.l.b16 %v631
    %v2130 = vunpack.c.h.b16 %v631
    %v2131 = vunpack.c.l.b16 %v632
    %v2132 = vunpack.c.h.b16 %v632
    %v2133 = vunpack.c.l.b16 %v633
    %v2134 = vunpack.c.h.b16 %v633
    %v2135 = vunpack.c.l.b16 %v634
    %v2136 = vunpack.c.h.b16 %v634
    %v2137 = vunpack.c.l.b16 %v635
    %v2138 = vunpack.c.h.b16 %v635
    %v2139 = vunpack.c.l.b16 %v636
    %v2140 = vunpack.c.h.b16 %v636
    %v2141 = vunpack.c.l.b16 %v637
    %v2142 = vunpack.c.h.b16 %v637
    %v2143 = vunpack.c.l.b16 %v638
    %v2144 = vunpack.c.h.b16 %v638
    %v2145 = vunpack.c.l.b16 %v639
    %v2146 = vunpack.c.h.b16 %v639
    %v2147 = vunpack.c.l.b16 %v640
    %v2148 = vunpack.c.h.b16 %v640
    %v2149 = vunpack.c.l.b16 %v641
    %v2150 = vunpack.c.h.b16 %v641
    %v2151 = vunpack.c.l.b16 %v642
    %v2152 = vunpack.c.h.b16 %v642
    %v2153 = vunpack.c.l.b16 %v643
    %v2154 = vunpack.c.h.b16 %v643
    %v2155 = vunpack.c.l.b16 %v644
    %v2156 = vunpack.c.h.b16 %v644
    %v2157 = vunpack.c.l.b16 %v645
    %v2158 = vunpack.c.h.b16 %v645
    %v2159 = vunpack.c.l.b16 %v646
    %v2160 = vunpack.c.h.b16 %v646
    %v2161 = vunpack.c.l.b16 %v647
    %v2162 = vunpack.c.h.b16 %v647
    %v2163 = vunpack.c.l.b16 %v648
    %v2164 = vunpack.c.h.b16 %v648
    %v2165 = vunpack.c.l.b16 %v649
    %v2166 = vunpack.c.h.b16 %v649
    %v2167 = vunpack.c.l.b16 %v650
    %v2168 = vunpack.c.h.b16 %v650
    %v2169 = vunpack.c.l.b16 %v651
    %v2170 = vunpack.c.h.b16 %v651
    %v2171 = vunpack.c.l.b16 %v652
    %v2172 = vunpack.c.h.b16 %v652
    %v2173 = vunpack.c.l.b16 %v653
    %v2174 = vunpack.c.h.b16 %v653
    %v2175 = vunpack.c.l.b16 %v654
    %v2176 = vunpack.c.h.b16 %v654
    %v2177 = vunpack.c.l.b16 %v655
    %v2178 = vunpack.c.h.b16 %v655
    %v2179 = vunpack.c.l.b16 %v656
    %v2180 = vunpack.c.h.b16 %v656
    %v2181 = vunpack.c.l.b16 %v657
    %v2182 = vunpack.c.h.b16 %v657
    %v2183 = vunpack.c.l.b16 %v658
    %v2184 = vunpack.c.h.b16 %v658
    %v2185 = vunpack.c.l.b16 %v659
    %v2186 = vunpack.c.h.b16 %v659
    %v2187 = vunpack.c.l.b16 %v660
    %v2188 = vunpack.c.h.b16 %v660
    %v2189 = vunpack.c.l.b16 %v661
    %v2190 = vunpack.c.h.b16 %v661
    %v2191 = vunpack.c.l.b16 %v662
    %v2192 = vunpack.c.h.b16 %v662
    %v2193 = vunpack.c.l.b16 %v663
    %v2194 = vunpack.c.h.b16 %v663
    %v2195 = vunpack.c.l.b16 %v664
    %v2196 = vunpack.c.h.b16 %v664
    %v2197 = vunpack.c.l.b16 %v665
    %v2198 = vunpack.c.h.b16 %v665
    %v2199 = vunpack.c.l.b16 %v666
    %v2200 = vunpack.c.h.b16 %v666
    %v2201 = vunpack.c.l.b16 %v667
    %v2202 = vunpack.c.h.b16 %v667
    %v2203 = vunpack.c.l.b16 %v668
    %v2204 = vunpack.c.h.b16 %v668
    %v2205 = vunpack.c.l.b16 %v669
    %v2206 = vunpack.c.h.b16 %v669
    %v2207 = vunpack.c.l.b16 %v670
    %v2208 = vunpack.c.h.b16 %v670
    %v2209 = vunpack.c.l.b16 %v671
    %v2210 = vunpack.c.h.b16 %v671
    %v2211 = vunpack.c.l.b16 %v672
    %v2212 = vunpack.c.h.b16 %v672
    %v2213 = vunpack.c.l.b16 %v673
    %v2214 = vunpack.c.h.b16 %v673
    %v2215 = vunpack.c.l.b16 %v674
    %v2216 = vunpack.c.h.b16 %v674
    %v2217 = vunpack.c.l.b16 %v675
    %v2218 = vunpack.c.h.b16 %v675
    %v2219 = vunpack.c.l.b16 %v676
    %v2220 = vunpack.c.h.b16 %v676
    %v2221 = vunpack.c.l.b16 %v677
    %v2222 = vunpack.c.h.b16 %v677
    %v2223 = vunpack.c.l.b16 %v678
    %v2224 = vunpack.c.h.b16 %v678
    %v2225 = vunpack.c.l.b16 %v679
    %v2226 = vunpack.c.h.b16 %v679
    %v2227 = vunpack.c.l.b16 %v680
    %v2228 = vunpack.c.h.b16 %v680
    %v2229 = vunpack.c.l.b16 %v681
    %v2230 = vunpack.c.h.b16 %v681
    %v2231 = vunpack.c.l.b16 %v682
    %v2232 = vunpack.c.h.b16 %v682
    %v2233 = vunpack.c.l.b16 %v683
    %v2234 = vunpack.c.h.b16 %v683
    %v2235 = vunpack.c.l.b16 %v684
    %v2236 = vunpack.c.h.b16 %v684
    %v2237 = vunpack.c.l.b16 %v685
    %v2238 = vunpack.c.h.b16 %v685
    %v2239 = vunpack.c.l.b16 %v686
    %v2240 = vunpack.c.h.b16 %v686
    %v2241 = vunpack.c.l.b16 %v687
    %v2242 = vunpack.c.h.b16 %v687
    %v2243 = vunpack.c.l.b16 %v688
    %v2244 = vunpack.c.h.b16 %v688
    %v2245 = vunpack.c.l.b16 %v689
    %v2246 = vunpack.c.h.b16 %v689
    %v2247 = vunpack.c.l.b16 %v690
    %v2248 = vunpack.c.h.b16 %v690
    %v2249 = vpack.c.b16 %v1229, %v1225
    %v2250 = vpack.c.b16 %v1230, %v1226
    %v2251 = vpack.c.b16 %v1231, %v1227
    %v2252 = vpack.c.b16 %v1232, %v1228
    %v2253 = vpack.c.b16 %v1237, %v1233
    %v2254 = vpack.c.b16 %v1238, %v1234
    %v2255 = vpack.c.b16 %v1239, %v1235
    %v2256 = vpack.c.b16 %v1240, %v1236
    %v2257 = vpack.c.b16 %v1245, %v1241
    %v2258 = vpack.c.b16 %v1246, %v1242
    %v2259 = vpack.c.b16 %v1247, %v1243
    %v2260 = vpack.c.b16 %v1248, %v1244
    %v2261 = vpack.c.b16 %v1253, %v1249
    %v2262 = vpack.c.b16 %v1254, %v1250
    %v2263 = vpack.c.b16 %v1255, %v1251
    %v2264 = vpack.c.b16 %v1256, %v1252
    %v2265 = vpack.c.b16 %v1261, %v1257
    %v2266 = vpack.c.b16 %v1262, %v1258
    %v2267 = vpack.c.b16 %v1263, %v1259
    %v2268 = vpack.c.b16 %v1264, %v1260
    %v2269 = vpack.c.b16 %v1269, %v1265
    %v2270 = vpack.c.b16 %v1270, %v1266
    %v2271 = vpack.c.b16 %v1271, %v1267
    %v2272 = vpack.c.b16 %v1272, %v1268
    %v2273 = vpack.c.b16 %v1277, %v1273
    %v2274 = vpack.c.b16 %v1278, %v1274
    %v2275 = vpack.c.b16 %v1279, %v1275
    %v2276 = vpack.c.b16 %v1280, %v1276
    %v2277 = vpack.c.b16 %v1285, %v1281
    %v2278 = vpack.c.b16 %v1286, %v1282
    %v2279 = vpack.c.b16 %v1287, %v1283
    %v2280 = vpack.c.b16 %v1288, %v1284
    %v2281 = vpack.c.b16 %v1293, %v1289
    %v2282 = vpack.c.b16 %v1294, %v1290
    %v2283 = vpack.c.b16 %v1295, %v1291
    %v2284 = vpack.c.b16 %v1296, %v1292
    %v2285 = vpack.c.b16 %v1301, %v1297
    %v2286 = vpack.c.b16 %v1302, %v1298
    %v2287 = vpack.c.b16 %v1303, %v1299
    %v2288 = vpack.c.b16 %v1304, %v1300
    %v2289 = vpack.c.b16 %v1309, %v1305
    %v2290 = vpack.c.b16 %v1310, %v1306
    %v2291 = vpack.c.b16 %v1311, %v1307
    %v2292 = vpack.c.b16 %v1312, %v1308
    %v2293 = vpack.c.b16 %v1317, %v1313
    %v2294 = vpack.c.b16 %v1318, %v1314
    %v2295 = vpack.c.b16 %v1319, %v1315
    %v2296 = vpack.c.b16 %v1320, %v1316
    %v2297 = vpack.c.b16 %v1325, %v1321
    %v2298 = vpack.c.b16 %v1326, %v1322
    %v2299 = vpack.c.b16 %v1327, %v1323
    %v2300 = vpack.c.b16 %v1328, %v1324
    %v2301 = vpack.c.b16 %v1333, %v1329
    %v2302 = vpack.c.b16 %v1334, %v1330
    %v2303 = vpack.c.b16 %v1335, %v1331
    %v2304 = vpack.c.b16 %v1336, %v1332
    %v2305 = vpack.c.b16 %v1341, %v1337
    %v2306 = vpack.c.b16 %v1342, %v1338
    %v2307 = vpack.c.b16 %v1343, %v1339
    %v2308 = vpack.c.b16 %v1344, %v1340
    %v2309 = vpack.c.b16 %v1349, %v1345
    %v2310 = vpack.c.b16 %v1350, %v1346
    %v2311 = vpack.c.b16 %v1351, %v1347
    %v2312 = vpack.c.b16 %v1352, %v1348
    %v2313 = vpack.c.b16 %v1357, %v1353
    %v2314 = vpack.c.b16 %v1358, %v1354
    %v2315 = vpack.c.b16 %v1359, %v1355
    %v2316 = vpack.c.b16 %v1360, %v1356
    %v2317 = vpack.c.b16 %v1365, %v1361
    %v2318 = vpack.c.b16 %v1366, %v1362
    %v2319 = vpack.c.b16 %v1367, %v1363
    %v2320 = vpack.c.b16 %v1368, %v1364
    %v2321 = vpack.c.b16 %v1373, %v1369
    %v2322 = vpack.c.b16 %v1374, %v1370
    %v2323 = vpack.c.b16 %v1375, %v1371
    %v2324 = vpack.c.b16 %v1376, %v1372
    %v2325 = vpack.c.b16 %v1381, %v1377
    %v2326 = vpack.c.b16 %v1382, %v1378
    %v2327 = vpack.c.b16 %v1383, %v1379
    %v2328 = vpack.c.b16 %v1384, %v1380
    %v2329 = vpack.c.b16 %v1389, %v1385
    %v2330 = vpack.c.b16 %v1390, %v1386
    %v2331 = vpack.c.b16 %v1391, %v1387
    %v2332 = vpack.c.b16 %v1392, %v1388
    %v2333 = vpack.c.b16 %v1397, %v1393
    %v2334 = vpack.c.b16 %v1398, %v1394
    %v2335 = vpack.c.b16 %v1399, %v1395
    %v2336 = vpack.c.b16 %v1400, %v1396
    %v2337 = vpack.c.b16 %v1405, %v1401
    %v2338 = vpack.c.b16 %v1406, %v1402
    %v2339 = vpack.c.b16 %v1407, %v1403
    %v2340 = vpack.c.b16 %v1408, %v1404
    %v2341 = vpack.c.b16 %v1413, %v1409
    %v2342 = vpack.c.b16 %v1414, %v1410
    %v2343 = vpack.c.b16 %v1415, %v1411
    %v2344 = vpack.c.b16 %v1416, %v1412
    %v2345 = vpack.c.b16 %v1421, %v1417
    %v2346 = vpack.c.b16 %v1422, %v1418
    %v2347 = vpack.c.b16 %v1423, %v1419
    %v2348 = vpack.c.b16 %v1424, %v1420
    %v2349 = vpack.c.b16 %v1429, %v1425
    %v2350 = vpack.c.b16 %v1430, %v1426
    %v2351 = vpack.c.b16 %v1431, %v1427
    %v2352 = vpack.c.b16 %v1432, %v1428
    %v2353 = vpack.c.b16 %v1437, %v1433
    %v2354 = vpack.c.b16 %v1438, %v1434
    %v2355 = vpack.c.b16 %v1439, %v1435
    %v2356 = vpack.c.b16 %v1440, %v1436
    %v2357 = vpack.c.b16 %v1445, %v1441
    %v2358 = vpack.c.b16 %v1446, %v1442
    %v2359 = vpack.c.b16 %v1447, %v1443
    %v2360 = vpack.c.b16 %v1448, %v1444
    %v2361 = vpack.c.b16 %v1453, %v1449
    %v2362 = vpack.c.b16 %v1454, %v1450
    %v2363 = vpack.c.b16 %v1455, %v1451
    %v2364 = vpack.c.b16 %v1456, %v1452
    %v2365 = vpack.c.b16 %v1461, %v1457
    %v2366 = vpack.c.b16 %v1462, %v1458
    %v2367 = vpack.c.b16 %v1463, %v1459
    %v2368 = vpack.c.b16 %v1464, %v1460
    %v2369 = vpack.c.b16 %v1469, %v1465
    %v2370 = vpack.c.b16 %v1470, %v1466
    %v2371 = vpack.c.b16 %v1471, %v1467
    %v2372 = vpack.c.b16 %v1472, %v1468
    %v2373 = vpack.c.b16 %v1477, %v1473
    %v2374 = vpack.c.b16 %v1478, %v1474
    %v2375 = vpack.c.b16 %v1479, %v1475
    %v2376 = vpack.c.b16 %v1480, %v1476
    %v2377 = vpack.c.b16 %v1485, %v1481
    %v2378 = vpack.c.b16 %v1486, %v1482
    %v2379 = vpack.c.b16 %v1487, %v1483
    %v2380 = vpack.c.b16 %v1488, %v1484
    %v2381 = vpack.c.b16 %v1493, %v1489
    %v2382 = vpack.c.b16 %v1494, %v1490
    %v2383 = vpack.c.b16 %v1495, %v1491
    %v2384 = vpack.c.b16 %v1496, %v1492
    %v2385 = vpack.c.b16 %v1501, %v1497
    %v2386 = vpack.c.b16 %v1502, %v1498
    %v2387 = vpack.c.b16 %v1503, %v1499
    %v2388 = vpack.c.b16 %v1504, %v1500
    %v2389 = vpack.c.b16 %v1509, %v1505
    %v2390 = vpack.c.b16 %v1510, %v1506
    %v2391 = vpack.c.b16 %v1511, %v1507
    %v2392 = vpack.c.b16 %v1512, %v1508
    %v2393 = vpack.c.b16 %v1517, %v1513
    %v2394 = vpack.c.b16 %v1518, %v1514
    %v2395 = vpack.c.b16 %v1519, %v1515
    %v2396 = vpack.c.b16 %v1520, %v1516
    %v2397 = vpack.c.b16 %v1525, %v1521
    %v2398 = vpack.c.b16 %v1526, %v1522
    %v2399 = vpack.c.b16 %v1527, %v1523
    %v2400 = vpack.c.b16 %v1528, %v1524
    %v2401 = vpack.c.b16 %v1533, %v1529
    %v2402 = vpack.c.b16 %v1534, %v1530
    %v2403 = vpack.c.b16 %v1535, %v1531
    %v2404 = vpack.c.b16 %v1536, %v1532
    %v2405 = vpack.c.b16 %v1541, %v1537
    %v2406 = vpack.c.b16 %v1542, %v1538
    %v2407 = vpack.c.b16 %v1543, %v1539
    %v2408 = vpack.c.b16 %v1544, %v1540
    %v2409 = vpack.c.b16 %v1549, %v1545
    %v2410 = vpack.c.b16 %v1550, %v1546
    %v2411 = vpack.c.b16 %v1551, %v1547
    %v2412 = vpack.c.b16 %v1552, %v1548
    %v2413 = vpack.c.b16 %v1557, %v1553
    %v2414 = vpack.c.b16 %v1558, %v1554
    %v2415 = vpack.c.b16 %v1559, %v1555
    %v2416 = vpack.c.b16 %v1560, %v1556
    %v2417 = vpack.c.b16 %v1565, %v1561
    %v2418 = vpack.c.b16 %v1566, %v1562
    %v2419 = vpack.c.b16 %v1567, %v1563
    %v2420 = vpack.c.b16 %v1568, %v1564
    %v2421 = vpack.c.b16 %v1573, %v1569
    %v2422 = vpack.c.b16 %v1574, %v1570
    %v2423 = vpack.c.b16 %v1575, %v1571
    %v2424 = vpack.c.b16 %v1576, %v1572
    %v2425 = vpack.c.b16 %v1581, %v1577
    %v2426 = vpack.c.b16 %v1582, %v1578
    %v2427 = vpack.c.b16 %v1583, %v1579
    %v2428 = vpack.c.b16 %v1584, %v1580
    %v2429 = vpack.c.b16 %v1589, %v1585
    %v2430 = vpack.c.b16 %v1590, %v1586
    %v2431 = vpack.c.b16 %v1591, %v1587
    %v2432 = vpack.c.b16 %v1592, %v1588
    %v2433 = vpack.c.b16 %v1597, %v1593
    %v2434 = vpack.c.b16 %v1598, %v1594
    %v2435 = vpack.c.b16 %v1599, %v1595
    %v2436 = vpack.c.b16 %v1600, %v1596
    %v2437 = vpack.c.b16 %v1605, %v1601
    %v2438 = vpack.c.b16 %v1606, %v1602
    %v2439 = vpack.c.b16 %v1607, %v1603
    %v2440 = vpack.c.b16 %v1608, %v1604
    %v2441 = vpack.c.b16 %v1613, %v1609
    %v2442 = vpack.c.b16 %v1614, %v1610
    %v2443 = vpack.c.b16 %v1615, %v1611
    %v2444 = vpack.c.b16 %v1616, %v1612
    %v2445 = vpack.c.b16 %v1621, %v1617
    %v2446 = vpack.c.b16 %v1622, %v1618
    %v2447 = vpack.c.b16 %v1623, %v1619
    %v2448 = vpack.c.b16 %v1624, %v1620
    %v2449 = vpack.c.b16 %v1629, %v1625
    %v2450 = vpack.c.b16 %v1630, %v1626
    %v2451 = vpack.c.b16 %v1631, %v1627
    %v2452 = vpack.c.b16 %v1632, %v1628
    %v2453 = vpack.c.b16 %v1637, %v1633
    %v2454 = vpack.c.b16 %v1638, %v1634
    %v2455 = vpack.c.b16 %v1639, %v1635
    %v2456 = vpack.c.b16 %v1640, %v1636
    %v2457 = vpack.c.b16 %v1645, %v1641
    %v2458 = vpack.c.b16 %v1646, %v1642
    %v2459 = vpack.c.b16 %v1647, %v1643
    %v2460 = vpack.c.b16 %v1648, %v1644
    %v2461 = vpack.c.b16 %v1653, %v1649
    %v2462 = vpack.c.b16 %v1654, %v1650
    %v2463 = vpack.c.b16 %v1655, %v1651
    %v2464 = vpack.c.b16 %v1656, %v1652
    %v2465 = vpack.c.b16 %v1661, %v1657
    %v2466 = vpack.c.b16 %v1662, %v1658
    %v2467 = vpack.c.b16 %v1663, %v1659
    %v2468 = vpack.c.b16 %v1664, %v1660
    %v2469 = vpack.c.b16 %v1669, %v1665
    %v2470 = vpack.c.b16 %v1670, %v1666
    %v2471 = vpack.c.b16 %v1671, %v1667
    %v2472 = vpack.c.b16 %v1672, %v1668
    %v2473 = vpack.c.b16 %v1677, %v1673
    %v2474 = vpack.c.b16 %v1678, %v1674
    %v2475 = vpack.c.b16 %v1679, %v1675
    %v2476 = vpack.c.b16 %v1680, %v1676
    %v2477 = vpack.c.b16 %v1685, %v1681
    %v2478 = vpack.c.b16 %v1686, %v1682
    %v2479 = vpack.c.b16 %v1687, %v1683
    %v2480 = vpack.c.b16 %v1688, %v1684
    %v2481 = vpack.c.b16 %v1693, %v1689
    %v2482 = vpack.c.b16 %v1694, %v1690
    %v2483 = vpack.c.b16 %v1695, %v1691
    %v2484 = vpack.c.b16 %v1696, %v1692
    %v2485 = vpack.c.b16 %v1701, %v1697
    %v2486 = vpack.c.b16 %v1702, %v1698
    %v2487 = vpack.c.b16 %v1703, %v1699
    %v2488 = vpack.c.b16 %v1704, %v1700
    %v2489 = vpack.c.b16 %v1709, %v1705
    %v2490 = vpack.c.b16 %v1710, %v1706
    %v2491 = vpack.c.b16 %v1711, %v1707
    %v2492 = vpack.c.b16 %v1712, %v1708
    %v2493 = vpack.c.b16 %v1717, %v1713
    %v2494 = vpack.c.b16 %v1718, %v1714
    %v2495 = vpack.c.b16 %v1719, %v1715
    %v2496 = vpack.c.b16 %v1720, %v1716
    %v2497 = vpack.c.b16 %v1725, %v1721
    %v2498 = vpack.c.b16 %v1726, %v1722
    %v2499 = vpack.c.b16 %v1727, %v1723
    %v2500 = vpack.c.b16 %v1728, %v1724
    %v2501 = vpack.c.b16 %v1733, %v1729
    %v2502 = vpack.c.b16 %v1734, %v1730
    %v2503 = vpack.c.b16 %v1735, %v1731
    %v2504 = vpack.c.b16 %v1736, %v1732
    %v2505 = vpack.c.b16 %v1741, %v1737
    %v2506 = vpack.c.b16 %v1742, %v1738
    %v2507 = vpack.c.b16 %v1743, %v1739
    %v2508 = vpack.c.b16 %v1744, %v1740
    %v2509 = vpack.c.b16 %v1749, %v1745
    %v2510 = vpack.c.b16 %v1750, %v1746
    %v2511 = vpack.c.b16 %v1751, %v1747
    %v2512 = vpack.c.b16 %v1752, %v1748
    %v2513 = vpack.c.b16 %v1757, %v1753
    %v2514 = vpack.c.b16 %v1758, %v1754
    %v2515 = vpack.c.b16 %v1759, %v1755
    %v2516 = vpack.c.b16 %v1760, %v1756
    %v2517 = vpack.c.b16 %v1765, %v1761
    %v2518 = vpack.c.b16 %v1766, %v1762
    %v2519 = vpack.c.b16 %v1767, %v1763
    %v2520 = vpack.c.b16 %v1768, %v1764
    %v2521 = vpack.c.b16 %v1773, %v1769
    %v2522 = vpack.c.b16 %v1774, %v1770
    %v2523 = vpack.c.b16 %v1775, %v1771
    %v2524 = vpack.c.b16 %v1776, %v1772
    %v2525 = vpack.c.b16 %v1781, %v1777
    %v2526 = vpack.c.b16 %v1782, %v1778
    %v2527 = vpack.c.b16 %v1783, %v1779
    %v2528 = vpack.c.b16 %v1784, %v1780
    %v2529 = vpack.c.b16 %v1789, %v1785
    %v2530 = vpack.c.b16 %v1790, %v1786
    %v2531 = vpack.c.b16 %v1791, %v1787
    %v2532 = vpack.c.b16 %v1792, %v1788
    %v2533 = vpack.c.b16 %v1797, %v1793
    %v2534 = vpack.c.b16 %v1798, %v1794
    %v2535 = vpack.c.b16 %v1799, %v1795
    %v2536 = vpack.c.b16 %v1800, %v1796
    %v2537 = vpack.c.b16 %v1805, %v1801
    %v2538 = vpack.c.b16 %v1806, %v1802
    %v2539 = vpack.c.b16 %v1807, %v1803
    %v2540 = vpack.c.b16 %v1808, %v1804
    %v2541 = vpack.c.b16 %v1813, %v1809
    %v2542 = vpack.c.b16 %v1814, %v1810
    %v2543 = vpack.c.b16 %v1815, %v1811
    %v2544 = vpack.c.b16 %v1816, %v1812
    %v2545 = vpack.c.b16 %v1821, %v1817
    %v2546 = vpack.c.b16 %v1822, %v1818
    %v2547 = vpack.c.b16 %v1823, %v1819
    %v2548 = vpack.c.b16 %v1824, %v1820
    %v2549 = vpack.c.b16 %v1829, %v1825
    %v2550 = vpack.c.b16 %v1830, %v1826
    %v2551 = vpack.c.b16 %v1831, %v1827
    %v2552 = vpack.c.b16 %v1832, %v1828
    %v2553 = vpack.c.b16 %v1837, %v1833
    %v2554 = vpack.c.b16 %v1838, %v1834
    %v2555 = vpack.c.b16 %v1839, %v1835
    %v2556 = vpack.c.b16 %v1840, %v1836
    %v2557 = vpack.c.b16 %v1845, %v1841
    %v2558 = vpack.c.b16 %v1846, %v1842
    %v2559 = vpack.c.b16 %v1847, %v1843
    %v2560 = vpack.c.b16 %v1848, %v1844
    %v2561 = vpack.c.b16 %v1853, %v1849
    %v2562 = vpack.c.b16 %v1854, %v1850
    %v2563 = vpack.c.b16 %v1855, %v1851
    %v2564 = vpack.c.b16 %v1856, %v1852
    %v2565 = vpack.c.b16 %v1861, %v1857
    %v2566 = vpack.c.b16 %v1862, %v1858
    %v2567 = vpack.c.b16 %v1863, %v1859
    %v2568 = vpack.c.b16 %v1864, %v1860
    %v2569 = vpack.c.b16 %v1869, %v1865
    %v2570 = vpack.c.b16 %v1870, %v1866
    %v2571 = vpack.c.b16 %v1871, %v1867
    %v2572 = vpack.c.b16 %v1872, %v1868
    %v2573 = vpack.c.b16 %v1877, %v1873
    %v2574 = vpack.c.b16 %v1878, %v1874
    %v2575 = vpack.c.b16 %v1879, %v1875
    %v2576 = vpack.c.b16 %v1880, %v1876
    %v2577 = vpack.c.b16 %v1885, %v1881
    %v2578 = vpack.c.b16 %v1886, %v1882
    %v2579 = vpack.c.b16 %v1887, %v1883
    %v2580 = vpack.c.b16 %v1888, %v1884
    %v2581 = vpack.c.b16 %v1893, %v1889
    %v2582 = vpack.c.b16 %v1894, %v1890
    %v2583 = vpack.c.b16 %v1895, %v1891
    %v2584 = vpack.c.b16 %v1896, %v1892
    %v2585 = vpack.c.b16 %v1901, %v1897
    %v2586 = vpack.c.b16 %v1902, %v1898
    %v2587 = vpack.c.b16 %v1903, %v1899
    %v2588 = vpack.c.b16 %v1904, %v1900
    %v2589 = vpack.c.b16 %v1909, %v1905
    %v2590 = vpack.c.b16 %v1910, %v1906
    %v2591 = vpack.c.b16 %v1911, %v1907
    %v2592 = vpack.c.b16 %v1912, %v1908
    %v2593 = vpack.c.b16 %v1917, %v1913
    %v2594 = vpack.c.b16 %v1918, %v1914
    %v2595 = vpack.c.b16 %v1919, %v1915
    %v2596 = vpack.c.b16 %v1920, %v1916
    %v2597 = vpack.c.b16 %v1925, %v1921
    %v2598 = vpack.c.b16 %v1926, %v1922
    %v2599 = vpack.c.b16 %v1927, %v1923
    %v2600 = vpack.c.b16 %v1928, %v1924
    %v2601 = vpack.c.b16 %v1933, %v1929
    %v2602 = vpack.c.b16 %v1934, %v1930
    %v2603 = vpack.c.b16 %v1935, %v1931
    %v2604 = vpack.c.b16 %v1936, %v1932
    %v2605 = vpack.c.b16 %v1941, %v1937
    %v2606 = vpack.c.b16 %v1942, %v1938
    %v2607 = vpack.c.b16 %v1943, %v1939
    %v2608 = vpack.c.b16 %v1944, %v1940
    %v2609 = vpack.c.b16 %v1949, %v1945
    %v2610 = vpack.c.b16 %v1950, %v1946
    %v2611 = vpack.c.b16 %v1951, %v1947
    %v2612 = vpack.c.b16 %v1952, %v1948
    %v2613 = vpack.c.b16 %v1957, %v1953
    %v2614 = vpack.c.b16 %v1958, %v1954
    %v2615 = vpack.c.b16 %v1959, %v1955
    %v2616 = vpack.c.b16 %v1960, %v1956
    %v2617 = vpack.c.b16 %v1965, %v1961
    %v2618 = vpack.c.b16 %v1966, %v1962
    %v2619 = vpack.c.b16 %v1967, %v1963
    %v2620 = vpack.c.b16 %v1968, %v1964
    %v2621 = vpack.c.b16 %v1973, %v1969
    %v2622 = vpack.c.b16 %v1974, %v1970
    %v2623 = vpack.c.b16 %v1975, %v1971
    %v2624 = vpack.c.b16 %v1976, %v1972
    %v2625 = vpack.c.b16 %v1981, %v1977
    %v2626 = vpack.c.b16 %v1982, %v1978
    %v2627 = vpack.c.b16 %v1983, %v1979
    %v2628 = vpack.c.b16 %v1984, %v1980
    %v2629 = vpack.c.b16 %v1989, %v1985
    %v2630 = vpack.c.b16 %v1990, %v1986
    %v2631 = vpack.c.b16 %v1991, %v1987
    %v2632 = vpack.c.b16 %v1992, %v1988
    %v2633 = vpack.c.b16 %v1997, %v1993
    %v2634 = vpack.c.b16 %v1998, %v1994
    %v2635 = vpack.c.b16 %v1999, %v1995
    %v2636 = vpack.c.b16 %v2000, %v1996
    %v2637 = vpack.c.b16 %v2005, %v2001
    %v2638 = vpack.c.b16 %v2006, %v2002
    %v2639 = vpack.c.b16 %v2007, %v2003
    %v2640 = vpack.c.b16 %v2008, %v2004
    %v2641 = vpack.c.b16 %v2013, %v2009
    %v2642 = vpack.c.b16 %v2014, %v2010
    %v2643 = vpack.c.b16 %v2015, %v2011
    %v2644 = vpack.c.b16 %v2016, %v2012
    %v2645 = vpack.c.b16 %v2021, %v2017
    %v2646 = vpack.c.b16 %v2022, %v2018
    %v2647 = vpack.c.b16 %v2023, %v2019
    %v2648 = vpack.c.b16 %v2024, %v2020
    %v2649 = vpack.c.b16 %v2029, %v2025
    %v2650 = vpack.c.b16 %v2030, %v2026
    %v2651 = vpack.c.b16 %v2031, %v2027
    %v2652 = vpack.c.b16 %v2032, %v2028
    %v2653 = vpack.c.b16 %v2037, %v2033
    %v2654 = vpack.c.b16 %v2038, %v2034
    %v2655 = vpack.c.b16 %v2039, %v2035
    %v2656 = vpack.c.b16 %v2040, %v2036
    %v2657 = vpack.c.b16 %v2045, %v2041
    %v2658 = vpack.c.b16 %v2046, %v2042
    %v2659 = vpack.c.b16 %v2047, %v2043
    %v2660 = vpack.c.b16 %v2048, %v2044
    %v2661 = vpack.c.b16 %v2053, %v2049
    %v2662 = vpack.c.b16 %v2054, %v2050
    %v2663 = vpack.c.b16 %v2055, %v2051
    %v2664 = vpack.c.b16 %v2056, %v2052
    %v2665 = vpack.c.b16 %v2061, %v2057
    %v2666 = vpack.c.b16 %v2062, %v2058
    %v2667 = vpack.c.b16 %v2063, %v2059
    %v2668 = vpack.c.b16 %v2064, %v2060
    %v2669 = vpack.c.b16 %v2069, %v2065
    %v2670 = vpack.c.b16 %v2070, %v2066
    %v2671 = vpack.c.b16 %v2071, %v2067
    %v2672 = vpack.c.b16 %v2072, %v2068
    %v2673 = vpack.c.b16 %v2077, %v2073
    %v2674 = vpack.c.b16 %v2078, %v2074
    %v2675 = vpack.c.b16 %v2079, %v2075
    %v2676 = vpack.c.b16 %v2080, %v2076
    %v2677 = vpack.c.b16 %v2085, %v2081
    %v2678 = vpack.c.b16 %v2086, %v2082
    %v2679 = vpack.c.b16 %v2087, %v2083
    %v2680 = vpack.c.b16 %v2088, %v2084
    %v2681 = vpack.c.b16 %v2093, %v2089
    %v2682 = vpack.c.b16 %v2094, %v2090
    %v2683 = vpack.c.b16 %v2095, %v2091
    %v2684 = vpack.c.b16 %v2096, %v2092
    %v2685 = vpack.c.b16 %v2101, %v2097
    %v2686 = vpack.c.b16 %v2102, %v2098
    %v2687 = vpack.c.b16 %v2103, %v2099
    %v2688 = vpack.c.b16 %v2104, %v2100
    %v2689 = vpack.c.b16 %v2109, %v2105
    %v2690 = vpack.c.b16 %v2110, %v2106
    %v2691 = vpack.c.b16 %v2111, %v2107
    %v2692 = vpack.c.b16 %v2112, %v2108
    %v2693 = vpack.c.b16 %v2117, %v2113
    %v2694 = vpack.c.b16 %v2118, %v2114
    %v2695 = vpack.c.b16 %v2119, %v2115
    %v2696 = vpack.c.b16 %v2120, %v2116
    %v2697 = vpack.c.b16 %v2125, %v2121
    %v2698 = vpack.c.b16 %v2126, %v2122
    %v2699 = vpack.c.b16 %v2127, %v2123
    %v2700 = vpack.c.b16 %v2128, %v2124
    %v2701 = vpack.c.b16 %v2133, %v2129
    %v2702 = vpack.c.b16 %v2134, %v2130
    %v2703 = vpack.c.b16 %v2135, %v2131
    %v2704 = vpack.c.b16 %v2136, %v2132
    %v2705 = vpack.c.b16 %v2141, %v2137
    %v2706 = vpack.c.b16 %v2142, %v2138
    %v2707 = vpack.c.b16 %v2143, %v2139
    %v2708 = vpack.c.b16 %v2144, %v2140
    %v2709 = vpack.c.b16 %v2149, %v2145
    %v2710 = vpack.c.b16 %v2150, %v2146
    %v2711 = vpack.c.b16 %v2151, %v2147
    %v2712 = vpack.c.b16 %v2152, %v2148
    %v2713 = vpack.c.b16 %v2157, %v2153
    %v2714 = vpack.c.b16 %v2158, %v2154
    %v2715 = vpack.c.b16 %v2159, %v2155
    %v2716 = vpack.c.b16 %v2160, %v2156
    %v2717 = vpack.c.b16 %v2165, %v2161
    %v2718 = vpack.c.b16 %v2166, %v2162
    %v2719 = vpack.c.b16 %v2167, %v2163
    %v2720 = vpack.c.b16 %v2168, %v2164
    %v2721 = vpack.c.b16 %v2173, %v2169
    %v2722 = vpack.c.b16 %v2174, %v2170
    %v2723 = vpack.c.b16 %v2175, %v2171
    %v2724 = vpack.c.b16 %v2176, %v2172
    %v2725 = vpack.c.b16 %v2181, %v2177
    %v2726 = vpack.c.b16 %v2182, %v2178
    %v2727 = vpack.c.b16 %v2183, %v2179
    %v2728 = vpack.c.b16 %v2184, %v2180
    %v2729 = vpack.c.b16 %v2189, %v2185
    %v2730 = vpack.c.b16 %v2190, %v2186
    %v2731 = vpack.c.b16 %v2191, %v2187
    %v2732 = vpack.c.b16 %v2192, %v2188
    %v2733 = vpack.c.b16 %v2197, %v2193
    %v2734 = vpack.c.b16 %v2198, %v2194
    %v2735 = vpack.c.b16 %v2199, %v2195
    %v2736 = vpack.c.b16 %v2200, %v2196
    %v2737 = vpack.c.b16 %v2205, %v2201
    %v2738 = vpack.c.b16 %v2206, %v2202
    %v2739 = vpack.c.b16 %v2207, %v2203
    %v2740 = vpack.c.b16 %v2208, %v2204
    %v2741 = vpack.c.b16 %v2213, %v2209
    %v2742 = vpack.c.b16 %v2214, %v2210
    %v2743 = vpack.c.b16 %v2215, %v2211
    %v2744 = vpack.c.b16 %v2216, %v2212
    %v2745 = vpack.c.b16 %v2221, %v2217
    %v2746 = vpack.c.b16 %v2222, %v2218
    %v2747 = vpack.c.b16 %v2223, %v2219
    %v2748 = vpack.c.b16 %v2224, %v2220
    %v2749 = vpack.c.b16 %v2229, %v2225
    %v2750 = vpack.c.b16 %v2230, %v2226
    %v2751 = vpack.c.b16 %v2231, %v2227
    %v2752 = vpack.c.b16 %v2232, %v2228
    %v2753 = vpack.c.b16 %v2237, %v2233
    %v2754 = vpack.c.b16 %v2238, %v2234
    %v2755 = vpack.c.b16 %v2239, %v2235
    %v2756 = vpack.c.b16 %v2240, %v2236
    %v2757 = vpack.c.b16 %v2245, %v2241
    %v2758 = vpack.c.b16 %v2246, %v2242
    %v2759 = vpack.c.b16 %v2247, %v2243
    %v2760 = vpack.c.b16 %v2248, %v2244
    %3273 = vmatprep.subr.bf16.mxu0 %v2278
    %3274 = vmatpush1.bf16.msra.mxu0 %v2277
    %3275 = vmatprep.subr.bf16.mxu0 %v2274
    %3276 = vmatpush1.bf16.msra.mxu0 %v2273
    %3277 = vmatprep.subr.bf16.mxu0 %v2270
    %3278 = vmatpush1.bf16.msra.mxu0 %v2269
    %3279 = vmatprep.subr.bf16.mxu0 %v2266
    %3280 = vmatpush1.bf16.msra.mxu0 %v2265
    %3281 = vmatprep.subr.bf16.mxu0 %v2262
    %3282 = vmatpush1.bf16.msra.mxu0 %v2261
    %3283 = vmatprep.subr.bf16.mxu0 %v2258
    %3284 = vmatpush1.bf16.msra.mxu0 %v2257
    %3285 = vmatprep.subr.bf16.mxu0 %v2254
    %3286 = vmatpush1.bf16.msra.mxu0 %v2253
    %3287 = vmatprep.subr.bf16.mxu0 %v2250
    %3288 = vmatpush1.bf16.msra.mxu0 %v2249
    %3289 = vmatprep.subr.bf16.mxu0 %v2310
    %3290 = vmatpush2.bf16.msra.mxu0 %v2309
    %3291 = vmatprep.subr.bf16.mxu0 %v2306
    %3292 = vmatpush2.bf16.msra.mxu0 %v2305
    %3293 = vmatprep.subr.bf16.mxu0 %v2302
    %3294 = vmatpush2.bf16.msra.mxu0 %v2301
    %3295 = vmatprep.subr.bf16.mxu0 %v2298
    %3296 = vmatpush2.bf16.msra.mxu0 %v2297
    %3297 = vmatprep.subr.bf16.mxu0 %v2294
    %3298 = vmatpush2.bf16.msra.mxu0 %v2293
    %3299 = vmatprep.subr.bf16.mxu0 %v2290
    %3300 = vmatpush2.bf16.msra.mxu0 %v2289
    %3301 = vmatprep.subr.bf16.mxu0 %v2286
    %3302 = vmatpush2.bf16.msra.mxu0 %v2285
    %3303 = vmatprep.subr.bf16.mxu0 %v2282
    %3304 = vmatpush2.bf16.msra.mxu0 %v2281
    %3305 = vmatprep.mubr.bf16.mxu0 %v164
    %3306 = vmatmul.mubr.bf16.gmra.mxu0 %v163
    %v3307 = vpop.f32.mrf.mxu0
    %v3308 = vadd.f32 %v696, %v3307
    %v3309 = vpop.f32.mrf.mxu0
    %v3310 = vadd.f32 %v700, %v3309
    %v3311 = vpop.f32.mrf.mxu0
    %v3312 = vpop.f32.mrf.mxu0
    %3313 = vdwg.mxu0
    %3314 = vmatprep.subr.bf16.mxu0 %v2342
    %3315 = vmatpush1.bf16.msra.mxu0 %v2341
    %3316 = vmatprep.subr.bf16.mxu0 %v2338
    %3317 = vmatpush1.bf16.msra.mxu0 %v2337
    %3318 = vmatprep.subr.bf16.mxu0 %v2334
    %3319 = vmatpush1.bf16.msra.mxu0 %v2333
    %3320 = vmatprep.subr.bf16.mxu0 %v2330
    %3321 = vmatpush1.bf16.msra.mxu0 %v2329
    %3322 = vmatprep.subr.bf16.mxu0 %v2326
    %3323 = vmatpush1.bf16.msra.mxu0 %v2325
    %3324 = vmatprep.subr.bf16.mxu0 %v2322
    %3325 = vmatpush1.bf16.msra.mxu0 %v2321
    %3326 = vmatprep.subr.bf16.mxu0 %v2318
    %3327 = vmatpush1.bf16.msra.mxu0 %v2317
    %3328 = vmatprep.subr.bf16.mxu0 %v2314
    %3329 = vmatpush1.bf16.msra.mxu0 %v2313
    %3330 = vmatprep.subr.bf16.mxu0 %v2374
    %3331 = vmatpush2.bf16.msra.mxu0 %v2373
    %3332 = vmatprep.subr.bf16.mxu0 %v2370
    %3333 = vmatpush2.bf16.msra.mxu0 %v2369
    %3334 = vmatprep.subr.bf16.mxu0 %v2366
    %3335 = vmatpush2.bf16.msra.mxu0 %v2365
    %3336 = vmatprep.subr.bf16.mxu0 %v2362
    %3337 = vmatpush2.bf16.msra.mxu0 %v2361
    %3338 = vmatprep.subr.bf16.mxu0 %v2358
    %3339 = vmatpush2.bf16.msra.mxu0 %v2357
    %3340 = vmatprep.subr.bf16.mxu0 %v2354
    %3341 = vmatpush2.bf16.msra.mxu0 %v2353
    %3342 = vmatprep.subr.bf16.mxu0 %v2350
    %3343 = vmatpush2.bf16.msra.mxu0 %v2349
    %3344 = vmatprep.subr.bf16.mxu0 %v2346
    %3345 = vmatpush2.bf16.msra.mxu0 %v2345
    %3346 = vmatprep.mubr.bf16.mxu0 %v166
    %3347 = vmatmul.mubr.bf16.gmra.mxu0 %v165
    %v3348 = vpop.f32.mrf.mxu0
    %v3349 = vadd.f32 %v3308, %v3348
    %v3350 = vpop.f32.mrf.mxu0
    %v3351 = vadd.f32 %v3310, %v3350
    %v3352 = vpop.f32.mrf.mxu0
    %v3353 = vpop.f32.mrf.mxu0
    %3354 = vdwg.mxu0
    %3355 = vmatprep.subr.bf16.mxu0 %v2406
    %3356 = vmatpush1.bf16.msra.mxu0 %v2405
    %3357 = vmatprep.subr.bf16.mxu0 %v2402
    %3358 = vmatpush1.bf16.msra.mxu0 %v2401
    %3359 = vmatprep.subr.bf16.mxu0 %v2398
    %3360 = vmatpush1.bf16.msra.mxu0 %v2397
    %3361 = vmatprep.subr.bf16.mxu0 %v2394
    %3362 = vmatpush1.bf16.msra.mxu0 %v2393
    %3363 = vmatprep.subr.bf16.mxu0 %v2390
    %3364 = vmatpush1.bf16.msra.mxu0 %v2389
    %3365 = vmatprep.subr.bf16.mxu0 %v2386
    %3366 = vmatpush1.bf16.msra.mxu0 %v2385
    %3367 = vmatprep.subr.bf16.mxu0 %v2382
    %3368 = vmatpush1.bf16.msra.mxu0 %v2381
    %3369 = vmatprep.subr.bf16.mxu0 %v2378
    %3370 = vmatpush1.bf16.msra.mxu0 %v2377
    %3371 = vmatprep.subr.bf16.mxu0 %v2438
    %3372 = vmatpush2.bf16.msra.mxu0 %v2437
    %3373 = vmatprep.subr.bf16.mxu0 %v2434
    %3374 = vmatpush2.bf16.msra.mxu0 %v2433
    %3375 = vmatprep.subr.bf16.mxu0 %v2430
    %3376 = vmatpush2.bf16.msra.mxu0 %v2429
    %3377 = vmatprep.subr.bf16.mxu0 %v2426
    %3378 = vmatpush2.bf16.msra.mxu0 %v2425
    %3379 = vmatprep.subr.bf16.mxu0 %v2422
    %3380 = vmatpush2.bf16.msra.mxu0 %v2421
    %3381 = vmatprep.subr.bf16.mxu0 %v2418
    %3382 = vmatpush2.bf16.msra.mxu0 %v2417
    %3383 = vmatprep.subr.bf16.mxu0 %v2414
    %3384 = vmatpush2.bf16.msra.mxu0 %v2413
    %3385 = vmatprep.subr.bf16.mxu0 %v2410
    %3386 = vmatpush2.bf16.msra.mxu0 %v2409
    %3387 = vmatprep.mubr.bf16.mxu0 %v168
    %3388 = vmatmul.mubr.bf16.gmra.mxu0 %v167
    %v3389 = vpop.f32.mrf.mxu0
    %v3390 = vadd.f32 %v3349, %v3389
    %v3391 = vpop.f32.mrf.mxu0
    %v3392 = vadd.f32 %v3351, %v3391
    %v3393 = vpop.f32.mrf.mxu0
    %v3394 = vpop.f32.mrf.mxu0
    %3395 = vdwg.mxu0
    %3396 = vmatprep.subr.bf16.mxu0 %v2470
    %3397 = vmatpush1.bf16.msra.mxu0 %v2469
    %3398 = vmatprep.subr.bf16.mxu0 %v2466
    %3399 = vmatpush1.bf16.msra.mxu0 %v2465
    %3400 = vmatprep.subr.bf16.mxu0 %v2462
    %3401 = vmatpush1.bf16.msra.mxu0 %v2461
    %3402 = vmatprep.subr.bf16.mxu0 %v2458
    %3403 = vmatpush1.bf16.msra.mxu0 %v2457
    %3404 = vmatprep.subr.bf16.mxu0 %v2454
    %3405 = vmatpush1.bf16.msra.mxu0 %v2453
    %3406 = vmatprep.subr.bf16.mxu0 %v2450
    %3407 = vmatpush1.bf16.msra.mxu0 %v2449
    %3408 = vmatprep.subr.bf16.mxu0 %v2446
    %3409 = vmatpush1.bf16.msra.mxu0 %v2445
    %3410 = vmatprep.subr.bf16.mxu0 %v2442
    %3411 = vmatpush1.bf16.msra.mxu0 %v2441
    %3412 = vmatprep.subr.bf16.mxu0 %v2502
    %3413 = vmatpush2.bf16.msra.mxu0 %v2501
    %3414 = vmatprep.subr.bf16.mxu0 %v2498
    %3415 = vmatpush2.bf16.msra.mxu0 %v2497
    %3416 = vmatprep.subr.bf16.mxu0 %v2494
    %3417 = vmatpush2.bf16.msra.mxu0 %v2493
    %3418 = vmatprep.subr.bf16.mxu0 %v2490
    %3419 = vmatpush2.bf16.msra.mxu0 %v2489
    %3420 = vmatprep.subr.bf16.mxu0 %v2486
    %3421 = vmatpush2.bf16.msra.mxu0 %v2485
    %3422 = vmatprep.subr.bf16.mxu0 %v2482
    %3423 = vmatpush2.bf16.msra.mxu0 %v2481
    %3424 = vmatprep.subr.bf16.mxu0 %v2478
    %3425 = vmatpush2.bf16.msra.mxu0 %v2477
    %3426 = vmatprep.subr.bf16.mxu0 %v2474
    %3427 = vmatpush2.bf16.msra.mxu0 %v2473
    %3428 = vmatprep.mubr.bf16.mxu0 %v170
    %3429 = vmatmul.mubr.bf16.gmra.mxu0 %v169
    %v3430 = vpop.f32.mrf.mxu0
    %v3431 = vadd.f32 %v3390, %v3430
    %v3432 = vpop.f32.mrf.mxu0
    %v3433 = vadd.f32 %v3392, %v3432
    %v3434 = vpop.f32.mrf.mxu0
    %v3435 = vpop.f32.mrf.mxu0
    %3436 = vdwg.mxu0
    %3437 = vmatprep.subr.bf16.mxu0 %v2534
    %3438 = vmatpush1.bf16.msra.mxu0 %v2533
    %3439 = vmatprep.subr.bf16.mxu0 %v2530
    %3440 = vmatpush1.bf16.msra.mxu0 %v2529
    %3441 = vmatprep.subr.bf16.mxu0 %v2526
    %3442 = vmatpush1.bf16.msra.mxu0 %v2525
    %3443 = vmatprep.subr.bf16.mxu0 %v2522
    %3444 = vmatpush1.bf16.msra.mxu0 %v2521
    %3445 = vmatprep.subr.bf16.mxu0 %v2518
    %3446 = vmatpush1.bf16.msra.mxu0 %v2517
    %3447 = vmatprep.subr.bf16.mxu0 %v2514
    %3448 = vmatpush1.bf16.msra.mxu0 %v2513
    %3449 = vmatprep.subr.bf16.mxu0 %v2510
    %3450 = vmatpush1.bf16.msra.mxu0 %v2509
    %3451 = vmatprep.subr.bf16.mxu0 %v2506
    %3452 = vmatpush1.bf16.msra.mxu0 %v2505
    %3453 = vmatprep.subr.bf16.mxu0 %v2566
    %3454 = vmatpush2.bf16.msra.mxu0 %v2565
    %3455 = vmatprep.subr.bf16.mxu0 %v2562
    %3456 = vmatpush2.bf16.msra.mxu0 %v2561
    %3457 = vmatprep.subr.bf16.mxu0 %v2558
    %3458 = vmatpush2.bf16.msra.mxu0 %v2557
    %3459 = vmatprep.subr.bf16.mxu0 %v2554
    %3460 = vmatpush2.bf16.msra.mxu0 %v2553
    %3461 = vmatprep.subr.bf16.mxu0 %v2550
    %3462 = vmatpush2.bf16.msra.mxu0 %v2549
    %3463 = vmatprep.subr.bf16.mxu0 %v2546
    %3464 = vmatpush2.bf16.msra.mxu0 %v2545
    %3465 = vmatprep.subr.bf16.mxu0 %v2542
    %3466 = vmatpush2.bf16.msra.mxu0 %v2541
    %3467 = vmatprep.subr.bf16.mxu0 %v2538
    %3468 = vmatpush2.bf16.msra.mxu0 %v2537
    %3469 = vmatprep.mubr.bf16.mxu0 %v172
    %3470 = vmatmul.mubr.bf16.gmra.mxu0 %v171
    %v3471 = vpop.f32.mrf.mxu0
    %v3472 = vadd.f32 %v3431, %v3471
    %v3473 = vpop.f32.mrf.mxu0
    %v3474 = vadd.f32 %v3433, %v3473
    %v3475 = vpop.f32.mrf.mxu0
    %v3476 = vpop.f32.mrf.mxu0
    %3477 = vdwg.mxu0
    %3478 = vmatprep.subr.bf16.mxu0 %v2598
    %3479 = vmatpush1.bf16.msra.mxu0 %v2597
    %3480 = vmatprep.subr.bf16.mxu0 %v2594
    %3481 = vmatpush1.bf16.msra.mxu0 %v2593
    %3482 = vmatprep.subr.bf16.mxu0 %v2590
    %3483 = vmatpush1.bf16.msra.mxu0 %v2589
    %3484 = vmatprep.subr.bf16.mxu0 %v2586
    %3485 = vmatpush1.bf16.msra.mxu0 %v2585
    %3486 = vmatprep.subr.bf16.mxu0 %v2582
    %3487 = vmatpush1.bf16.msra.mxu0 %v2581
    %3488 = vmatprep.subr.bf16.mxu0 %v2578
    %3489 = vmatpush1.bf16.msra.mxu0 %v2577
    %3490 = vmatprep.subr.bf16.mxu0 %v2574
    %3491 = vmatpush1.bf16.msra.mxu0 %v2573
    %3492 = vmatprep.subr.bf16.mxu0 %v2570
    %3493 = vmatpush1.bf16.msra.mxu0 %v2569
    %3494 = vmatprep.subr.bf16.mxu0 %v2630
    %3495 = vmatpush2.bf16.msra.mxu0 %v2629
    %3496 = vmatprep.subr.bf16.mxu0 %v2626
    %3497 = vmatpush2.bf16.msra.mxu0 %v2625
    %3498 = vmatprep.subr.bf16.mxu0 %v2622
    %3499 = vmatpush2.bf16.msra.mxu0 %v2621
    %3500 = vmatprep.subr.bf16.mxu0 %v2618
    %3501 = vmatpush2.bf16.msra.mxu0 %v2617
    %3502 = vmatprep.subr.bf16.mxu0 %v2614
    %3503 = vmatpush2.bf16.msra.mxu0 %v2613
    %3504 = vmatprep.subr.bf16.mxu0 %v2610
    %3505 = vmatpush2.bf16.msra.mxu0 %v2609
    %3506 = vmatprep.subr.bf16.mxu0 %v2606
    %3507 = vmatpush2.bf16.msra.mxu0 %v2605
    %3508 = vmatprep.subr.bf16.mxu0 %v2602
    %3509 = vmatpush2.bf16.msra.mxu0 %v2601
    %3510 = vmatprep.mubr.bf16.mxu0 %v174
    %3511 = vmatmul.mubr.bf16.gmra.mxu0 %v173
    %v3512 = vpop.f32.mrf.mxu0
    %v3513 = vadd.f32 %v3472, %v3512
    %v3514 = vpop.f32.mrf.mxu0
    %v3515 = vadd.f32 %v3474, %v3514
    %v3516 = vpop.f32.mrf.mxu0
    %v3517 = vpop.f32.mrf.mxu0
    %3518 = vdwg.mxu0
    %3519 = vmatprep.subr.bf16.mxu0 %v2662
    %3520 = vmatpush1.bf16.msra.mxu0 %v2661
    %3521 = vmatprep.subr.bf16.mxu0 %v2658
    %3522 = vmatpush1.bf16.msra.mxu0 %v2657
    %3523 = vmatprep.subr.bf16.mxu0 %v2654
    %3524 = vmatpush1.bf16.msra.mxu0 %v2653
    %3525 = vmatprep.subr.bf16.mxu0 %v2650
    %3526 = vmatpush1.bf16.msra.mxu0 %v2649
    %3527 = vmatprep.subr.bf16.mxu0 %v2646
    %3528 = vmatpush1.bf16.msra.mxu0 %v2645
    %3529 = vmatprep.subr.bf16.mxu0 %v2642
    %3530 = vmatpush1.bf16.msra.mxu0 %v2641
    %3531 = vmatprep.subr.bf16.mxu0 %v2638
    %3532 = vmatpush1.bf16.msra.mxu0 %v2637
    %3533 = vmatprep.subr.bf16.mxu0 %v2634
    %3534 = vmatpush1.bf16.msra.mxu0 %v2633
    %3535 = vmatprep.subr.bf16.mxu0 %v2694
    %3536 = vmatpush2.bf16.msra.mxu0 %v2693
    %3537 = vmatprep.subr.bf16.mxu0 %v2690
    %3538 = vmatpush2.bf16.msra.mxu0 %v2689
    %3539 = vmatprep.subr.bf16.mxu0 %v2686
    %3540 = vmatpush2.bf16.msra.mxu0 %v2685
    %3541 = vmatprep.subr.bf16.mxu0 %v2682
    %3542 = vmatpush2.bf16.msra.mxu0 %v2681
    %3543 = vmatprep.subr.bf16.mxu0 %v2678
    %3544 = vmatpush2.bf16.msra.mxu0 %v2677
    %3545 = vmatprep.subr.bf16.mxu0 %v2674
    %3546 = vmatpush2.bf16.msra.mxu0 %v2673
    %3547 = vmatprep.subr.bf16.mxu0 %v2670
    %3548 = vmatpush2.bf16.msra.mxu0 %v2669
    %3549 = vmatprep.subr.bf16.mxu0 %v2666
    %3550 = vmatpush2.bf16.msra.mxu0 %v2665
    %3551 = vmatprep.mubr.bf16.mxu0 %v176
    %3552 = vmatmul.mubr.bf16.gmra.mxu0 %v175
    %v3553 = vpop.f32.mrf.mxu0
    %v3554 = vadd.f32 %v3513, %v3553
    %v3555 = vpop.f32.mrf.mxu0
    %v3556 = vadd.f32 %v3515, %v3555
    %v3557 = vpop.f32.mrf.mxu0
    %v3558 = vpop.f32.mrf.mxu0
    %3559 = vdwg.mxu0
    %3560 = vmatprep.subr.bf16.mxu0 %v2726
    %3561 = vmatpush1.bf16.msra.mxu0 %v2725
    %3562 = vmatprep.subr.bf16.mxu0 %v2722
    %3563 = vmatpush1.bf16.msra.mxu0 %v2721
    %3564 = vmatprep.subr.bf16.mxu0 %v2718
    %3565 = vmatpush1.bf16.msra.mxu0 %v2717
    %3566 = vmatprep.subr.bf16.mxu0 %v2714
    %3567 = vmatpush1.bf16.msra.mxu0 %v2713
    %3568 = vmatprep.subr.bf16.mxu0 %v2710
    %3569 = vmatpush1.bf16.msra.mxu0 %v2709
    %3570 = vmatprep.subr.bf16.mxu0 %v2706
    %3571 = vmatpush1.bf16.msra.mxu0 %v2705
    %3572 = vmatprep.subr.bf16.mxu0 %v2702
    %3573 = vmatpush1.bf16.msra.mxu0 %v2701
    %3574 = vmatprep.subr.bf16.mxu0 %v2698
    %3575 = vmatpush1.bf16.msra.mxu0 %v2697
    %3576 = vmatprep.subr.bf16.mxu0 %v2758
    %3577 = vmatpush2.bf16.msra.mxu0 %v2757
    %3578 = vmatprep.subr.bf16.mxu0 %v2754
    %3579 = vmatpush2.bf16.msra.mxu0 %v2753
    %3580 = vmatprep.subr.bf16.mxu0 %v2750
    %3581 = vmatpush2.bf16.msra.mxu0 %v2749
    %3582 = vmatprep.subr.bf16.mxu0 %v2746
    %3583 = vmatpush2.bf16.msra.mxu0 %v2745
    %3584 = vmatprep.subr.bf16.mxu0 %v2742
    %3585 = vmatpush2.bf16.msra.mxu0 %v2741
    %3586 = vmatprep.subr.bf16.mxu0 %v2738
    %3587 = vmatpush2.bf16.msra.mxu0 %v2737
    %3588 = vmatprep.subr.bf16.mxu0 %v2734
    %3589 = vmatpush2.bf16.msra.mxu0 %v2733
    %3590 = vmatprep.subr.bf16.mxu0 %v2730
    %3591 = vmatpush2.bf16.msra.mxu0 %v2729
    %3592 = vmatprep.mubr.bf16.mxu0 %v178
    %3593 = vmatmul.mubr.bf16.gmra.mxu0 %v177
    %v3594 = vpop.f32.mrf.mxu0
    %v3595 = vadd.f32 %v3554, %v3594
    %v3596 = vpop.f32.mrf.mxu0
    %v3597 = vadd.f32 %v3556, %v3596
    %v3598 = vpop.f32.mrf.mxu0
    %v3599 = vpop.f32.mrf.mxu0
    %3600 = vdwg.mxu0
    %3601 = vmatprep.subr.bf16.mxu0 %v2280
    %3602 = vmatpush1.bf16.msra.mxu0 %v2279
    %3603 = vmatprep.subr.bf16.mxu0 %v2276
    %3604 = vmatpush1.bf16.msra.mxu0 %v2275
    %3605 = vmatprep.subr.bf16.mxu0 %v2272
    %3606 = vmatpush1.bf16.msra.mxu0 %v2271
    %3607 = vmatprep.subr.bf16.mxu0 %v2268
    %3608 = vmatpush1.bf16.msra.mxu0 %v2267
    %3609 = vmatprep.subr.bf16.mxu0 %v2264
    %3610 = vmatpush1.bf16.msra.mxu0 %v2263
    %3611 = vmatprep.subr.bf16.mxu0 %v2260
    %3612 = vmatpush1.bf16.msra.mxu0 %v2259
    %3613 = vmatprep.subr.bf16.mxu0 %v2256
    %3614 = vmatpush1.bf16.msra.mxu0 %v2255
    %3615 = vmatprep.subr.bf16.mxu0 %v2252
    %3616 = vmatpush1.bf16.msra.mxu0 %v2251
    %3617 = vmatprep.subr.bf16.mxu0 %v2312
    %3618 = vmatpush2.bf16.msra.mxu0 %v2311
    %3619 = vmatprep.subr.bf16.mxu0 %v2308
    %3620 = vmatpush2.bf16.msra.mxu0 %v2307
    %3621 = vmatprep.subr.bf16.mxu0 %v2304
    %3622 = vmatpush2.bf16.msra.mxu0 %v2303
    %3623 = vmatprep.subr.bf16.mxu0 %v2300
    %3624 = vmatpush2.bf16.msra.mxu0 %v2299
    %3625 = vmatprep.subr.bf16.mxu0 %v2296
    %3626 = vmatpush2.bf16.msra.mxu0 %v2295
    %3627 = vmatprep.subr.bf16.mxu0 %v2292
    %3628 = vmatpush2.bf16.msra.mxu0 %v2291
    %3629 = vmatprep.subr.bf16.mxu0 %v2288
    %3630 = vmatpush2.bf16.msra.mxu0 %v2287
    %3631 = vmatprep.subr.bf16.mxu0 %v2284
    %3632 = vmatpush2.bf16.msra.mxu0 %v2283
    %3633 = vmatprep.mubr.bf16.mxu0 %v164
    %3634 = vmatmul.mubr.bf16.gmra.mxu0 %v163
    %v3635 = vpop.f32.mrf.mxu0
    %v3636 = vadd.f32 %v704, %v3635
    %v3637 = vpop.f32.mrf.mxu0
    %v3638 = vadd.f32 %v708, %v3637
    %v3639 = vpop.f32.mrf.mxu0
    %v3640 = vpop.f32.mrf.mxu0
    %3641 = vdwg.mxu0
    %3642 = vmatprep.subr.bf16.mxu0 %v2344
    %3643 = vmatpush1.bf16.msra.mxu0 %v2343
    %3644 = vmatprep.subr.bf16.mxu0 %v2340
    %3645 = vmatpush1.bf16.msra.mxu0 %v2339
    %3646 = vmatprep.subr.bf16.mxu0 %v2336
    %3647 = vmatpush1.bf16.msra.mxu0 %v2335
    %3648 = vmatprep.subr.bf16.mxu0 %v2332
    %3649 = vmatpush1.bf16.msra.mxu0 %v2331
    %3650 = vmatprep.subr.bf16.mxu0 %v2328
    %3651 = vmatpush1.bf16.msra.mxu0 %v2327
    %3652 = vmatprep.subr.bf16.mxu0 %v2324
    %3653 = vmatpush1.bf16.msra.mxu0 %v2323
    %3654 = vmatprep.subr.bf16.mxu0 %v2320
    %3655 = vmatpush1.bf16.msra.mxu0 %v2319
    %3656 = vmatprep.subr.bf16.mxu0 %v2316
    %3657 = vmatpush1.bf16.msra.mxu0 %v2315
    %3658 = vmatprep.subr.bf16.mxu0 %v2376
    %3659 = vmatpush2.bf16.msra.mxu0 %v2375
    %3660 = vmatprep.subr.bf16.mxu0 %v2372
    %3661 = vmatpush2.bf16.msra.mxu0 %v2371
    %3662 = vmatprep.subr.bf16.mxu0 %v2368
    %3663 = vmatpush2.bf16.msra.mxu0 %v2367
    %3664 = vmatprep.subr.bf16.mxu0 %v2364
    %3665 = vmatpush2.bf16.msra.mxu0 %v2363
    %3666 = vmatprep.subr.bf16.mxu0 %v2360
    %3667 = vmatpush2.bf16.msra.mxu0 %v2359
    %3668 = vmatprep.subr.bf16.mxu0 %v2356
    %3669 = vmatpush2.bf16.msra.mxu0 %v2355
    %3670 = vmatprep.subr.bf16.mxu0 %v2352
    %3671 = vmatpush2.bf16.msra.mxu0 %v2351
    %3672 = vmatprep.subr.bf16.mxu0 %v2348
    %3673 = vmatpush2.bf16.msra.mxu0 %v2347
    %3674 = vmatprep.mubr.bf16.mxu0 %v166
    %3675 = vmatmul.mubr.bf16.gmra.mxu0 %v165
    %v3676 = vpop.f32.mrf.mxu0
    %v3677 = vadd.f32 %v3636, %v3676
    %v3678 = vpop.f32.mrf.mxu0
    %v3679 = vadd.f32 %v3638, %v3678
    %v3680 = vpop.f32.mrf.mxu0
    %v3681 = vpop.f32.mrf.mxu0
    %3682 = vdwg.mxu0
    %3683 = vmatprep.subr.bf16.mxu0 %v2408
    %3684 = vmatpush1.bf16.msra.mxu0 %v2407
    %3685 = vmatprep.subr.bf16.mxu0 %v2404
    %3686 = vmatpush1.bf16.msra.mxu0 %v2403
    %3687 = vmatprep.subr.bf16.mxu0 %v2400
    %3688 = vmatpush1.bf16.msra.mxu0 %v2399
    %3689 = vmatprep.subr.bf16.mxu0 %v2396
    %3690 = vmatpush1.bf16.msra.mxu0 %v2395
    %3691 = vmatprep.subr.bf16.mxu0 %v2392
    %3692 = vmatpush1.bf16.msra.mxu0 %v2391
    %3693 = vmatprep.subr.bf16.mxu0 %v2388
    %3694 = vmatpush1.bf16.msra.mxu0 %v2387
    %3695 = vmatprep.subr.bf16.mxu0 %v2384
    %3696 = vmatpush1.bf16.msra.mxu0 %v2383
    %3697 = vmatprep.subr.bf16.mxu0 %v2380
    %3698 = vmatpush1.bf16.msra.mxu0 %v2379
    %3699 = vmatprep.subr.bf16.mxu0 %v2440
    %3700 = vmatpush2.bf16.msra.mxu0 %v2439
    %3701 = vmatprep.subr.bf16.mxu0 %v2436
    %3702 = vmatpush2.bf16.msra.mxu0 %v2435
    %3703 = vmatprep.subr.bf16.mxu0 %v2432
    %3704 = vmatpush2.bf16.msra.mxu0 %v2431
    %3705 = vmatprep.subr.bf16.mxu0 %v2428
    %3706 = vmatpush2.bf16.msra.mxu0 %v2427
    %3707 = vmatprep.subr.bf16.mxu0 %v2424
    %3708 = vmatpush2.bf16.msra.mxu0 %v2423
    %3709 = vmatprep.subr.bf16.mxu0 %v2420
    %3710 = vmatpush2.bf16.msra.mxu0 %v2419
    %3711 = vmatprep.subr.bf16.mxu0 %v2416
    %3712 = vmatpush2.bf16.msra.mxu0 %v2415
    %3713 = vmatprep.subr.bf16.mxu0 %v2412
    %3714 = vmatpush2.bf16.msra.mxu0 %v2411
    %3715 = vmatprep.mubr.bf16.mxu0 %v168
    %3716 = vmatmul.mubr.bf16.gmra.mxu0 %v167
    %v3717 = vpop.f32.mrf.mxu0
    %v3718 = vadd.f32 %v3677, %v3717
    %v3719 = vpop.f32.mrf.mxu0
    %v3720 = vadd.f32 %v3679, %v3719
    %v3721 = vpop.f32.mrf.mxu0
    %v3722 = vpop.f32.mrf.mxu0
    %3723 = vdwg.mxu0
    %3724 = vmatprep.subr.bf16.mxu0 %v2472
    %3725 = vmatpush1.bf16.msra.mxu0 %v2471
    %3726 = vmatprep.subr.bf16.mxu0 %v2468
    %3727 = vmatpush1.bf16.msra.mxu0 %v2467
    %3728 = vmatprep.subr.bf16.mxu0 %v2464
    %3729 = vmatpush1.bf16.msra.mxu0 %v2463
    %3730 = vmatprep.subr.bf16.mxu0 %v2460
    %3731 = vmatpush1.bf16.msra.mxu0 %v2459
    %3732 = vmatprep.subr.bf16.mxu0 %v2456
    %3733 = vmatpush1.bf16.msra.mxu0 %v2455
    %3734 = vmatprep.subr.bf16.mxu0 %v2452
    %3735 = vmatpush1.bf16.msra.mxu0 %v2451
    %3736 = vmatprep.subr.bf16.mxu0 %v2448
    %3737 = vmatpush1.bf16.msra.mxu0 %v2447
    %3738 = vmatprep.subr.bf16.mxu0 %v2444
    %3739 = vmatpush1.bf16.msra.mxu0 %v2443
    %3740 = vmatprep.subr.bf16.mxu0 %v2504
    %3741 = vmatpush2.bf16.msra.mxu0 %v2503
    %3742 = vmatprep.subr.bf16.mxu0 %v2500
    %3743 = vmatpush2.bf16.msra.mxu0 %v2499
    %3744 = vmatprep.subr.bf16.mxu0 %v2496
    %3745 = vmatpush2.bf16.msra.mxu0 %v2495
    %3746 = vmatprep.subr.bf16.mxu0 %v2492
    %3747 = vmatpush2.bf16.msra.mxu0 %v2491
    %3748 = vmatprep.subr.bf16.mxu0 %v2488
    %3749 = vmatpush2.bf16.msra.mxu0 %v2487
    %3750 = vmatprep.subr.bf16.mxu0 %v2484
    %3751 = vmatpush2.bf16.msra.mxu0 %v2483
    %3752 = vmatprep.subr.bf16.mxu0 %v2480
    %3753 = vmatpush2.bf16.msra.mxu0 %v2479
    %3754 = vmatprep.subr.bf16.mxu0 %v2476
    %3755 = vmatpush2.bf16.msra.mxu0 %v2475
    %3756 = vmatprep.mubr.bf16.mxu0 %v170
    %3757 = vmatmul.mubr.bf16.gmra.mxu0 %v169
    %v3758 = vpop.f32.mrf.mxu0
    %v3759 = vadd.f32 %v3718, %v3758
    %v3760 = vpop.f32.mrf.mxu0
    %v3761 = vadd.f32 %v3720, %v3760
    %v3762 = vpop.f32.mrf.mxu0
    %v3763 = vpop.f32.mrf.mxu0
    %3764 = vdwg.mxu0
    %3765 = vmatprep.subr.bf16.mxu0 %v2536
    %3766 = vmatpush1.bf16.msra.mxu0 %v2535
    %3767 = vmatprep.subr.bf16.mxu0 %v2532
    %3768 = vmatpush1.bf16.msra.mxu0 %v2531
    %3769 = vmatprep.subr.bf16.mxu0 %v2528
    %3770 = vmatpush1.bf16.msra.mxu0 %v2527
    %3771 = vmatprep.subr.bf16.mxu0 %v2524
    %3772 = vmatpush1.bf16.msra.mxu0 %v2523
    %3773 = vmatprep.subr.bf16.mxu0 %v2520
    %3774 = vmatpush1.bf16.msra.mxu0 %v2519
    %3775 = vmatprep.subr.bf16.mxu0 %v2516
    %3776 = vmatpush1.bf16.msra.mxu0 %v2515
    %3777 = vmatprep.subr.bf16.mxu0 %v2512
    %3778 = vmatpush1.bf16.msra.mxu0 %v2511
    %3779 = vmatprep.subr.bf16.mxu0 %v2508
    %3780 = vmatpush1.bf16.msra.mxu0 %v2507
    %3781 = vmatprep.subr.bf16.mxu0 %v2568
    %3782 = vmatpush2.bf16.msra.mxu0 %v2567
    %3783 = vmatprep.subr.bf16.mxu0 %v2564
    %3784 = vmatpush2.bf16.msra.mxu0 %v2563
    %3785 = vmatprep.subr.bf16.mxu0 %v2560
    %3786 = vmatpush2.bf16.msra.mxu0 %v2559
    %3787 = vmatprep.subr.bf16.mxu0 %v2556
    %3788 = vmatpush2.bf16.msra.mxu0 %v2555
    %3789 = vmatprep.subr.bf16.mxu0 %v2552
    %3790 = vmatpush2.bf16.msra.mxu0 %v2551
    %3791 = vmatprep.subr.bf16.mxu0 %v2548
    %3792 = vmatpush2.bf16.msra.mxu0 %v2547
    %3793 = vmatprep.subr.bf16.mxu0 %v2544
    %3794 = vmatpush2.bf16.msra.mxu0 %v2543
    %3795 = vmatprep.subr.bf16.mxu0 %v2540
    %3796 = vmatpush2.bf16.msra.mxu0 %v2539
    %3797 = vmatprep.mubr.bf16.mxu0 %v172
    %3798 = vmatmul.mubr.bf16.gmra.mxu0 %v171
    %v3799 = vpop.f32.mrf.mxu0
    %v3800 = vadd.f32 %v3759, %v3799
    %v3801 = vpop.f32.mrf.mxu0
    %v3802 = vadd.f32 %v3761, %v3801
    %v3803 = vpop.f32.mrf.mxu0
    %v3804 = vpop.f32.mrf.mxu0
    %3805 = vdwg.mxu0
    %3806 = vmatprep.subr.bf16.mxu0 %v2600
    %3807 = vmatpush1.bf16.msra.mxu0 %v2599
    %3808 = vmatprep.subr.bf16.mxu0 %v2596
    %3809 = vmatpush1.bf16.msra.mxu0 %v2595
    %3810 = vmatprep.subr.bf16.mxu0 %v2592
    %3811 = vmatpush1.bf16.msra.mxu0 %v2591
    %3812 = vmatprep.subr.bf16.mxu0 %v2588
    %3813 = vmatpush1.bf16.msra.mxu0 %v2587
    %3814 = vmatprep.subr.bf16.mxu0 %v2584
    %3815 = vmatpush1.bf16.msra.mxu0 %v2583
    %3816 = vmatprep.subr.bf16.mxu0 %v2580
    %3817 = vmatpush1.bf16.msra.mxu0 %v2579
    %3818 = vmatprep.subr.bf16.mxu0 %v2576
    %3819 = vmatpush1.bf16.msra.mxu0 %v2575
    %3820 = vmatprep.subr.bf16.mxu0 %v2572
    %3821 = vmatpush1.bf16.msra.mxu0 %v2571
    %3822 = vmatprep.subr.bf16.mxu0 %v2632
    %3823 = vmatpush2.bf16.msra.mxu0 %v2631
    %3824 = vmatprep.subr.bf16.mxu0 %v2628
    %3825 = vmatpush2.bf16.msra.mxu0 %v2627
    %3826 = vmatprep.subr.bf16.mxu0 %v2624
    %3827 = vmatpush2.bf16.msra.mxu0 %v2623
    %3828 = vmatprep.subr.bf16.mxu0 %v2620
    %3829 = vmatpush2.bf16.msra.mxu0 %v2619
    %3830 = vmatprep.subr.bf16.mxu0 %v2616
    %3831 = vmatpush2.bf16.msra.mxu0 %v2615
    %3832 = vmatprep.subr.bf16.mxu0 %v2612
    %3833 = vmatpush2.bf16.msra.mxu0 %v2611
    %3834 = vmatprep.subr.bf16.mxu0 %v2608
    %3835 = vmatpush2.bf16.msra.mxu0 %v2607
    %3836 = vmatprep.subr.bf16.mxu0 %v2604
    %3837 = vmatpush2.bf16.msra.mxu0 %v2603
    %3838 = vmatprep.mubr.bf16.mxu0 %v174
    %3839 = vmatmul.mubr.bf16.gmra.mxu0 %v173
    %v3840 = vpop.f32.mrf.mxu0
    %v3841 = vadd.f32 %v3800, %v3840
    %v3842 = vpop.f32.mrf.mxu0
    %v3843 = vadd.f32 %v3802, %v3842
    %v3844 = vpop.f32.mrf.mxu0
    %v3845 = vpop.f32.mrf.mxu0
    %3846 = vdwg.mxu0
    %3847 = vmatprep.subr.bf16.mxu0 %v2664
    %3848 = vmatpush1.bf16.msra.mxu0 %v2663
    %3849 = vmatprep.subr.bf16.mxu0 %v2660
    %3850 = vmatpush1.bf16.msra.mxu0 %v2659
    %3851 = vmatprep.subr.bf16.mxu0 %v2656
    %3852 = vmatpush1.bf16.msra.mxu0 %v2655
    %3853 = vmatprep.subr.bf16.mxu0 %v2652
    %3854 = vmatpush1.bf16.msra.mxu0 %v2651
    %3855 = vmatprep.subr.bf16.mxu0 %v2648
    %3856 = vmatpush1.bf16.msra.mxu0 %v2647
    %3857 = vmatprep.subr.bf16.mxu0 %v2644
    %3858 = vmatpush1.bf16.msra.mxu0 %v2643
    %3859 = vmatprep.subr.bf16.mxu0 %v2640
    %3860 = vmatpush1.bf16.msra.mxu0 %v2639
    %3861 = vmatprep.subr.bf16.mxu0 %v2636
    %3862 = vmatpush1.bf16.msra.mxu0 %v2635
    %3863 = vmatprep.subr.bf16.mxu0 %v2696
    %3864 = vmatpush2.bf16.msra.mxu0 %v2695
    %3865 = vmatprep.subr.bf16.mxu0 %v2692
    %3866 = vmatpush2.bf16.msra.mxu0 %v2691
    %3867 = vmatprep.subr.bf16.mxu0 %v2688
    %3868 = vmatpush2.bf16.msra.mxu0 %v2687
    %3869 = vmatprep.subr.bf16.mxu0 %v2684
    %3870 = vmatpush2.bf16.msra.mxu0 %v2683
    %3871 = vmatprep.subr.bf16.mxu0 %v2680
    %3872 = vmatpush2.bf16.msra.mxu0 %v2679
    %3873 = vmatprep.subr.bf16.mxu0 %v2676
    %3874 = vmatpush2.bf16.msra.mxu0 %v2675
    %3875 = vmatprep.subr.bf16.mxu0 %v2672
    %3876 = vmatpush2.bf16.msra.mxu0 %v2671
    %3877 = vmatprep.subr.bf16.mxu0 %v2668
    %3878 = vmatpush2.bf16.msra.mxu0 %v2667
    %3879 = vmatprep.mubr.bf16.mxu0 %v176
    %3880 = vmatmul.mubr.bf16.gmra.mxu0 %v175
    %v3881 = vpop.f32.mrf.mxu0
    %v3882 = vadd.f32 %v3841, %v3881
    %v3883 = vpop.f32.mrf.mxu0
    %v3884 = vadd.f32 %v3843, %v3883
    %v3885 = vpop.f32.mrf.mxu0
    %v3886 = vpop.f32.mrf.mxu0
    %3887 = vdwg.mxu0
    %3888 = vmatprep.subr.bf16.mxu0 %v2728
    %3889 = vmatpush1.bf16.msra.mxu0 %v2727
    %3890 = vmatprep.subr.bf16.mxu0 %v2724
    %3891 = vmatpush1.bf16.msra.mxu0 %v2723
    %3892 = vmatprep.subr.bf16.mxu0 %v2720
    %3893 = vmatpush1.bf16.msra.mxu0 %v2719
    %3894 = vmatprep.subr.bf16.mxu0 %v2716
    %3895 = vmatpush1.bf16.msra.mxu0 %v2715
    %3896 = vmatprep.subr.bf16.mxu0 %v2712
    %3897 = vmatpush1.bf16.msra.mxu0 %v2711
    %3898 = vmatprep.subr.bf16.mxu0 %v2708
    %3899 = vmatpush1.bf16.msra.mxu0 %v2707
    %3900 = vmatprep.subr.bf16.mxu0 %v2704
    %3901 = vmatpush1.bf16.msra.mxu0 %v2703
    %3902 = vmatprep.subr.bf16.mxu0 %v2700
    %3903 = vmatpush1.bf16.msra.mxu0 %v2699
    %3904 = vmatprep.subr.bf16.mxu0 %v2760
    %3905 = vmatpush2.bf16.msra.mxu0 %v2759
    %3906 = vmatprep.subr.bf16.mxu0 %v2756
    %3907 = vmatpush2.bf16.msra.mxu0 %v2755
    %3908 = vmatprep.subr.bf16.mxu0 %v2752
    %3909 = vmatpush2.bf16.msra.mxu0 %v2751
    %3910 = vmatprep.subr.bf16.mxu0 %v2748
    %3911 = vmatpush2.bf16.msra.mxu0 %v2747
    %3912 = vmatprep.subr.bf16.mxu0 %v2744
    %3913 = vmatpush2.bf16.msra.mxu0 %v2743
    %3914 = vmatprep.subr.bf16.mxu0 %v2740
    %3915 = vmatpush2.bf16.msra.mxu0 %v2739
    %3916 = vmatprep.subr.bf16.mxu0 %v2736
    %3917 = vmatpush2.bf16.msra.mxu0 %v2735
    %3918 = vmatprep.subr.bf16.mxu0 %v2732
    %3919 = vmatpush2.bf16.msra.mxu0 %v2731
    %3920 = vmatprep.mubr.bf16.mxu0 %v178
    %3921 = vmatmul.mubr.bf16.gmra.mxu0 %v177
    %v3922 = vpop.f32.mrf.mxu0
    %v3923 = vadd.f32 %v3882, %v3922
    %v3924 = vpop.f32.mrf.mxu0
    %v3925 = vadd.f32 %v3884, %v3924
    %v3926 = vpop.f32.mrf.mxu0
    %v3927 = vpop.f32.mrf.mxu0
    %3928 = vdwg.mxu0
    %v3929 = vtanh.pop %v3595
    %v3930 = vtanh.pop %v3597
    %v3931 = vtanh.pop %v3923
    %v3932 = vtanh.pop %v3925
    %v3933 = vpack.c.bf16 %v3929, %v3929
    %v3934 = vpack.c.bf16 %v3930, %v3930
    %v3935 = vpack.c.bf16 %v3931, %v3931
    %v3936 = vpack.c.bf16 %v3932, %v3932
    %v3937 = vld [vmem:[%s3] sm:$0xf]
    %v3938 = vld [vmem:[%s3 + $0x4] sm:$0xf]
    %v3939 = vld [vmem:[%s3 + $0x8] sm:$0xf]
    %v3940 = vld [vmem:[%s3 + $0xc] sm:$0xf]
    %v3941 = vld [vmem:[%s3 + $0x10] sm:$0xf]
    %v3942 = vld [vmem:[%s3 + $0x14] sm:$0xf]
    %v3943 = vld [vmem:[%s3 + $0x18] sm:$0xf]
    %v3944 = vld [vmem:[%s3 + $0x1c] sm:$0xf]
    %v3945 = vld [vmem:[%s3 + $0x20] sm:$0xf]
    %v3946 = vld [vmem:[%s3 + $0x24] sm:$0xf]
    %v3947 = vld [vmem:[%s3 + $0x28] sm:$0xf]
    %v3948 = vld [vmem:[%s3 + $0x2c] sm:$0xf]
    %v3949 = vld [vmem:[%s3 + $0x30] sm:$0xf]
    %v3950 = vld [vmem:[%s3 + $0x34] sm:$0xf]
    %v3951 = vld [vmem:[%s3 + $0x38] sm:$0xf]
    %v3952 = vld [vmem:[%s3 + $0x3c] sm:$0xf]
    %v3953 = vld [vmem:[%s3 + $0x40] sm:$0xf]
    %v3954 = vld [vmem:[%s3 + $0x44] sm:$0xf]
    %v3955 = vld [vmem:[%s3 + $0x48] sm:$0xf]
    %v3956 = vld [vmem:[%s3 + $0x4c] sm:$0xf]
    %v3957 = vld [vmem:[%s3 + $0x50] sm:$0xf]
    %v3958 = vld [vmem:[%s3 + $0x54] sm:$0xf]
    %v3959 = vld [vmem:[%s3 + $0x58] sm:$0xf]
    %v3960 = vld [vmem:[%s3 + $0x5c] sm:$0xf]
    %v3961 = vld [vmem:[%s3 + $0x60] sm:$0xf]
    %v3962 = vld [vmem:[%s3 + $0x64] sm:$0xf]
    %v3963 = vld [vmem:[%s3 + $0x68] sm:$0xf]
    %v3964 = vld [vmem:[%s3 + $0x6c] sm:$0xf]
    %v3965 = vld [vmem:[%s3 + $0x70] sm:$0xf]
    %v3966 = vld [vmem:[%s3 + $0x74] sm:$0xf]
    %v3967 = vld [vmem:[%s3 + $0x78] sm:$0xf]
    %v3968 = vld [vmem:[%s3 + $0x7c] sm:$0xf]
    %v3969 = vld [vmem:[%s3 + $0x80] sm:$0xf]
    %v3970 = vld [vmem:[%s3 + $0x84] sm:$0xf]
    %v3971 = vld [vmem:[%s3 + $0x88] sm:$0xf]
    %v3972 = vld [vmem:[%s3 + $0x8c] sm:$0xf]
    %v3973 = vld [vmem:[%s3 + $0x90] sm:$0xf]
    %v3974 = vld [vmem:[%s3 + $0x94] sm:$0xf]
    %v3975 = vld [vmem:[%s3 + $0x98] sm:$0xf]
    %v3976 = vld [vmem:[%s3 + $0x9c] sm:$0xf]
    %v3977 = vld [vmem:[%s3 + $0xa0] sm:$0xf]
    %v3978 = vld [vmem:[%s3 + $0xa4] sm:$0xf]
    %v3979 = vld [vmem:[%s3 + $0xa8] sm:$0xf]
    %v3980 = vld [vmem:[%s3 + $0xac] sm:$0xf]
    %v3981 = vld [vmem:[%s3 + $0xb0] sm:$0xf]
    %v3982 = vld [vmem:[%s3 + $0xb4] sm:$0xf]
    %v3983 = vld [vmem:[%s3 + $0xb8] sm:$0xf]
    %v3984 = vld [vmem:[%s3 + $0xbc] sm:$0xf]
    %v3985 = vld [vmem:[%s3 + $0xc0] sm:$0xf]
    %v3986 = vld [vmem:[%s3 + $0xc4] sm:$0xf]
    %v3987 = vld [vmem:[%s3 + $0xc8] sm:$0xf]
    %v3988 = vld [vmem:[%s3 + $0xcc] sm:$0xf]
    %v3989 = vld [vmem:[%s3 + $0xd0] sm:$0xf]
    %v3990 = vld [vmem:[%s3 + $0xd4] sm:$0xf]
    %v3991 = vld [vmem:[%s3 + $0xd8] sm:$0xf]
    %v3992 = vld [vmem:[%s3 + $0xdc] sm:$0xf]
    %v3993 = vld [vmem:[%s3 + $0xe0] sm:$0xf]
    %v3994 = vld [vmem:[%s3 + $0xe4] sm:$0xf]
    %v3995 = vld [vmem:[%s3 + $0xe8] sm:$0xf]
    %v3996 = vld [vmem:[%s3 + $0xec] sm:$0xf]
    %v3997 = vld [vmem:[%s3 + $0xf0] sm:$0xf]
    %v3998 = vld [vmem:[%s3 + $0xf4] sm:$0xf]
    %v3999 = vld [vmem:[%s3 + $0xf8] sm:$0xf]
    %v4000 = vld [vmem:[%s3 + $0xfc] sm:$0xf]
    %v4001 = vld [vmem:[#allocation8] sm:$0x1]
    %v4003 = vlaneseq
    %v4004 = vshrl.u32 %v4003, 7
    %v4005 = vsub.s32 0, %v4004
    %v4006 = vrot.slane %v4001, %v4005
    %v4072 = vunpack.c.l.b16 %v3937
    %v4073 = vunpack.c.l.b16 %v3938
    %v4074 = vunpack.c.l.b16 %v3939
    %v4075 = vunpack.c.l.b16 %v3940
    %v4076 = vunpack.c.l.b16 %v3941
    %v4077 = vunpack.c.l.b16 %v3942
    %v4078 = vunpack.c.l.b16 %v3943
    %v4079 = vunpack.c.l.b16 %v3944
    %v4080 = vunpack.c.l.b16 %v3945
    %v4081 = vunpack.c.l.b16 %v3946
    %v4082 = vunpack.c.l.b16 %v3947
    %v4083 = vunpack.c.l.b16 %v3948
    %v4084 = vunpack.c.l.b16 %v3949
    %v4085 = vunpack.c.l.b16 %v3950
    %v4086 = vunpack.c.l.b16 %v3951
    %v4087 = vunpack.c.l.b16 %v3952
    %v4088 = vunpack.c.l.b16 %v3953
    %v4089 = vunpack.c.l.b16 %v3954
    %v4090 = vunpack.c.l.b16 %v3955
    %v4091 = vunpack.c.l.b16 %v3956
    %v4092 = vunpack.c.l.b16 %v3957
    %v4093 = vunpack.c.l.b16 %v3958
    %v4094 = vunpack.c.l.b16 %v3959
    %v4095 = vunpack.c.l.b16 %v3960
    %v4096 = vunpack.c.l.b16 %v3961
    %v4097 = vunpack.c.l.b16 %v3962
    %v4098 = vunpack.c.l.b16 %v3963
    %v4099 = vunpack.c.l.b16 %v3964
    %v4100 = vunpack.c.l.b16 %v3965
    %v4101 = vunpack.c.l.b16 %v3966
    %v4102 = vunpack.c.l.b16 %v3967
    %v4103 = vunpack.c.l.b16 %v3968
    %v4104 = vunpack.c.l.b16 %v3969
    %v4105 = vunpack.c.l.b16 %v3970
    %v4106 = vunpack.c.l.b16 %v3971
    %v4107 = vunpack.c.l.b16 %v3972
    %v4108 = vunpack.c.l.b16 %v3973
    %v4109 = vunpack.c.l.b16 %v3974
    %v4110 = vunpack.c.l.b16 %v3975
    %v4111 = vunpack.c.l.b16 %v3976
    %v4112 = vunpack.c.l.b16 %v3977
    %v4113 = vunpack.c.l.b16 %v3978
    %v4114 = vunpack.c.l.b16 %v3979
    %v4115 = vunpack.c.l.b16 %v3980
    %v4116 = vunpack.c.l.b16 %v3981
    %v4117 = vunpack.c.l.b16 %v3982
    %v4118 = vunpack.c.l.b16 %v3983
    %v4119 = vunpack.c.l.b16 %v3984
    %v4120 = vunpack.c.l.b16 %v3985
    %v4121 = vunpack.c.l.b16 %v3986
    %v4122 = vunpack.c.l.b16 %v3987
    %v4123 = vunpack.c.l.b16 %v3988
    %v4124 = vunpack.c.l.b16 %v3989
    %v4125 = vunpack.c.l.b16 %v3990
    %v4126 = vunpack.c.l.b16 %v3991
    %v4127 = vunpack.c.l.b16 %v3992
    %v4128 = vunpack.c.l.b16 %v3993
    %v4129 = vunpack.c.l.b16 %v3994
    %v4130 = vunpack.c.l.b16 %v3995
    %v4131 = vunpack.c.l.b16 %v3996
    %v4132 = vunpack.c.l.b16 %v3997
    %v4133 = vunpack.c.l.b16 %v3998
    %v4134 = vunpack.c.l.b16 %v3999
    %v4135 = vunpack.c.l.b16 %v4000
    %v4136 = vpack.c.b16 %v4073, %v4072
    %v4137 = vpack.c.b16 %v4075, %v4074
    %v4138 = vpack.c.b16 %v4077, %v4076
    %v4139 = vpack.c.b16 %v4079, %v4078
    %v4140 = vpack.c.b16 %v4081, %v4080
    %v4141 = vpack.c.b16 %v4083, %v4082
    %v4142 = vpack.c.b16 %v4085, %v4084
    %v4143 = vpack.c.b16 %v4087, %v4086
    %v4144 = vpack.c.b16 %v4089, %v4088
    %v4145 = vpack.c.b16 %v4091, %v4090
    %v4146 = vpack.c.b16 %v4093, %v4092
    %v4147 = vpack.c.b16 %v4095, %v4094
    %v4148 = vpack.c.b16 %v4097, %v4096
    %v4149 = vpack.c.b16 %v4099, %v4098
    %v4150 = vpack.c.b16 %v4101, %v4100
    %v4151 = vpack.c.b16 %v4103, %v4102
    %v4152 = vpack.c.b16 %v4105, %v4104
    %v4153 = vpack.c.b16 %v4107, %v4106
    %v4154 = vpack.c.b16 %v4109, %v4108
    %v4155 = vpack.c.b16 %v4111, %v4110
    %v4156 = vpack.c.b16 %v4113, %v4112
    %v4157 = vpack.c.b16 %v4115, %v4114
    %v4158 = vpack.c.b16 %v4117, %v4116
    %v4159 = vpack.c.b16 %v4119, %v4118
    %v4160 = vpack.c.b16 %v4121, %v4120
    %v4161 = vpack.c.b16 %v4123, %v4122
    %v4162 = vpack.c.b16 %v4125, %v4124
    %v4163 = vpack.c.b16 %v4127, %v4126
    %v4164 = vpack.c.b16 %v4129, %v4128
    %v4165 = vpack.c.b16 %v4131, %v4130
    %v4166 = vpack.c.b16 %v4133, %v4132
    %v4167 = vpack.c.b16 %v4135, %v4134
    %4200 = vmatprep.subr.bf16.mxu0 0
    %4201 = vmatpush1.bf16.msra.mxu0 %v4143
    %4202 = vmatprep.subr.bf16.mxu0 0
    %4203 = vmatpush1.bf16.msra.mxu0 %v4142
    %4204 = vmatprep.subr.bf16.mxu0 0
    %4205 = vmatpush1.bf16.msra.mxu0 %v4141
    %4206 = vmatprep.subr.bf16.mxu0 0
    %4207 = vmatpush1.bf16.msra.mxu0 %v4140
    %4208 = vmatprep.subr.bf16.mxu0 0
    %4209 = vmatpush1.bf16.msra.mxu0 %v4139
    %4210 = vmatprep.subr.bf16.mxu0 0
    %4211 = vmatpush1.bf16.msra.mxu0 %v4138
    %4212 = vmatprep.subr.bf16.mxu0 0
    %4213 = vmatpush1.bf16.msra.mxu0 %v4137
    %4214 = vmatprep.subr.bf16.mxu0 0
    %4215 = vmatpush1.bf16.msra.mxu0 %v4136
    %4216 = vmatprep.subr.bf16.mxu0 0
    %4217 = vmatpush2.bf16.msra.mxu0 %v4151
    %4218 = vmatprep.subr.bf16.mxu0 0
    %4219 = vmatpush2.bf16.msra.mxu0 %v4150
    %4220 = vmatprep.subr.bf16.mxu0 0
    %4221 = vmatpush2.bf16.msra.mxu0 %v4149
    %4222 = vmatprep.subr.bf16.mxu0 0
    %4223 = vmatpush2.bf16.msra.mxu0 %v4148
    %4224 = vmatprep.subr.bf16.mxu0 0
    %4225 = vmatpush2.bf16.msra.mxu0 %v4147
    %4226 = vmatprep.subr.bf16.mxu0 0
    %4227 = vmatpush2.bf16.msra.mxu0 %v4146
    %4228 = vmatprep.subr.bf16.mxu0 0
    %4229 = vmatpush2.bf16.msra.mxu0 %v4145
    %4230 = vmatprep.subr.bf16.mxu0 0
    %4231 = vmatpush2.bf16.msra.mxu0 %v4144
    %4232 = vmatprep.mubr.bf16.mxu0 %v3934
    %4233 = vmatmul.mubr.bf16.gmra.mxu0 %v3933
    %v4234 = vpop.f32.mrf.mxu0
    %v4235 = vadd.f32 %v4006, %v4234
    %v4236 = vpop.f32.mrf.mxu0
    %v4237 = vpop.f32.mrf.mxu0
    %v4238 = vpop.f32.mrf.mxu0
    %4239 = vdwg.mxu0
    %4240 = vmatprep.subr.bf16.mxu0 0
    %4241 = vmatpush1.bf16.msra.mxu0 %v4159
    %4242 = vmatprep.subr.bf16.mxu0 0
    %4243 = vmatpush1.bf16.msra.mxu0 %v4158
    %4244 = vmatprep.subr.bf16.mxu0 0
    %4245 = vmatpush1.bf16.msra.mxu0 %v4157
    %4246 = vmatprep.subr.bf16.mxu0 0
    %4247 = vmatpush1.bf16.msra.mxu0 %v4156
    %4248 = vmatprep.subr.bf16.mxu0 0
    %4249 = vmatpush1.bf16.msra.mxu0 %v4155
    %4250 = vmatprep.subr.bf16.mxu0 0
    %4251 = vmatpush1.bf16.msra.mxu0 %v4154
    %4252 = vmatprep.subr.bf16.mxu0 0
    %4253 = vmatpush1.bf16.msra.mxu0 %v4153
    %4254 = vmatprep.subr.bf16.mxu0 0
    %4255 = vmatpush1.bf16.msra.mxu0 %v4152
    %4256 = vmatprep.subr.bf16.mxu0 0
    %4257 = vmatpush2.bf16.msra.mxu0 %v4167
    %4258 = vmatprep.subr.bf16.mxu0 0
    %4259 = vmatpush2.bf16.msra.mxu0 %v4166
    %4260 = vmatprep.subr.bf16.mxu0 0
    %4261 = vmatpush2.bf16.msra.mxu0 %v4165
    %4262 = vmatprep.subr.bf16.mxu0 0
    %4263 = vmatpush2.bf16.msra.mxu0 %v4164
    %4264 = vmatprep.subr.bf16.mxu0 0
    %4265 = vmatpush2.bf16.msra.mxu0 %v4163
    %4266 = vmatprep.subr.bf16.mxu0 0
    %4267 = vmatpush2.bf16.msra.mxu0 %v4162
    %4268 = vmatprep.subr.bf16.mxu0 0
    %4269 = vmatpush2.bf16.msra.mxu0 %v4161
    %4270 = vmatprep.subr.bf16.mxu0 0
    %4271 = vmatpush2.bf16.msra.mxu0 %v4160
    %4272 = vmatprep.mubr.bf16.mxu0 %v3936
    %4273 = vmatmul.mubr.bf16.gmra.mxu0 %v3935
    %v4274 = vpop.f32.mrf.mxu0
    %v4275 = vadd.f32 %v4235, %v4274
    %v4276 = vpop.f32.mrf.mxu0
    %v4277 = vpop.f32.mrf.mxu0
    %v4278 = vpop.f32.mrf.mxu0
    %4279 = vdwg.mxu0
    %vm4280 = vcmask 9216
    %4281 = vst.msk [vmem:[#allocation10] sm:$0x3] %vm4280, %v4275
    // Predicated region
    $region38: #{tpu_custom_call.1} parent=1 // pred_check
      _
    $region39: #{tpu_custom_call.1} parent=1 // pred_check_branch
      %4283 = sbr.rel (0) target = $region41
    $region40: #{tpu_custom_call.1} parent=1 // pred_region
      %s4285 = ssub.s32 32, 32
      %4286 = vsyncadd [#allocation4], %s4285
      %s4288 = sshll.u32 [#allocation10], 4
      %s4289 = int_to_ptr.vmem [resolvable:$true] %s4288
      %4291 = dma.vmem_to_hbm [thread:$0]  %s4289, 32, %s5, [#allocation4]
    $region41: #{tpu_custom_call.1} parent=1 // pred_fallthru
      _
    // Predicated region
    $region42: #{tpu_custom_call.1} parent=1 // pred_check
      _
    $region43: #{tpu_custom_call.1} parent=1 // pred_check_branch
      %4293 = sbr.rel (0) target = $region45
    $region44: #{tpu_custom_call.1} parent=1 // pred_region
      %4294 = dma.done [#allocation4], 32
    $region45: #{tpu_custom_call.1} parent=1 // pred_fallthru
      _
    %4295 = vsyncpa [#allocation3], 1
    %4296 = vsyncpa [#allocation6], 1
    %4297 = vsyncpa [#allocation9], 1
    %4298 = vsyncpa [#allocation4], 1

</llo_original>
